<compile_context>
chip_gen: v7x
topology: tpu7x:2x2x1
jax: 0.10.0
libtpu: 0.0.40
codegen_flags: <defaults>
</compile_context>

<pallas_src>
import jax
import jax.numpy as jnp
from jax import lax
from jax.experimental import pallas as pl
from jax.experimental.pallas import tpu as pltpu


def predictor_kernel(gi_ref, whh_ref, bhn_ref, wlin_ref, blin_ref, h0_ref,
                     out_ref, h_ref, hall_ref):
    """One grid step = one chunk of T time steps of the GRU recurrence.

    gi_ref   : (T*B, 3H) f32   precomputed embed(tok) @ W_ih^T + b_ih + [b_hr,b_hz,0]
                               time-major rows within the chunk (row u*B + b)
    whh_ref  : (H, 3H)   bf16  W_hh^T, gate order [r | z | n]
    bhn_ref  : (1, H)    f32   b_hn (stays inside r * (.) per PyTorch GRUCell)
    wlin_ref : (H, J)    bf16  output Linear weight^T
    blin_ref : (1, J)    f32   output Linear bias
    h0_ref   : (B, H)    f32   initial hidden state (parameter broadcast over B)
    out_ref  : (T*B, J)  f32   Linear(h_u) for every step of the chunk
    h_ref    : (B, H)    f32   scratch: hidden state carried across grid steps
    hall_ref : (T*B, H)  f32   scratch: hidden-state history of this chunk
    """
    B, H = h0_ref.shape
    T = gi_ref.shape[0] // B

    @pl.when(pl.program_id(0) == 0)
    def _():
        h_ref[...] = h0_ref[...]

    def step(u, h):
        row = pl.multiple_of(u * B, B)
        h_b = h.astype(jnp.bfloat16)

        # r gate
        gh_r = jnp.dot(h_b, whh_ref[:, pl.ds(0, H)],
                       preferred_element_type=jnp.float32)
        r = jax.nn.sigmoid(gi_ref[pl.ds(row, B), pl.ds(0, H)] + gh_r)

        # z gate
        gh_z = jnp.dot(h_b, whh_ref[:, pl.ds(H, H)],
                       preferred_element_type=jnp.float32)
        z = jax.nn.sigmoid(gi_ref[pl.ds(row, B), pl.ds(H, H)] + gh_z)

        # n gate -- PyTorch semantics: n = tanh(gi_n + r * (W_hn h + b_hn))
        gh_n = jnp.dot(h_b, whh_ref[:, pl.ds(2 * H, H)],
                       preferred_element_type=jnp.float32)
        n = jnp.tanh(gi_ref[pl.ds(row, B), pl.ds(2 * H, H)]
                     + r * (gh_n + bhn_ref[...]))

        h_new = (1.0 - z) * n + z * h
        hall_ref[pl.ds(row, B), :] = h_new
        return h_new

    h_final = lax.fori_loop(0, T, step, h_ref[...], unroll=True)
    h_ref[...] = h_final

    # Hoisted output projection: one MXU matmul over all T*B rows of this chunk.
    out_ref[...] = (
        jnp.dot(hall_ref[...].astype(jnp.bfloat16), wlin_ref[...],
                preferred_element_type=jnp.float32)
        + blin_ref[...]
    ).astype(out_ref.dtype)


def predictor_forward(y, params, *, steps_per_block=8):
    """y: (B, U) int32 tokens. Returns (B, U+1, joiner_dim) float32."""
    embed_w = params["embed"]          # (V, D)  D == H
    w_ih_t = params["w_ih_t"]          # (D, 3H)
    w_hh_t = params["w_hh_t"]          # (H, 3H)
    b_ih = params["b_ih"]              # (1, 3H)
    b_hh = params["b_hh"]              # (1, 3H)
    w_lin_t = params["w_lin_t"]        # (H, J)
    b_lin = params["b_lin"]            # (1, J)
    h0 = params["initial_state"]       # (H,)

    B, U = y.shape
    H = w_hh_t.shape[0]
    J = w_lin_t.shape[1]
    U1 = U + 1
    start_symbol = 0  # NULL_INDEX

    f32, bf16 = jnp.float32, jnp.bfloat16

    # ---- pad batch to a sublane multiple, U+1 to a whole number of time blocks ----
    B_pad = ((B + 7) // 8) * 8
    T = min(int(steps_per_block), U1)
    n_blocks = pl.cdiv(U1, T)
    U1_pad = n_blocks * T
    rows_blk = T * B_pad
    n_rows = U1_pad * B_pad

    # ---- hoisted Embedding + input projection + foldable biases -> (V, 3H) table ----
    # b_ih folds completely; of b_hh only the r/z parts may be folded (b_hn must stay
    # inside r * (W_hn h + b_hn)).
    bias_fold = jnp.concatenate(
        [b_ih[:, :2 * H] + b_hh[:, :2 * H], b_ih[:, 2 * H:]], axis=1)        # (1, 3H)
    table = jnp.dot(embed_w.astype(bf16), w_ih_t.astype(bf16),
                    preferred_element_type=f32) + bias_fold                   # (V, 3H) f32
    b_hn = b_hh[:, 2 * H:].astype(f32)                                        # (1, H)

    # Decoder inputs [start, y_0, ..., y_{U-1}], padded, time-major and flattened.
    dec = jnp.concatenate(
        [jnp.full((B, 1), start_symbol, dtype=y.dtype), y], axis=1)           # (B, U+1)
    dec = jnp.pad(dec, ((0, B_pad - B), (0, U1_pad - U1)))                    # (B_pad, U1_pad)
    dec_flat = dec.T.reshape(-1)                                              # (U1_pad*B_pad,)
    gi_all = jnp.take(table, dec_flat, axis=0)                                # (n_rows, 3H)

    whh_b = w_hh_t.astype(bf16)
    wlin_b = w_lin_t.astype(bf16)
    blin = b_lin.astype(f32)
    h0_b = jnp.broadcast_to(h0[None, :], (B_pad, H)).astype(f32)

    # VMEM budget: per-block residents (double-buffered inputs/outputs) + scratch.
    vmem_need = (2 * rows_blk * 3 * H * 4      # gi block (x2 pipeline buffers)
                 + 2 * H * 3 * H * 2           # W_hh bf16
                 + 2 * H * 4                   # b_hn
                 + 2 * H * J * 2               # W_lin bf16
                 + 2 * J * 4                   # b_lin
                 + 2 * B_pad * H * 4           # h0
                 + 2 * rows_blk * J * 4        # out block (x2)
                 + B_pad * H * 4               # carried h scratch
                 + rows_blk * H * 4)           # hidden-history scratch
    vmem_limit = int(min(48 * 1024 * 1024,
                         max(16 * 1024 * 1024, int(1.5 * vmem_need) + (2 << 20))))

    grid_spec = pltpu.PrefetchScalarGridSpec(
        num_scalar_prefetch=0,
        grid=(n_blocks,),
        in_specs=[
            pl.BlockSpec((rows_blk, 3 * H), lambda t: (t, 0)),   # gi (time-blocked)
            pl.BlockSpec((H, 3 * H), lambda t: (0, 0)),          # W_hh (resident)
            pl.BlockSpec((1, H), lambda t: (0, 0)),              # b_hn
            pl.BlockSpec((H, J), lambda t: (0, 0)),              # W_lin
            pl.BlockSpec((1, J), lambda t: (0, 0)),              # b_lin
            pl.BlockSpec((B_pad, H), lambda t: (0, 0)),          # h0
        ],
        out_specs=pl.BlockSpec((rows_blk, J), lambda t: (t, 0)),
        scratch_shapes=[pltpu.VMEM((B_pad, H), f32),             # carried hidden state
                        pltpu.VMEM((rows_blk, H), f32)],         # per-chunk history
    )

    out2d = pl.pallas_call(
        predictor_kernel,
        out_shape=jax.ShapeDtypeStruct((n_rows, J), f32),
        grid_spec=grid_spec,
        compiler_params=pltpu.CompilerParams(
            dimension_semantics=("arbitrary",),   # sequential recurrence over time
            vmem_limit_bytes=vmem_limit),
    )(gi_all, whh_b, b_hn, wlin_b, blin, h0_b)

    # time-major rows -> (B, U+1, J), dropping batch/time padding,
    # to match torch.stack(outs, dim=1).
    out = out2d.reshape(U1_pad, B_pad, J)[:U1, :B]
    return jnp.transpose(out, (1, 0, 2))


def reference_forward(y, params):
    """Pure-JAX reference with PyTorch GRUCell semantics and matching bf16 MXU casts."""
    embed_w = params["embed"]
    w_ih_t = params["w_ih_t"]
    w_hh_t = params["w_hh_t"]
    b_ih = params["b_ih"]
    b_hh = params["b_hh"]
    w_lin_t = params["w_lin_t"]
    b_lin = params["b_lin"]
    h0 = params["initial_state"]

    B, U = y.shape
    H = w_hh_t.shape[0]
    bf16, f32 = jnp.bfloat16, jnp.float32

    wih = w_ih_t.astype(bf16)
    whh = w_hh_t.astype(bf16)
    wlin = w_lin_t.astype(bf16)

    h = jnp.broadcast_to(h0[None, :], (B, H)).astype(f32)
    outs = []
    for u in range(U + 1):
        dec = jnp.zeros((B,), dtype=y.dtype) if u == 0 else y[:, u - 1]
        x = jnp.take(embed_w, dec, axis=0).astype(bf16)
        gi = jnp.dot(x, wih, preferred_element_type=f32) + b_ih
        gh = jnp.dot(h.astype(bf16), whh, preferred_element_type=f32) + b_hh
        r = jax.nn.sigmoid(gi[:, :H] + gh[:, :H])
        z = jax.nn.sigmoid(gi[:, H:2 * H] + gh[:, H:2 * H])
        n = jnp.tanh(gi[:, 2 * H:] + r * gh[:, 2 * H:])
        h = (1.0 - z) * n + z * h
        outs.append(jnp.dot(h.astype(bf16), wlin, preferred_element_type=f32) + b_lin[0])
    return jnp.stack(outs, axis=1)


def make_params(key, num_outputs, predictor_dim, joiner_dim):
    ks = jax.random.split(key, 8)
    s = 0.1
    return {
        "embed": s * jax.random.normal(ks[0], (num_outputs, predictor_dim), jnp.float32),
        "w_ih_t": s * jax.random.normal(ks[1], (predictor_dim, 3 * predictor_dim), jnp.float32),
        "w_hh_t": s * jax.random.normal(ks[2], (predictor_dim, 3 * predictor_dim), jnp.float32),
        "b_ih": s * jax.random.normal(ks[3], (1, 3 * predictor_dim), jnp.float32),
        "b_hh": s * jax.random.normal(ks[4], (1, 3 * predictor_dim), jnp.float32),
        "w_lin_t": s * jax.random.normal(ks[5], (predictor_dim, joiner_dim), jnp.float32),
        "b_lin": s * jax.random.normal(ks[6], (1, joiner_dim), jnp.float32),
        "initial_state": jax.random.normal(ks[7], (predictor_dim,), jnp.float32),
    }


if __name__ == "__main__":
    # Small shapes consistent with the module (predictor_dim == joiner_dim originally 1024).
    # U = 26 -> U+1 = 27 steps: exercises multiple time blocks AND the padded tail.
    NUM_OUTPUTS = 16      # vocab size
    PREDICTOR_DIM = 128   # stands in for 1024
    JOINER_DIM = 128      # stands in for 1024
    B, U = 8, 26

    key = jax.random.PRNGKey(0)
    pkey, ykey = jax.random.split(key)
    params = make_params(pkey, NUM_OUTPUTS, PREDICTOR_DIM, JOINER_DIM)
    y = jax.random.randint(ykey, (B, U), 1, NUM_OUTPUTS, dtype=jnp.int32)

    out = jax.jit(predictor_forward)(y, params)
    out = jax.block_until_ready(out)
    assert out.shape == (B, U + 1, JOINER_DIM), out.shape

    ref = reference_forward(y, params)
    max_err = float(jnp.max(jnp.abs(out - ref)))
    assert jnp.allclose(out, ref, atol=1e-2, rtol=1e-2), max_err

    print("KERNEL_OK")
</pallas_src>

<mosaic_0001>
module attributes {stable_mosaic.version = 11 : i64} {
  func.func @predictor_kernel(%arg0: i32, %arg1: memref<64x384xf32, #tpu.memory_space<vmem>>, %arg2: memref<128x384xbf16, #tpu.memory_space<vmem>>, %arg3: memref<1x128xf32, #tpu.memory_space<vmem>>, %arg4: memref<128x128xbf16, #tpu.memory_space<vmem>>, %arg5: memref<1x128xf32, #tpu.memory_space<vmem>>, %arg6: memref<8x128xf32, #tpu.memory_space<vmem>>, %arg7: memref<64x128xf32, #tpu.memory_space<vmem>>, %arg8: memref<8x128xf32, #tpu.memory_space<vmem>>, %arg9: memref<64x128xf32, #tpu.memory_space<vmem>>) attributes {dimension_semantics = [#tpu.dimension_semantics<arbitrary>], iteration_bounds = array<i64: 4>, scalar_prefetch = 0 : i64, scratch_operands = 2 : i64, tpu.core_type = #tpu.core_type<tc>, window_params = [{transform_indices = @transform_0, window_bounds = array<i64: 64, 384>}, {pipeline_mode = #tpu.pipeline_mode<synchronous>, transform_indices = @transform_1, window_bounds = array<i64: 128, 384>}, {pipeline_mode = #tpu.pipeline_mode<synchronous>, transform_indices = @transform_2, window_bounds = array<i64: 1, 128>}, {pipeline_mode = #tpu.pipeline_mode<synchronous>, transform_indices = @transform_3, window_bounds = array<i64: 128, 128>}, {pipeline_mode = #tpu.pipeline_mode<synchronous>, transform_indices = @transform_4, window_bounds = array<i64: 1, 128>}, {pipeline_mode = #tpu.pipeline_mode<synchronous>, transform_indices = @transform_5, window_bounds = array<i64: 8, 128>}, {transform_indices = @transform_6, window_bounds = array<i64: 64, 128>}]} {
    %c0_i32 = arith.constant 0 : i32
    %0 = arith.cmpi eq, %arg0, %c0_i32 : i32
    %1 = arith.extui %0 : i1 to i32
    %c0_i32_0 = arith.constant 0 : i32
    %2 = arith.cmpi ne, %1, %c0_i32_0 : i32
    scf.if %2 {
      %c0_163 = arith.constant 0 : index
      %c0_164 = arith.constant 0 : index
      %333 = vector.load %arg6[%c0_163, %c0_164] : memref<8x128xf32, #tpu.memory_space<vmem>>, vector<8x128xf32>
      %c0_165 = arith.constant 0 : index
      %c0_166 = arith.constant 0 : index
      %334 = vector.load %arg8[%c0_165, %c0_166] : memref<8x128xf32, #tpu.memory_space<vmem>>, vector<8x128xf32>
      tpu.vector_store %arg8[%c0_165, %c0_166], %333 {strides = array<i32>} : memref<8x128xf32, #tpu.memory_space<vmem>>, vector<8x128xf32>,
    } else {
    }
    %c0 = arith.constant 0 : index
    %c0_1 = arith.constant 0 : index
    %3 = vector.load %arg8[%c0, %c0_1] : memref<8x128xf32, #tpu.memory_space<vmem>>, vector<8x128xf32>
    %c0_i32_2 = arith.constant 0 : i32
    %c8_i32 = arith.constant 8 : i32
    %4 = arith.muli %c0_i32_2, %c8_i32 : i32
    %5 = tpu.assume_multiple %4, 8 : i32
    %6 = arith.truncf %3 : vector<8x128xf32> to vector<8x128xbf16>
    %c0_3 = arith.constant 0 : index
    %c0_4 = arith.constant 0 : index
    %7 = vector.load %arg2[%c0_3, %c0_4] : memref<128x384xbf16, #tpu.memory_space<vmem>>, vector<128x128xbf16>
    %cst = arith.constant dense<0.000000e+00> : vector<8x128xf32>
    %8 = tpu.matmul %6, %7, %cst {dimension_numbers = #tpu.dot_dimension_numbers<[1], [0], [0], [1], [0, 0, 1, 1], [], []>} : vector<8x128xbf16>, vector<128x128xbf16>, vector<8x128xf32> -> vector<8x128xf32>
    %9 = arith.index_cast %5 : i32 to index
    %c0_5 = arith.constant 0 : index
    %10 = vector.load %arg1[%9, %c0_5] : memref<64x384xf32, #tpu.memory_space<vmem>>, vector<8x128xf32>
    %11 = arith.addf %10, %8 : vector<8x128xf32>
    %12 = arith.negf %11 : vector<8x128xf32>
    %13 = math.exp %12 : vector<8x128xf32>
    %cst_6 = arith.constant 1.000000e+00 : f32
    %14 = vector.broadcast %cst_6 : f32 to vector<8x128xf32>
    %15 = arith.addf %14, %13 : vector<8x128xf32>
    %16 = arith.divf %14, %15 : vector<8x128xf32>
    %c0_7 = arith.constant 0 : index
    %c128 = arith.constant 128 : index
    %17 = vector.load %arg2[%c0_7, %c128] : memref<128x384xbf16, #tpu.memory_space<vmem>>, vector<128x128xbf16>
    %cst_8 = arith.constant dense<0.000000e+00> : vector<8x128xf32>
    %18 = tpu.matmul %6, %17, %cst_8 {dimension_numbers = #tpu.dot_dimension_numbers<[1], [0], [0], [1], [0, 0, 1, 1], [], []>} : vector<8x128xbf16>, vector<128x128xbf16>, vector<8x128xf32> -> vector<8x128xf32>
    %19 = arith.index_cast %5 : i32 to index
    %c128_9 = arith.constant 128 : index
    %20 = vector.load %arg1[%19, %c128_9] : memref<64x384xf32, #tpu.memory_space<vmem>>, vector<8x128xf32>
    %21 = arith.addf %20, %18 : vector<8x128xf32>
    %22 = arith.negf %21 : vector<8x128xf32>
    %23 = math.exp %22 : vector<8x128xf32>
    %cst_10 = arith.constant 1.000000e+00 : f32
    %24 = vector.broadcast %cst_10 : f32 to vector<8x128xf32>
    %25 = arith.addf %24, %23 : vector<8x128xf32>
    %26 = arith.divf %24, %25 : vector<8x128xf32>
    %c0_11 = arith.constant 0 : index
    %c256 = arith.constant 256 : index
    %27 = vector.load %arg2[%c0_11, %c256] : memref<128x384xbf16, #tpu.memory_space<vmem>>, vector<128x128xbf16>
    %cst_12 = arith.constant dense<0.000000e+00> : vector<8x128xf32>
    %28 = tpu.matmul %6, %27, %cst_12 {dimension_numbers = #tpu.dot_dimension_numbers<[1], [0], [0], [1], [0, 0, 1, 1], [], []>} : vector<8x128xbf16>, vector<128x128xbf16>, vector<8x128xf32> -> vector<8x128xf32>
    %29 = arith.index_cast %5 : i32 to index
    %c256_13 = arith.constant 256 : index
    %30 = vector.load %arg1[%29, %c256_13] : memref<64x384xf32, #tpu.memory_space<vmem>>, vector<8x128xf32>
    %c0_14 = arith.constant 0 : index
    %c0_15 = arith.constant 0 : index
    %31 = vector.load %arg3[%c0_14, %c0_15] : memref<1x128xf32, #tpu.memory_space<vmem>>, vector<1x128xf32>
    %32 = vector.broadcast %31 : vector<1x128xf32> to vector<8x128xf32>
    %33 = arith.addf %28, %32 : vector<8x128xf32>
    %34 = arith.mulf %16, %33 : vector<8x128xf32>
    %35 = arith.addf %30, %34 : vector<8x128xf32>
    %36 = math.tanh %35 : vector<8x128xf32>
    %cst_16 = arith.constant 1.000000e+00 : f32
    %37 = vector.broadcast %cst_16 : f32 to vector<8x128xf32>
    %38 = arith.subf %37, %26 : vector<8x128xf32>
    %39 = arith.mulf %38, %36 : vector<8x128xf32>
    %40 = arith.mulf %26, %3 : vector<8x128xf32>
    %41 = arith.addf %39, %40 : vector<8x128xf32>
    %42 = arith.index_cast %5 : i32 to index
    %c0_17 = arith.constant 0 : index
    %43 = vector.load %arg9[%42, %c0_17] : memref<64x128xf32, #tpu.memory_space<vmem>>, vector<8x128xf32>
    tpu.vector_store %arg9[%42, %c0_17], %41 {strides = array<i32>} : memref<64x128xf32, #tpu.memory_space<vmem>>, vector<8x128xf32>,
    %c1_i32 = arith.constant 1 : i32
    %c8_i32_18 = arith.constant 8 : i32
    %44 = arith.muli %c1_i32, %c8_i32_18 : i32
    %45 = tpu.assume_multiple %44, 8 : i32
    %46 = arith.truncf %41 : vector<8x128xf32> to vector<8x128xbf16>
    %c0_19 = arith.constant 0 : index
    %c0_20 = arith.constant 0 : index
    %47 = vector.load %arg2[%c0_19, %c0_20] : memref<128x384xbf16, #tpu.memory_space<vmem>>, vector<128x128xbf16>
    %cst_21 = arith.constant dense<0.000000e+00> : vector<8x128xf32>
    %48 = tpu.matmul %46, %47, %cst_21 {dimension_numbers = #tpu.dot_dimension_numbers<[1], [0], [0], [1], [0, 0, 1, 1], [], []>} : vector<8x128xbf16>, vector<128x128xbf16>, vector<8x128xf32> -> vector<8x128xf32>
    %49 = arith.index_cast %45 : i32 to index
    %c0_22 = arith.constant 0 : index
    %50 = vector.load %arg1[%49, %c0_22] : memref<64x384xf32, #tpu.memory_space<vmem>>, vector<8x128xf32>
    %51 = arith.addf %50, %48 : vector<8x128xf32>
    %52 = arith.negf %51 : vector<8x128xf32>
    %53 = math.exp %52 : vector<8x128xf32>
    %cst_23 = arith.constant 1.000000e+00 : f32
    %54 = vector.broadcast %cst_23 : f32 to vector<8x128xf32>
    %55 = arith.addf %54, %53 : vector<8x128xf32>
    %56 = arith.divf %54, %55 : vector<8x128xf32>
    %c0_24 = arith.constant 0 : index
    %c128_25 = arith.constant 128 : index
    %57 = vector.load %arg2[%c0_24, %c128_25] : memref<128x384xbf16, #tpu.memory_space<vmem>>, vector<128x128xbf16>
    %cst_26 = arith.constant dense<0.000000e+00> : vector<8x128xf32>
    %58 = tpu.matmul %46, %57, %cst_26 {dimension_numbers = #tpu.dot_dimension_numbers<[1], [0], [0], [1], [0, 0, 1, 1], [], []>} : vector<8x128xbf16>, vector<128x128xbf16>, vector<8x128xf32> -> vector<8x128xf32>
    %59 = arith.index_cast %45 : i32 to index
    %c128_27 = arith.constant 128 : index
    %60 = vector.load %arg1[%59, %c128_27] : memref<64x384xf32, #tpu.memory_space<vmem>>, vector<8x128xf32>
    %61 = arith.addf %60, %58 : vector<8x128xf32>
    %62 = arith.negf %61 : vector<8x128xf32>
    %63 = math.exp %62 : vector<8x128xf32>
    %cst_28 = arith.constant 1.000000e+00 : f32
    %64 = vector.broadcast %cst_28 : f32 to vector<8x128xf32>
    %65 = arith.addf %64, %63 : vector<8x128xf32>
    %66 = arith.divf %64, %65 : vector<8x128xf32>
    %c0_29 = arith.constant 0 : index
    %c256_30 = arith.constant 256 : index
    %67 = vector.load %arg2[%c0_29, %c256_30] : memref<128x384xbf16, #tpu.memory_space<vmem>>, vector<128x128xbf16>
    %cst_31 = arith.constant dense<0.000000e+00> : vector<8x128xf32>
    %68 = tpu.matmul %46, %67, %cst_31 {dimension_numbers = #tpu.dot_dimension_numbers<[1], [0], [0], [1], [0, 0, 1, 1], [], []>} : vector<8x128xbf16>, vector<128x128xbf16>, vector<8x128xf32> -> vector<8x128xf32>
    %69 = arith.index_cast %45 : i32 to index
    %c256_32 = arith.constant 256 : index
    %70 = vector.load %arg1[%69, %c256_32] : memref<64x384xf32, #tpu.memory_space<vmem>>, vector<8x128xf32>
    %c0_33 = arith.constant 0 : index
    %c0_34 = arith.constant 0 : index
    %71 = vector.load %arg3[%c0_33, %c0_34] : memref<1x128xf32, #tpu.memory_space<vmem>>, vector<1x128xf32>
    %72 = vector.broadcast %71 : vector<1x128xf32> to vector<8x128xf32>
    %73 = arith.addf %68, %72 : vector<8x128xf32>
    %74 = arith.mulf %56, %73 : vector<8x128xf32>
    %75 = arith.addf %70, %74 : vector<8x128xf32>
    %76 = math.tanh %75 : vector<8x128xf32>
    %cst_35 = arith.constant 1.000000e+00 : f32
    %77 = vector.broadcast %cst_35 : f32 to vector<8x128xf32>
    %78 = arith.subf %77, %66 : vector<8x128xf32>
    %79 = arith.mulf %78, %76 : vector<8x128xf32>
    %80 = arith.mulf %66, %41 : vector<8x128xf32>
    %81 = arith.addf %79, %80 : vector<8x128xf32>
    %82 = arith.index_cast %45 : i32 to index
    %c0_36 = arith.constant 0 : index
    %83 = vector.load %arg9[%82, %c0_36] : memref<64x128xf32, #tpu.memory_space<vmem>>, vector<8x128xf32>
    tpu.vector_store %arg9[%82, %c0_36], %81 {strides = array<i32>} : memref<64x128xf32, #tpu.memory_space<vmem>>, vector<8x128xf32>,
    %c2_i32 = arith.constant 2 : i32
    %c8_i32_37 = arith.constant 8 : i32
    %84 = arith.muli %c2_i32, %c8_i32_37 : i32
    %85 = tpu.assume_multiple %84, 8 : i32
    %86 = arith.truncf %81 : vector<8x128xf32> to vector<8x128xbf16>
    %c0_38 = arith.constant 0 : index
    %c0_39 = arith.constant 0 : index
    %87 = vector.load %arg2[%c0_38, %c0_39] : memref<128x384xbf16, #tpu.memory_space<vmem>>, vector<128x128xbf16>
    %cst_40 = arith.constant dense<0.000000e+00> : vector<8x128xf32>
    %88 = tpu.matmul %86, %87, %cst_40 {dimension_numbers = #tpu.dot_dimension_numbers<[1], [0], [0], [1], [0, 0, 1, 1], [], []>} : vector<8x128xbf16>, vector<128x128xbf16>, vector<8x128xf32> -> vector<8x128xf32>
    %89 = arith.index_cast %85 : i32 to index
    %c0_41 = arith.constant 0 : index
    %90 = vector.load %arg1[%89, %c0_41] : memref<64x384xf32, #tpu.memory_space<vmem>>, vector<8x128xf32>
    %91 = arith.addf %90, %88 : vector<8x128xf32>
    %92 = arith.negf %91 : vector<8x128xf32>
    %93 = math.exp %92 : vector<8x128xf32>
    %cst_42 = arith.constant 1.000000e+00 : f32
    %94 = vector.broadcast %cst_42 : f32 to vector<8x128xf32>
    %95 = arith.addf %94, %93 : vector<8x128xf32>
    %96 = arith.divf %94, %95 : vector<8x128xf32>
    %c0_43 = arith.constant 0 : index
    %c128_44 = arith.constant 128 : index
    %97 = vector.load %arg2[%c0_43, %c128_44] : memref<128x384xbf16, #tpu.memory_space<vmem>>, vector<128x128xbf16>
    %cst_45 = arith.constant dense<0.000000e+00> : vector<8x128xf32>
    %98 = tpu.matmul %86, %97, %cst_45 {dimension_numbers = #tpu.dot_dimension_numbers<[1], [0], [0], [1], [0, 0, 1, 1], [], []>} : vector<8x128xbf16>, vector<128x128xbf16>, vector<8x128xf32> -> vector<8x128xf32>
    %99 = arith.index_cast %85 : i32 to index
    %c128_46 = arith.constant 128 : index
    %100 = vector.load %arg1[%99, %c128_46] : memref<64x384xf32, #tpu.memory_space<vmem>>, vector<8x128xf32>
    %101 = arith.addf %100, %98 : vector<8x128xf32>
    %102 = arith.negf %101 : vector<8x128xf32>
    %103 = math.exp %102 : vector<8x128xf32>
    %cst_47 = arith.constant 1.000000e+00 : f32
    %104 = vector.broadcast %cst_47 : f32 to vector<8x128xf32>
    %105 = arith.addf %104, %103 : vector<8x128xf32>
    %106 = arith.divf %104, %105 : vector<8x128xf32>
    %c0_48 = arith.constant 0 : index
    %c256_49 = arith.constant 256 : index
    %107 = vector.load %arg2[%c0_48, %c256_49] : memref<128x384xbf16, #tpu.memory_space<vmem>>, vector<128x128xbf16>
    %cst_50 = arith.constant dense<0.000000e+00> : vector<8x128xf32>
    %108 = tpu.matmul %86, %107, %cst_50 {dimension_numbers = #tpu.dot_dimension_numbers<[1], [0], [0], [1], [0, 0, 1, 1], [], []>} : vector<8x128xbf16>, vector<128x128xbf16>, vector<8x128xf32> -> vector<8x128xf32>
    %109 = arith.index_cast %85 : i32 to index
    %c256_51 = arith.constant 256 : index
    %110 = vector.load %arg1[%109, %c256_51] : memref<64x384xf32, #tpu.memory_space<vmem>>, vector<8x128xf32>
    %c0_52 = arith.constant 0 : index
    %c0_53 = arith.constant 0 : index
    %111 = vector.load %arg3[%c0_52, %c0_53] : memref<1x128xf32, #tpu.memory_space<vmem>>, vector<1x128xf32>
    %112 = vector.broadcast %111 : vector<1x128xf32> to vector<8x128xf32>
    %113 = arith.addf %108, %112 : vector<8x128xf32>
    %114 = arith.mulf %96, %113 : vector<8x128xf32>
    %115 = arith.addf %110, %114 : vector<8x128xf32>
    %116 = math.tanh %115 : vector<8x128xf32>
    %cst_54 = arith.constant 1.000000e+00 : f32
    %117 = vector.broadcast %cst_54 : f32 to vector<8x128xf32>
    %118 = arith.subf %117, %106 : vector<8x128xf32>
    %119 = arith.mulf %118, %116 : vector<8x128xf32>
    %120 = arith.mulf %106, %81 : vector<8x128xf32>
    %121 = arith.addf %119, %120 : vector<8x128xf32>
    %122 = arith.index_cast %85 : i32 to index
    %c0_55 = arith.constant 0 : index
    %123 = vector.load %arg9[%122, %c0_55] : memref<64x128xf32, #tpu.memory_space<vmem>>, vector<8x128xf32>
    tpu.vector_store %arg9[%122, %c0_55], %121 {strides = array<i32>} : memref<64x128xf32, #tpu.memory_space<vmem>>, vector<8x128xf32>,
    %c3_i32 = arith.constant 3 : i32
    %c8_i32_56 = arith.constant 8 : i32
    %124 = arith.muli %c3_i32, %c8_i32_56 : i32
    %125 = tpu.assume_multiple %124, 8 : i32
    %126 = arith.truncf %121 : vector<8x128xf32> to vector<8x128xbf16>
    %c0_57 = arith.constant 0 : index
    %c0_58 = arith.constant 0 : index
    %127 = vector.load %arg2[%c0_57, %c0_58] : memref<128x384xbf16, #tpu.memory_space<vmem>>, vector<128x128xbf16>
    %cst_59 = arith.constant dense<0.000000e+00> : vector<8x128xf32>
    %128 = tpu.matmul %126, %127, %cst_59 {dimension_numbers = #tpu.dot_dimension_numbers<[1], [0], [0], [1], [0, 0, 1, 1], [], []>} : vector<8x128xbf16>, vector<128x128xbf16>, vector<8x128xf32> -> vector<8x128xf32>
    %129 = arith.index_cast %125 : i32 to index
    %c0_60 = arith.constant 0 : index
    %130 = vector.load %arg1[%129, %c0_60] : memref<64x384xf32, #tpu.memory_space<vmem>>, vector<8x128xf32>
    %131 = arith.addf %130, %128 : vector<8x128xf32>
    %132 = arith.negf %131 : vector<8x128xf32>
    %133 = math.exp %132 : vector<8x128xf32>
    %cst_61 = arith.constant 1.000000e+00 : f32
    %134 = vector.broadcast %cst_61 : f32 to vector<8x128xf32>
    %135 = arith.addf %134, %133 : vector<8x128xf32>
    %136 = arith.divf %134, %135 : vector<8x128xf32>
    %c0_62 = arith.constant 0 : index
    %c128_63 = arith.constant 128 : index
    %137 = vector.load %arg2[%c0_62, %c128_63] : memref<128x384xbf16, #tpu.memory_space<vmem>>, vector<128x128xbf16>
    %cst_64 = arith.constant dense<0.000000e+00> : vector<8x128xf32>
    %138 = tpu.matmul %126, %137, %cst_64 {dimension_numbers = #tpu.dot_dimension_numbers<[1], [0], [0], [1], [0, 0, 1, 1], [], []>} : vector<8x128xbf16>, vector<128x128xbf16>, vector<8x128xf32> -> vector<8x128xf32>
    %139 = arith.index_cast %125 : i32 to index
    %c128_65 = arith.constant 128 : index
    %140 = vector.load %arg1[%139, %c128_65] : memref<64x384xf32, #tpu.memory_space<vmem>>, vector<8x128xf32>
    %141 = arith.addf %140, %138 : vector<8x128xf32>
    %142 = arith.negf %141 : vector<8x128xf32>
    %143 = math.exp %142 : vector<8x128xf32>
    %cst_66 = arith.constant 1.000000e+00 : f32
    %144 = vector.broadcast %cst_66 : f32 to vector<8x128xf32>
    %145 = arith.addf %144, %143 : vector<8x128xf32>
    %146 = arith.divf %144, %145 : vector<8x128xf32>
    %c0_67 = arith.constant 0 : index
    %c256_68 = arith.constant 256 : index
    %147 = vector.load %arg2[%c0_67, %c256_68] : memref<128x384xbf16, #tpu.memory_space<vmem>>, vector<128x128xbf16>
    %cst_69 = arith.constant dense<0.000000e+00> : vector<8x128xf32>
    %148 = tpu.matmul %126, %147, %cst_69 {dimension_numbers = #tpu.dot_dimension_numbers<[1], [0], [0], [1], [0, 0, 1, 1], [], []>} : vector<8x128xbf16>, vector<128x128xbf16>, vector<8x128xf32> -> vector<8x128xf32>
    %149 = arith.index_cast %125 : i32 to index
    %c256_70 = arith.constant 256 : index
    %150 = vector.load %arg1[%149, %c256_70] : memref<64x384xf32, #tpu.memory_space<vmem>>, vector<8x128xf32>
    %c0_71 = arith.constant 0 : index
    %c0_72 = arith.constant 0 : index
    %151 = vector.load %arg3[%c0_71, %c0_72] : memref<1x128xf32, #tpu.memory_space<vmem>>, vector<1x128xf32>
    %152 = vector.broadcast %151 : vector<1x128xf32> to vector<8x128xf32>
    %153 = arith.addf %148, %152 : vector<8x128xf32>
    %154 = arith.mulf %136, %153 : vector<8x128xf32>
    %155 = arith.addf %150, %154 : vector<8x128xf32>
    %156 = math.tanh %155 : vector<8x128xf32>
    %cst_73 = arith.constant 1.000000e+00 : f32
    %157 = vector.broadcast %cst_73 : f32 to vector<8x128xf32>
    %158 = arith.subf %157, %146 : vector<8x128xf32>
    %159 = arith.mulf %158, %156 : vector<8x128xf32>
    %160 = arith.mulf %146, %121 : vector<8x128xf32>
    %161 = arith.addf %159, %160 : vector<8x128xf32>
    %162 = arith.index_cast %125 : i32 to index
    %c0_74 = arith.constant 0 : index
    %163 = vector.load %arg9[%162, %c0_74] : memref<64x128xf32, #tpu.memory_space<vmem>>, vector<8x128xf32>
    tpu.vector_store %arg9[%162, %c0_74], %161 {strides = array<i32>} : memref<64x128xf32, #tpu.memory_space<vmem>>, vector<8x128xf32>,
    %c4_i32 = arith.constant 4 : i32
    %c8_i32_75 = arith.constant 8 : i32
    %164 = arith.muli %c4_i32, %c8_i32_75 : i32
    %165 = tpu.assume_multiple %164, 8 : i32
    %166 = arith.truncf %161 : vector<8x128xf32> to vector<8x128xbf16>
    %c0_76 = arith.constant 0 : index
    %c0_77 = arith.constant 0 : index
    %167 = vector.load %arg2[%c0_76, %c0_77] : memref<128x384xbf16, #tpu.memory_space<vmem>>, vector<128x128xbf16>
    %cst_78 = arith.constant dense<0.000000e+00> : vector<8x128xf32>
    %168 = tpu.matmul %166, %167, %cst_78 {dimension_numbers = #tpu.dot_dimension_numbers<[1], [0], [0], [1], [0, 0, 1, 1], [], []>} : vector<8x128xbf16>, vector<128x128xbf16>, vector<8x128xf32> -> vector<8x128xf32>
    %169 = arith.index_cast %165 : i32 to index
    %c0_79 = arith.constant 0 : index
    %170 = vector.load %arg1[%169, %c0_79] : memref<64x384xf32, #tpu.memory_space<vmem>>, vector<8x128xf32>
    %171 = arith.addf %170, %168 : vector<8x128xf32>
    %172 = arith.negf %171 : vector<8x128xf32>
    %173 = math.exp %172 : vector<8x128xf32>
    %cst_80 = arith.constant 1.000000e+00 : f32
    %174 = vector.broadcast %cst_80 : f32 to vector<8x128xf32>
    %175 = arith.addf %174, %173 : vector<8x128xf32>
    %176 = arith.divf %174, %175 : vector<8x128xf32>
    %c0_81 = arith.constant 0 : index
    %c128_82 = arith.constant 128 : index
    %177 = vector.load %arg2[%c0_81, %c128_82] : memref<128x384xbf16, #tpu.memory_space<vmem>>, vector<128x128xbf16>
    %cst_83 = arith.constant dense<0.000000e+00> : vector<8x128xf32>
    %178 = tpu.matmul %166, %177, %cst_83 {dimension_numbers = #tpu.dot_dimension_numbers<[1], [0], [0], [1], [0, 0, 1, 1], [], []>} : vector<8x128xbf16>, vector<128x128xbf16>, vector<8x128xf32> -> vector<8x128xf32>
    %179 = arith.index_cast %165 : i32 to index
    %c128_84 = arith.constant 128 : index
    %180 = vector.load %arg1[%179, %c128_84] : memref<64x384xf32, #tpu.memory_space<vmem>>, vector<8x128xf32>
    %181 = arith.addf %180, %178 : vector<8x128xf32>
    %182 = arith.negf %181 : vector<8x128xf32>
    %183 = math.exp %182 : vector<8x128xf32>
    %cst_85 = arith.constant 1.000000e+00 : f32
    %184 = vector.broadcast %cst_85 : f32 to vector<8x128xf32>
    %185 = arith.addf %184, %183 : vector<8x128xf32>
    %186 = arith.divf %184, %185 : vector<8x128xf32>
    %c0_86 = arith.constant 0 : index
    %c256_87 = arith.constant 256 : index
    %187 = vector.load %arg2[%c0_86, %c256_87] : memref<128x384xbf16, #tpu.memory_space<vmem>>, vector<128x128xbf16>
    %cst_88 = arith.constant dense<0.000000e+00> : vector<8x128xf32>
    %188 = tpu.matmul %166, %187, %cst_88 {dimension_numbers = #tpu.dot_dimension_numbers<[1], [0], [0], [1], [0, 0, 1, 1], [], []>} : vector<8x128xbf16>, vector<128x128xbf16>, vector<8x128xf32> -> vector<8x128xf32>
    %189 = arith.index_cast %165 : i32 to index
    %c256_89 = arith.constant 256 : index
    %190 = vector.load %arg1[%189, %c256_89] : memref<64x384xf32, #tpu.memory_space<vmem>>, vector<8x128xf32>
    %c0_90 = arith.constant 0 : index
    %c0_91 = arith.constant 0 : index
    %191 = vector.load %arg3[%c0_90, %c0_91] : memref<1x128xf32, #tpu.memory_space<vmem>>, vector<1x128xf32>
    %192 = vector.broadcast %191 : vector<1x128xf32> to vector<8x128xf32>
    %193 = arith.addf %188, %192 : vector<8x128xf32>
    %194 = arith.mulf %176, %193 : vector<8x128xf32>
    %195 = arith.addf %190, %194 : vector<8x128xf32>
    %196 = math.tanh %195 : vector<8x128xf32>
    %cst_92 = arith.constant 1.000000e+00 : f32
    %197 = vector.broadcast %cst_92 : f32 to vector<8x128xf32>
    %198 = arith.subf %197, %186 : vector<8x128xf32>
    %199 = arith.mulf %198, %196 : vector<8x128xf32>
    %200 = arith.mulf %186, %161 : vector<8x128xf32>
    %201 = arith.addf %199, %200 : vector<8x128xf32>
    %202 = arith.index_cast %165 : i32 to index
    %c0_93 = arith.constant 0 : index
    %203 = vector.load %arg9[%202, %c0_93] : memref<64x128xf32, #tpu.memory_space<vmem>>, vector<8x128xf32>
    tpu.vector_store %arg9[%202, %c0_93], %201 {strides = array<i32>} : memref<64x128xf32, #tpu.memory_space<vmem>>, vector<8x128xf32>,
    %c5_i32 = arith.constant 5 : i32
    %c8_i32_94 = arith.constant 8 : i32
    %204 = arith.muli %c5_i32, %c8_i32_94 : i32
    %205 = tpu.assume_multiple %204, 8 : i32
    %206 = arith.truncf %201 : vector<8x128xf32> to vector<8x128xbf16>
    %c0_95 = arith.constant 0 : index
    %c0_96 = arith.constant 0 : index
    %207 = vector.load %arg2[%c0_95, %c0_96] : memref<128x384xbf16, #tpu.memory_space<vmem>>, vector<128x128xbf16>
    %cst_97 = arith.constant dense<0.000000e+00> : vector<8x128xf32>
    %208 = tpu.matmul %206, %207, %cst_97 {dimension_numbers = #tpu.dot_dimension_numbers<[1], [0], [0], [1], [0, 0, 1, 1], [], []>} : vector<8x128xbf16>, vector<128x128xbf16>, vector<8x128xf32> -> vector<8x128xf32>
    %209 = arith.index_cast %205 : i32 to index
    %c0_98 = arith.constant 0 : index
    %210 = vector.load %arg1[%209, %c0_98] : memref<64x384xf32, #tpu.memory_space<vmem>>, vector<8x128xf32>
    %211 = arith.addf %210, %208 : vector<8x128xf32>
    %212 = arith.negf %211 : vector<8x128xf32>
    %213 = math.exp %212 : vector<8x128xf32>
    %cst_99 = arith.constant 1.000000e+00 : f32
    %214 = vector.broadcast %cst_99 : f32 to vector<8x128xf32>
    %215 = arith.addf %214, %213 : vector<8x128xf32>
    %216 = arith.divf %214, %215 : vector<8x128xf32>
    %c0_100 = arith.constant 0 : index
    %c128_101 = arith.constant 128 : index
    %217 = vector.load %arg2[%c0_100, %c128_101] : memref<128x384xbf16, #tpu.memory_space<vmem>>, vector<128x128xbf16>
    %cst_102 = arith.constant dense<0.000000e+00> : vector<8x128xf32>
    %218 = tpu.matmul %206, %217, %cst_102 {dimension_numbers = #tpu.dot_dimension_numbers<[1], [0], [0], [1], [0, 0, 1, 1], [], []>} : vector<8x128xbf16>, vector<128x128xbf16>, vector<8x128xf32> -> vector<8x128xf32>
    %219 = arith.index_cast %205 : i32 to index
    %c128_103 = arith.constant 128 : index
    %220 = vector.load %arg1[%219, %c128_103] : memref<64x384xf32, #tpu.memory_space<vmem>>, vector<8x128xf32>
    %221 = arith.addf %220, %218 : vector<8x128xf32>
    %222 = arith.negf %221 : vector<8x128xf32>
    %223 = math.exp %222 : vector<8x128xf32>
    %cst_104 = arith.constant 1.000000e+00 : f32
    %224 = vector.broadcast %cst_104 : f32 to vector<8x128xf32>
    %225 = arith.addf %224, %223 : vector<8x128xf32>
    %226 = arith.divf %224, %225 : vector<8x128xf32>
    %c0_105 = arith.constant 0 : index
    %c256_106 = arith.constant 256 : index
    %227 = vector.load %arg2[%c0_105, %c256_106] : memref<128x384xbf16, #tpu.memory_space<vmem>>, vector<128x128xbf16>
    %cst_107 = arith.constant dense<0.000000e+00> : vector<8x128xf32>
    %228 = tpu.matmul %206, %227, %cst_107 {dimension_numbers = #tpu.dot_dimension_numbers<[1], [0], [0], [1], [0, 0, 1, 1], [], []>} : vector<8x128xbf16>, vector<128x128xbf16>, vector<8x128xf32> -> vector<8x128xf32>
    %229 = arith.index_cast %205 : i32 to index
    %c256_108 = arith.constant 256 : index
    %230 = vector.load %arg1[%229, %c256_108] : memref<64x384xf32, #tpu.memory_space<vmem>>, vector<8x128xf32>
    %c0_109 = arith.constant 0 : index
    %c0_110 = arith.constant 0 : index
    %231 = vector.load %arg3[%c0_109, %c0_110] : memref<1x128xf32, #tpu.memory_space<vmem>>, vector<1x128xf32>
    %232 = vector.broadcast %231 : vector<1x128xf32> to vector<8x128xf32>
    %233 = arith.addf %228, %232 : vector<8x128xf32>
    %234 = arith.mulf %216, %233 : vector<8x128xf32>
    %235 = arith.addf %230, %234 : vector<8x128xf32>
    %236 = math.tanh %235 : vector<8x128xf32>
    %cst_111 = arith.constant 1.000000e+00 : f32
    %237 = vector.broadcast %cst_111 : f32 to vector<8x128xf32>
    %238 = arith.subf %237, %226 : vector<8x128xf32>
    %239 = arith.mulf %238, %236 : vector<8x128xf32>
    %240 = arith.mulf %226, %201 : vector<8x128xf32>
    %241 = arith.addf %239, %240 : vector<8x128xf32>
    %242 = arith.index_cast %205 : i32 to index
    %c0_112 = arith.constant 0 : index
    %243 = vector.load %arg9[%242, %c0_112] : memref<64x128xf32, #tpu.memory_space<vmem>>, vector<8x128xf32>
    tpu.vector_store %arg9[%242, %c0_112], %241 {strides = array<i32>} : memref<64x128xf32, #tpu.memory_space<vmem>>, vector<8x128xf32>,
    %c6_i32 = arith.constant 6 : i32
    %c8_i32_113 = arith.constant 8 : i32
    %244 = arith.muli %c6_i32, %c8_i32_113 : i32
    %245 = tpu.assume_multiple %244, 8 : i32
    %246 = arith.truncf %241 : vector<8x128xf32> to vector<8x128xbf16>
    %c0_114 = arith.constant 0 : index
    %c0_115 = arith.constant 0 : index
    %247 = vector.load %arg2[%c0_114, %c0_115] : memref<128x384xbf16, #tpu.memory_space<vmem>>, vector<128x128xbf16>
    %cst_116 = arith.constant dense<0.000000e+00> : vector<8x128xf32>
    %248 = tpu.matmul %246, %247, %cst_116 {dimension_numbers = #tpu.dot_dimension_numbers<[1], [0], [0], [1], [0, 0, 1, 1], [], []>} : vector<8x128xbf16>, vector<128x128xbf16>, vector<8x128xf32> -> vector<8x128xf32>
    %249 = arith.index_cast %245 : i32 to index
    %c0_117 = arith.constant 0 : index
    %250 = vector.load %arg1[%249, %c0_117] : memref<64x384xf32, #tpu.memory_space<vmem>>, vector<8x128xf32>
    %251 = arith.addf %250, %248 : vector<8x128xf32>
    %252 = arith.negf %251 : vector<8x128xf32>
    %253 = math.exp %252 : vector<8x128xf32>
    %cst_118 = arith.constant 1.000000e+00 : f32
    %254 = vector.broadcast %cst_118 : f32 to vector<8x128xf32>
    %255 = arith.addf %254, %253 : vector<8x128xf32>
    %256 = arith.divf %254, %255 : vector<8x128xf32>
    %c0_119 = arith.constant 0 : index
    %c128_120 = arith.constant 128 : index
    %257 = vector.load %arg2[%c0_119, %c128_120] : memref<128x384xbf16, #tpu.memory_space<vmem>>, vector<128x128xbf16>
    %cst_121 = arith.constant dense<0.000000e+00> : vector<8x128xf32>
    %258 = tpu.matmul %246, %257, %cst_121 {dimension_numbers = #tpu.dot_dimension_numbers<[1], [0], [0], [1], [0, 0, 1, 1], [], []>} : vector<8x128xbf16>, vector<128x128xbf16>, vector<8x128xf32> -> vector<8x128xf32>
    %259 = arith.index_cast %245 : i32 to index
    %c128_122 = arith.constant 128 : index
    %260 = vector.load %arg1[%259, %c128_122] : memref<64x384xf32, #tpu.memory_space<vmem>>, vector<8x128xf32>
    %261 = arith.addf %260, %258 : vector<8x128xf32>
    %262 = arith.negf %261 : vector<8x128xf32>
    %263 = math.exp %262 : vector<8x128xf32>
    %cst_123 = arith.constant 1.000000e+00 : f32
    %264 = vector.broadcast %cst_123 : f32 to vector<8x128xf32>
    %265 = arith.addf %264, %263 : vector<8x128xf32>
    %266 = arith.divf %264, %265 : vector<8x128xf32>
    %c0_124 = arith.constant 0 : index
    %c256_125 = arith.constant 256 : index
    %267 = vector.load %arg2[%c0_124, %c256_125] : memref<128x384xbf16, #tpu.memory_space<vmem>>, vector<128x128xbf16>
    %cst_126 = arith.constant dense<0.000000e+00> : vector<8x128xf32>
    %268 = tpu.matmul %246, %267, %cst_126 {dimension_numbers = #tpu.dot_dimension_numbers<[1], [0], [0], [1], [0, 0, 1, 1], [], []>} : vector<8x128xbf16>, vector<128x128xbf16>, vector<8x128xf32> -> vector<8x128xf32>
    %269 = arith.index_cast %245 : i32 to index
    %c256_127 = arith.constant 256 : index
    %270 = vector.load %arg1[%269, %c256_127] : memref<64x384xf32, #tpu.memory_space<vmem>>, vector<8x128xf32>
    %c0_128 = arith.constant 0 : index
    %c0_129 = arith.constant 0 : index
    %271 = vector.load %arg3[%c0_128, %c0_129] : memref<1x128xf32, #tpu.memory_space<vmem>>, vector<1x128xf32>
    %272 = vector.broadcast %271 : vector<1x128xf32> to vector<8x128xf32>
    %273 = arith.addf %268, %272 : vector<8x128xf32>
    %274 = arith.mulf %256, %273 : vector<8x128xf32>
    %275 = arith.addf %270, %274 : vector<8x128xf32>
    %276 = math.tanh %275 : vector<8x128xf32>
    %cst_130 = arith.constant 1.000000e+00 : f32
    %277 = vector.broadcast %cst_130 : f32 to vector<8x128xf32>
    %278 = arith.subf %277, %266 : vector<8x128xf32>
    %279 = arith.mulf %278, %276 : vector<8x128xf32>
    %280 = arith.mulf %266, %241 : vector<8x128xf32>
    %281 = arith.addf %279, %280 : vector<8x128xf32>
    %282 = arith.index_cast %245 : i32 to index
    %c0_131 = arith.constant 0 : index
    %283 = vector.load %arg9[%282, %c0_131] : memref<64x128xf32, #tpu.memory_space<vmem>>, vector<8x128xf32>
    tpu.vector_store %arg9[%282, %c0_131], %281 {strides = array<i32>} : memref<64x128xf32, #tpu.memory_space<vmem>>, vector<8x128xf32>,
    %c7_i32 = arith.constant 7 : i32
    %c8_i32_132 = arith.constant 8 : i32
    %284 = arith.muli %c7_i32, %c8_i32_132 : i32
    %285 = tpu.assume_multiple %284, 8 : i32
    %286 = arith.truncf %281 : vector<8x128xf32> to vector<8x128xbf16>
    %c0_133 = arith.constant 0 : index
    %c0_134 = arith.constant 0 : index
    %287 = vector.load %arg2[%c0_133, %c0_134] : memref<128x384xbf16, #tpu.memory_space<vmem>>, vector<128x128xbf16>
    %cst_135 = arith.constant dense<0.000000e+00> : vector<8x128xf32>
    %288 = tpu.matmul %286, %287, %cst_135 {dimension_numbers = #tpu.dot_dimension_numbers<[1], [0], [0], [1], [0, 0, 1, 1], [], []>} : vector<8x128xbf16>, vector<128x128xbf16>, vector<8x128xf32> -> vector<8x128xf32>
    %289 = arith.index_cast %285 : i32 to index
    %c0_136 = arith.constant 0 : index
    %290 = vector.load %arg1[%289, %c0_136] : memref<64x384xf32, #tpu.memory_space<vmem>>, vector<8x128xf32>
    %291 = arith.addf %290, %288 : vector<8x128xf32>
    %292 = arith.negf %291 : vector<8x128xf32>
    %293 = math.exp %292 : vector<8x128xf32>
    %cst_137 = arith.constant 1.000000e+00 : f32
    %294 = vector.broadcast %cst_137 : f32 to vector<8x128xf32>
    %295 = arith.addf %294, %293 : vector<8x128xf32>
    %296 = arith.divf %294, %295 : vector<8x128xf32>
    %c0_138 = arith.constant 0 : index
    %c128_139 = arith.constant 128 : index
    %297 = vector.load %arg2[%c0_138, %c128_139] : memref<128x384xbf16, #tpu.memory_space<vmem>>, vector<128x128xbf16>
    %cst_140 = arith.constant dense<0.000000e+00> : vector<8x128xf32>
    %298 = tpu.matmul %286, %297, %cst_140 {dimension_numbers = #tpu.dot_dimension_numbers<[1], [0], [0], [1], [0, 0, 1, 1], [], []>} : vector<8x128xbf16>, vector<128x128xbf16>, vector<8x128xf32> -> vector<8x128xf32>
    %299 = arith.index_cast %285 : i32 to index
    %c128_141 = arith.constant 128 : index
    %300 = vector.load %arg1[%299, %c128_141] : memref<64x384xf32, #tpu.memory_space<vmem>>, vector<8x128xf32>
    %301 = arith.addf %300, %298 : vector<8x128xf32>
    %302 = arith.negf %301 : vector<8x128xf32>
    %303 = math.exp %302 : vector<8x128xf32>
    %cst_142 = arith.constant 1.000000e+00 : f32
    %304 = vector.broadcast %cst_142 : f32 to vector<8x128xf32>
    %305 = arith.addf %304, %303 : vector<8x128xf32>
    %306 = arith.divf %304, %305 : vector<8x128xf32>
    %c0_143 = arith.constant 0 : index
    %c256_144 = arith.constant 256 : index
    %307 = vector.load %arg2[%c0_143, %c256_144] : memref<128x384xbf16, #tpu.memory_space<vmem>>, vector<128x128xbf16>
    %cst_145 = arith.constant dense<0.000000e+00> : vector<8x128xf32>
    %308 = tpu.matmul %286, %307, %cst_145 {dimension_numbers = #tpu.dot_dimension_numbers<[1], [0], [0], [1], [0, 0, 1, 1], [], []>} : vector<8x128xbf16>, vector<128x128xbf16>, vector<8x128xf32> -> vector<8x128xf32>
    %309 = arith.index_cast %285 : i32 to index
    %c256_146 = arith.constant 256 : index
    %310 = vector.load %arg1[%309, %c256_146] : memref<64x384xf32, #tpu.memory_space<vmem>>, vector<8x128xf32>
    %c0_147 = arith.constant 0 : index
    %c0_148 = arith.constant 0 : index
    %311 = vector.load %arg3[%c0_147, %c0_148] : memref<1x128xf32, #tpu.memory_space<vmem>>, vector<1x128xf32>
    %312 = vector.broadcast %311 : vector<1x128xf32> to vector<8x128xf32>
    %313 = arith.addf %308, %312 : vector<8x128xf32>
    %314 = arith.mulf %296, %313 : vector<8x128xf32>
    %315 = arith.addf %310, %314 : vector<8x128xf32>
    %316 = math.tanh %315 : vector<8x128xf32>
    %cst_149 = arith.constant 1.000000e+00 : f32
    %317 = vector.broadcast %cst_149 : f32 to vector<8x128xf32>
    %318 = arith.subf %317, %306 : vector<8x128xf32>
    %319 = arith.mulf %318, %316 : vector<8x128xf32>
    %320 = arith.mulf %306, %281 : vector<8x128xf32>
    %321 = arith.addf %319, %320 : vector<8x128xf32>
    %322 = arith.index_cast %285 : i32 to index
    %c0_150 = arith.constant 0 : index
    %323 = vector.load %arg9[%322, %c0_150] : memref<64x128xf32, #tpu.memory_space<vmem>>, vector<8x128xf32>
    tpu.vector_store %arg9[%322, %c0_150], %321 {strides = array<i32>} : memref<64x128xf32, #tpu.memory_space<vmem>>, vector<8x128xf32>,
    %c8_i32_151 = arith.constant 8 : i32
    %c0_152 = arith.constant 0 : index
    %c0_153 = arith.constant 0 : index
    %324 = vector.load %arg8[%c0_152, %c0_153] : memref<8x128xf32, #tpu.memory_space<vmem>>, vector<8x128xf32>
    tpu.vector_store %arg8[%c0_152, %c0_153], %321 {strides = array<i32>} : memref<8x128xf32, #tpu.memory_space<vmem>>, vector<8x128xf32>,
    %c0_154 = arith.constant 0 : index
    %c0_155 = arith.constant 0 : index
    %325 = vector.load %arg9[%c0_154, %c0_155] : memref<64x128xf32, #tpu.memory_space<vmem>>, vector<64x128xf32>
    %326 = arith.truncf %325 : vector<64x128xf32> to vector<64x128xbf16>
    %c0_156 = arith.constant 0 : index
    %c0_157 = arith.constant 0 : index
    %327 = vector.load %arg4[%c0_156, %c0_157] : memref<128x128xbf16, #tpu.memory_space<vmem>>, vector<128x128xbf16>
    %cst_158 = arith.constant dense<0.000000e+00> : vector<64x128xf32>
    %328 = tpu.matmul %326, %327, %cst_158 {dimension_numbers = #tpu.dot_dimension_numbers<[1], [0], [0], [1], [0, 0, 1, 1], [], []>} : vector<64x128xbf16>, vector<128x128xbf16>, vector<64x128xf32> -> vector<64x128xf32>
    %c0_159 = arith.constant 0 : index
    %c0_160 = arith.constant 0 : index
    %329 = vector.load %arg5[%c0_159, %c0_160] : memref<1x128xf32, #tpu.memory_space<vmem>>, vector<1x128xf32>
    %330 = vector.broadcast %329 : vector<1x128xf32> to vector<64x128xf32>
    %331 = arith.addf %328, %330 : vector<64x128xf32>
    %c0_161 = arith.constant 0 : index
    %c0_162 = arith.constant 0 : index
    %332 = vector.load %arg7[%c0_161, %c0_162] : memref<64x128xf32, #tpu.memory_space<vmem>>, vector<64x128xf32>
    tpu.vector_store %arg7[%c0_161, %c0_162], %331 {strides = array<i32>} : memref<64x128xf32, #tpu.memory_space<vmem>>, vector<64x128xf32>,
    return
  }
  func.func @transform_0(%arg0: i32) -> (i32, i32) {
    %c0_i32 = arith.constant 0 : i32
    %c0_i32_0 = arith.constant 0 : i32
    return %arg0, %c0_i32 : i32, i32
  }
  func.func @transform_1(%arg0: i32) -> (i32, i32) {
    %c0_i32 = arith.constant 0 : i32
    %c0_i32_0 = arith.constant 0 : i32
    %c0_i32_1 = arith.constant 0 : i32
    return %c0_i32, %c0_i32_0 : i32, i32
  }
  func.func @transform_2(%arg0: i32) -> (i32, i32) {
    %c0_i32 = arith.constant 0 : i32
    %c0_i32_0 = arith.constant 0 : i32
    %c0_i32_1 = arith.constant 0 : i32
    return %c0_i32, %c0_i32_0 : i32, i32
  }
  func.func @transform_3(%arg0: i32) -> (i32, i32) {
    %c0_i32 = arith.constant 0 : i32
    %c0_i32_0 = arith.constant 0 : i32
    %c0_i32_1 = arith.constant 0 : i32
    return %c0_i32, %c0_i32_0 : i32, i32
  }
  func.func @transform_4(%arg0: i32) -> (i32, i32) {
    %c0_i32 = arith.constant 0 : i32
    %c0_i32_0 = arith.constant 0 : i32
    %c0_i32_1 = arith.constant 0 : i32
    return %c0_i32, %c0_i32_0 : i32, i32
  }
  func.func @transform_5(%arg0: i32) -> (i32, i32) {
    %c0_i32 = arith.constant 0 : i32
    %c0_i32_0 = arith.constant 0 : i32
    %c0_i32_1 = arith.constant 0 : i32
    return %c0_i32, %c0_i32_0 : i32, i32
  }
  func.func @transform_6(%arg0: i32) -> (i32, i32) {
    %c0_i32 = arith.constant 0 : i32
    %c0_i32_0 = arith.constant 0 : i32
    return %arg0, %c0_i32 : i32, i32
  }
}

</mosaic_0001>

<llo_original>
// kernel: predictor_forward.1
$region0: #{predictor_forward.1}
  #allocation0 [shape = 'u32[]', space=smem, size = 0x4, offset = 0x4, fixed_abs, tag = 'smem constant byte address 0x4 - core index']
  #allocation1 [shape = 'u32[144,128]{1,0:T(1,128)}', space=vmem, size = 0x12000, scoped, tag = 'internal scratch']
  #allocation2 [shape = 'f32[8,128]{1,0:T(8,128)}', space=vmem, size = 0x1000, scoped, tag = 'scratch operand']
  #allocation3 [shape = 'f32[64,128]{1,0:T(8,128)}', space=vmem, size = 0x8000, scoped, tag = 'scratch operand']
  %s0 = inlined_call_operand.vmem [shape: f32[256,384], index: 0, kind: input, shape index: {}]
  %s1 = inlined_call_operand.vmem [shape: bf16[128,384], index: 1, kind: input, shape index: {}]
  %s2 = inlined_call_operand.vmem [shape: f32[1,128], index: 2, kind: input, shape index: {}]
  %s3 = inlined_call_operand.vmem [shape: bf16[128,128], index: 3, kind: input, shape index: {}]
  %s4 = inlined_call_operand.vmem [shape: f32[1,128], index: 4, kind: input, shape index: {}]
  %s5 = inlined_call_operand.vmem [shape: f32[8,128], index: 5, kind: input, shape index: {}]
  %s6 = inlined_call_operand.vmem [shape: f32[256,128], index: 6, kind: output, shape index: {}]
  %s7 = sld [smem:[#allocation0]]
  $region61: #{predictor_forward.1} parent=0
    _
  %s9 = ssub.s32 1, %s7
  %s10 = scalar_select 0, %s9, %s7
  loop: start=0, step=1, limit=6
  $region2: #{predictor_forward.1} parent=0 // loop_pre_header
    _
  $region3: #{predictor_forward.1} parent=0 // loop_header
    %s12 = sphi 0, %s16
    %p13 = scmp.ge.s32.totalorder %s12, 6
    %s22 = sphi 0, %s24
    %s25 = sphi 0, %s22
    %s26 = sphi 0, %s25
    %s42 = sphi 0, %s26
    %s46 = sphi 0, %s46
    %s48 = sphi 0, %s46
    %s49 = sphi 0, %s48
    %s63 = sphi 0, %s49
    %s67 = sphi 0, %s67
    %s69 = sphi 0, %s67
    %s70 = sphi 0, %s69
    %s84 = sphi 0, %s70
    %s88 = sphi 0, %s88
    %s90 = sphi 0, %s88
    %s91 = sphi 0, %s90
    %s105 = sphi 0, %s91
    %s109 = sphi 0, %s109
    %s111 = sphi 0, %s109
    %s112 = sphi 0, %s111
    %s126 = sphi 0, %s112
    %s130 = sphi 0, %s130
    %s132 = sphi 0, %s130
    %s133 = sphi 0, %s132
    %s147 = sphi 0, %s133
    %s153 = sphi 0, %s155
    %s156 = sphi 0, %s153
    %s157 = sphi 0, %s156
    %s173 = sphi 0, %s157
  $region4: #{predictor_forward.1} parent=0 // loop_header_branch
    %15 = sbr.rel (%p13) target = $region8
  $region5: #{predictor_forward.1} parent=0 // loop_body
    %s17 = ssub.s32 %s12, 1
    %s18 = ssub.s32 %s12, 2
    %s19 = sadd.s32 %s12, 1
    %s20 = ssub.s32 %s12, %s19
    %p21 = scmp.eq.s32.totalorder %s20, 0
    %s23 = sadd.s32 %s22, 1
    %s24 = scalar_select %p21, %s22, %s23
    %p27 = pneg %p21
    %p28 = scmp.eq.s32.totalorder %s12, 3
    %p29 = por %p27, %p28
    %p30 = scmp.ne.s32.totalorder %s22, %s25
    %p31 = scmp.eq.s32.totalorder %s12, 0
    %p32 = por %p30, %p31
    %p33 = scmp.ne.s32.totalorder %s22, %s25
    %p34 = scmp.eq.s32.totalorder %s17, 3
    %p35 = por %p33, %p34
    %p36 = scmp.ne.s32.totalorder %s25, %s26
    %p37 = scmp.eq.s32.totalorder %s17, 0
    %p38 = por %p36, %p37
    %p39 = scmp.ne.s32.totalorder %s25, %s26
    %p40 = scmp.eq.s32.totalorder %s18, 3
    %p41 = por %p39, %p40
    %p43 = scmp.ne.s32.totalorder %s26, %s42
    %p44 = scmp.eq.s32.totalorder %s18, 0
    %p45 = por %p43, %p44
    %s47 = sadd.s32 %s46, 1
    %p50 = scmp.eq.s32.totalorder %s12, 3
    %p51 = scmp.ne.s32.totalorder %s46, %s48
    %p52 = scmp.eq.s32.totalorder %s12, 0
    %p53 = por %p51, %p52
    %p54 = scmp.ne.s32.totalorder %s46, %s48
    %p55 = scmp.eq.s32.totalorder %s17, 3
    %p56 = por %p54, %p55
    %p57 = scmp.ne.s32.totalorder %s48, %s49
    %p58 = scmp.eq.s32.totalorder %s17, 0
    %p59 = por %p57, %p58
    %p60 = scmp.ne.s32.totalorder %s48, %s49
    %p61 = scmp.eq.s32.totalorder %s18, 3
    %p62 = por %p60, %p61
    %p64 = scmp.ne.s32.totalorder %s49, %s63
    %p65 = scmp.eq.s32.totalorder %s18, 0
    %p66 = por %p64, %p65
    %s68 = sadd.s32 %s67, 1
    %p71 = scmp.eq.s32.totalorder %s12, 3
    %p72 = scmp.ne.s32.totalorder %s67, %s69
    %p73 = scmp.eq.s32.totalorder %s12, 0
    %p74 = por %p72, %p73
    %p75 = scmp.ne.s32.totalorder %s67, %s69
    %p76 = scmp.eq.s32.totalorder %s17, 3
    %p77 = por %p75, %p76
    %p78 = scmp.ne.s32.totalorder %s69, %s70
    %p79 = scmp.eq.s32.totalorder %s17, 0
    %p80 = por %p78, %p79
    %p81 = scmp.ne.s32.totalorder %s69, %s70
    %p82 = scmp.eq.s32.totalorder %s18, 3
    %p83 = por %p81, %p82
    %p85 = scmp.ne.s32.totalorder %s70, %s84
    %p86 = scmp.eq.s32.totalorder %s18, 0
    %p87 = por %p85, %p86
    %s89 = sadd.s32 %s88, 1
    %p92 = scmp.eq.s32.totalorder %s12, 3
    %p93 = scmp.ne.s32.totalorder %s88, %s90
    %p94 = scmp.eq.s32.totalorder %s12, 0
    %p95 = por %p93, %p94
    %p96 = scmp.ne.s32.totalorder %s88, %s90
    %p97 = scmp.eq.s32.totalorder %s17, 3
    %p98 = por %p96, %p97
    %p99 = scmp.ne.s32.totalorder %s90, %s91
    %p100 = scmp.eq.s32.totalorder %s17, 0
    %p101 = por %p99, %p100
    %p102 = scmp.ne.s32.totalorder %s90, %s91
    %p103 = scmp.eq.s32.totalorder %s18, 3
    %p104 = por %p102, %p103
    %p106 = scmp.ne.s32.totalorder %s91, %s105
    %p107 = scmp.eq.s32.totalorder %s18, 0
    %p108 = por %p106, %p107
    %s110 = sadd.s32 %s109, 1
    %p113 = scmp.eq.s32.totalorder %s12, 3
    %p114 = scmp.ne.s32.totalorder %s109, %s111
    %p115 = scmp.eq.s32.totalorder %s12, 0
    %p116 = por %p114, %p115
    %p117 = scmp.ne.s32.totalorder %s109, %s111
    %p118 = scmp.eq.s32.totalorder %s17, 3
    %p119 = por %p117, %p118
    %p120 = scmp.ne.s32.totalorder %s111, %s112
    %p121 = scmp.eq.s32.totalorder %s17, 0
    %p122 = por %p120, %p121
    %p123 = scmp.ne.s32.totalorder %s111, %s112
    %p124 = scmp.eq.s32.totalorder %s18, 3
    %p125 = por %p123, %p124
    %p127 = scmp.ne.s32.totalorder %s112, %s126
    %p128 = scmp.eq.s32.totalorder %s18, 0
    %p129 = por %p127, %p128
    %s131 = sadd.s32 %s130, 1
    %p134 = scmp.eq.s32.totalorder %s12, 3
    %p135 = scmp.ne.s32.totalorder %s130, %s132
    %p136 = scmp.eq.s32.totalorder %s12, 0
    %p137 = por %p135, %p136
    %p138 = scmp.ne.s32.totalorder %s130, %s132
    %p139 = scmp.eq.s32.totalorder %s17, 3
    %p140 = por %p138, %p139
    %p141 = scmp.ne.s32.totalorder %s132, %s133
    %p142 = scmp.eq.s32.totalorder %s17, 0
    %p143 = por %p141, %p142
    %p144 = scmp.ne.s32.totalorder %s132, %s133
    %p145 = scmp.eq.s32.totalorder %s18, 3
    %p146 = por %p144, %p145
    %p148 = scmp.ne.s32.totalorder %s133, %s147
    %p149 = scmp.eq.s32.totalorder %s18, 0
    %p150 = por %p148, %p149
    %s151 = ssub.s32 %s12, %s19
    %p152 = scmp.eq.s32.totalorder %s151, 0
    %s154 = sadd.s32 %s153, 1
    %s155 = scalar_select %p152, %s153, %s154
    %p158 = pneg %p152
    %p159 = scmp.eq.s32.totalorder %s12, 3
    %p160 = por %p158, %p159
    %p161 = scmp.ne.s32.totalorder %s153, %s156
    %p162 = scmp.eq.s32.totalorder %s12, 0
    %p163 = por %p161, %p162
    %p164 = scmp.ne.s32.totalorder %s153, %s156
    %p165 = scmp.eq.s32.totalorder %s17, 3
    %p166 = por %p164, %p165
    %p167 = scmp.ne.s32.totalorder %s156, %s157
    %p168 = scmp.eq.s32.totalorder %s17, 0
    %p169 = por %p167, %p168
    %p170 = scmp.ne.s32.totalorder %s156, %s157
    %p171 = scmp.eq.s32.totalorder %s18, 3
    %p172 = por %p170, %p171
    %p174 = scmp.ne.s32.totalorder %s157, %s173
    %p175 = scmp.eq.s32.totalorder %s18, 0
    %p176 = por %p174, %p175
    %p177 = scmp.le.s32.totalorder 1, %s12
    %p178 = scmp.lt.s32.totalorder %s12, 5
    %p179 = pnand %p177, %p178
    %p180 = pneg %p179
    // Predicated region
    $region9: #{predictor_forward.1} parent=5 // pred_check
      _
    $region10: #{predictor_forward.1} parent=5 // pred_check_branch
      %182 = sbr.rel (%p179) target = $region12
    $region11: #{predictor_forward.1} parent=5 // pred_region
      %s183 = ssub.s32 %s12, 1
      // Predicated region
      $region13: #{predictor_forward.1} parent=11 // pred_check
        %p184 = pneg %p59
      $region14: #{predictor_forward.1} parent=11 // pred_check_branch
        %186 = sbr.rel (%p184) target = $region16
      $region15: #{predictor_forward.1} parent=11 // pred_region
        _
      $region16: #{predictor_forward.1} parent=11 // pred_fallthru
        _
      // Predicated region
      $region17: #{predictor_forward.1} parent=11 // pred_check
        %p187 = pneg %p80
      $region18: #{predictor_forward.1} parent=11 // pred_check_branch
        %189 = sbr.rel (%p187) target = $region20
      $region19: #{predictor_forward.1} parent=11 // pred_region
        _
      $region20: #{predictor_forward.1} parent=11 // pred_fallthru
        _
      // Predicated region
      $region21: #{predictor_forward.1} parent=11 // pred_check
        %p190 = pneg %p101
      $region22: #{predictor_forward.1} parent=11 // pred_check_branch
        %192 = sbr.rel (%p190) target = $region24
      $region23: #{predictor_forward.1} parent=11 // pred_region
        _
      $region24: #{predictor_forward.1} parent=11 // pred_fallthru
        _
      // Predicated region
      $region25: #{predictor_forward.1} parent=11 // pred_check
        %p193 = pneg %p122
      $region26: #{predictor_forward.1} parent=11 // pred_check_branch
        %195 = sbr.rel (%p193) target = $region28
      $region27: #{predictor_forward.1} parent=11 // pred_region
        _
      $region28: #{predictor_forward.1} parent=11 // pred_fallthru
        _
      // Predicated region
      $region29: #{predictor_forward.1} parent=11 // pred_check
        %p196 = pneg %p143
      $region30: #{predictor_forward.1} parent=11 // pred_check_branch
        %198 = sbr.rel (%p196) target = $region32
      $region31: #{predictor_forward.1} parent=11 // pred_region
        _
      $region32: #{predictor_forward.1} parent=11 // pred_fallthru
        _
    $region12: #{predictor_forward.1} parent=5 // pred_fallthru
      _
    %p199 = scmp.lt.s32.totalorder %s12, 4
    // Predicated region
    $region33: #{predictor_forward.1} parent=5 // pred_check
      %p200 = pneg %p199
    $region34: #{predictor_forward.1} parent=5 // pred_check_branch
      %202 = sbr.rel (%p200) target = $region36
    $region35: #{predictor_forward.1} parent=5 // pred_region
      // Predicated region
      $region37: #{predictor_forward.1} parent=35 // pred_check
        %p203 = pneg %p32
      $region38: #{predictor_forward.1} parent=35 // pred_check_branch
        %205 = sbr.rel (%p203) target = $region40
      $region39: #{predictor_forward.1} parent=35 // pred_region
        %s206 = smul.u32 8, %s12
        %p207 = scmp.lt.s32.totalorder %s206, 31
        %s208 = scalar_select %p207, %s206, 31
        %s209 = smul.addr %s208, 3
        %s210 = smul.addr %s209, 8
        %s211 = scalar_lea.vmem %s0, %s210
        %s212 = smul.u32 8, %s12
      $region40: #{predictor_forward.1} parent=35 // pred_fallthru
        _
    $region36: #{predictor_forward.1} parent=5 // pred_fallthru
      _
    %p213 = scmp.le.s32.totalorder 1, %s12
    %p214 = scmp.lt.s32.totalorder %s12, 5
    %p215 = pnand %p213, %p214
    %p216 = pneg %p215
    // Predicated region
    $region41: #{predictor_forward.1} parent=5 // pred_check
      _
    $region42: #{predictor_forward.1} parent=5 // pred_check_branch
      %218 = sbr.rel (%p215) target = $region44
    $region43: #{predictor_forward.1} parent=5 // pred_region
      %s219 = ssub.s32 %s12, 1
      %s220 = smul.u32 8, %s17
      %p221 = scmp.lt.s32.totalorder %s220, 31
      %s222 = scalar_select %p221, %s220, 31
      %s223 = smul.addr %s222, 3
      %s224 = smul.addr %s223, 8
      %s225 = scalar_lea.vmem %s0, %s224
      %p226 = pneg %p38
      %p227 = pneg %p35
      %p228 = pneg %p59
      %p229 = pneg %p56
      %p230 = pneg %p80
      %p231 = pneg %p77
      %p232 = pneg %p101
      %p233 = pneg %p98
      %p234 = pneg %p122
      %p235 = pneg %p119
      %p236 = pneg %p143
      %p237 = pneg %p140
      %p238 = pneg %p169
      %p239 = pneg %p166
      %s240 = smul.u32 8, %s17
      %p241 = scmp.lt.s32.totalorder %s240, 31
      %s242 = scalar_select %p241, %s240, 31
      %s243 = smul.addr %s242, 8
      %s244 = scalar_lea.vmem %s6, %s243
      %s245 = smul.u32 8, %s17
      %p246 = scmp.lt.s32.totalorder %s245, 31
      %s247 = scalar_select %p246, %s245, 31
      %s248 = smul.addr %s247, 3
      %s249 = smul.addr %s248, 8
      %s250 = scalar_lea.vmem %s0, %s249
      %s251 = smul.u32 8, %s17
      %s252 = smul.u32 8, %s17
      %p253 = scmp.lt.s32.totalorder %s252, 31
      %s254 = scalar_select %p253, %s252, 31
      %s255 = smul.addr %s254, 8
      %s256 = scalar_lea.vmem %s6, %s255
      %s257 = smul.u32 8, %s17
      %p259 = scmp.eq.s32.totalorder %s17, 0
      // Predicated region
      $region45: #{predictor_forward.1} parent=43 // pred_check
        %p260 = pneg %p259
      $region46: #{predictor_forward.1} parent=43 // pred_check_branch
        %262 = sbr.rel (%p260) target = $region48
      $region47: #{predictor_forward.1} parent=43 // pred_region
        %v263 = vld [vmem:[%s5] sm:$0xff]
        %264 = vst [vmem:[#allocation2] sm:$0xff] %v263
      $region48: #{predictor_forward.1} parent=43 // pred_fallthru
        _
      %v265 = vld [vmem:[#allocation2] sm:$0xff]
      %v266 = vpack.c.bf16 %v265, %v265
      %v267 = vld [vmem:[%s1] sm:$0xf]
      %v268 = vld [vmem:[%s1 + $0xc] sm:$0xf]
      %v269 = vld [vmem:[%s1 + $0x18] sm:$0xf]
      %v270 = vld [vmem:[%s1 + $0x24] sm:$0xf]
      %v271 = vld [vmem:[%s1 + $0x30] sm:$0xf]
      %v272 = vld [vmem:[%s1 + $0x3c] sm:$0xf]
      %v273 = vld [vmem:[%s1 + $0x48] sm:$0xf]
      %v274 = vld [vmem:[%s1 + $0x54] sm:$0xf]
      %v275 = vld [vmem:[%s1 + $0x60] sm:$0xf]
      %v276 = vld [vmem:[%s1 + $0x6c] sm:$0xf]
      %v277 = vld [vmem:[%s1 + $0x78] sm:$0xf]
      %v278 = vld [vmem:[%s1 + $0x84] sm:$0xf]
      %v279 = vld [vmem:[%s1 + $0x90] sm:$0xf]
      %v280 = vld [vmem:[%s1 + $0x9c] sm:$0xf]
      %v281 = vld [vmem:[%s1 + $0xa8] sm:$0xf]
      %v282 = vld [vmem:[%s1 + $0xb4] sm:$0xf]
      %v299 = vunpack.c.l.b16 %v267
      %v300 = vunpack.c.l.b16 %v268
      %v301 = vunpack.c.l.b16 %v269
      %v302 = vunpack.c.l.b16 %v270
      %v303 = vunpack.c.l.b16 %v271
      %v304 = vunpack.c.l.b16 %v272
      %v305 = vunpack.c.l.b16 %v273
      %v306 = vunpack.c.l.b16 %v274
      %v307 = vunpack.c.l.b16 %v275
      %v308 = vunpack.c.l.b16 %v276
      %v309 = vunpack.c.l.b16 %v277
      %v310 = vunpack.c.l.b16 %v278
      %v311 = vunpack.c.l.b16 %v279
      %v312 = vunpack.c.l.b16 %v280
      %v313 = vunpack.c.l.b16 %v281
      %v314 = vunpack.c.l.b16 %v282
      %v315 = vpack.c.b16 %v300, %v299
      %v316 = vpack.c.b16 %v302, %v301
      %v317 = vpack.c.b16 %v304, %v303
      %v318 = vpack.c.b16 %v306, %v305
      %v319 = vpack.c.b16 %v308, %v307
      %v320 = vpack.c.b16 %v310, %v309
      %v321 = vpack.c.b16 %v312, %v311
      %v322 = vpack.c.b16 %v314, %v313
      %331 = vmatprep.subr.bf16.mxu0 0
      %332 = vmatpush1.bf16.msra.mxu0 %v315
      %333 = vmatprep.subr.bf16.mxu0 0
      %334 = vmatpush1.bf16.msra.mxu0 %v316
      %335 = vmatprep.subr.bf16.mxu0 0
      %336 = vmatpush1.bf16.msra.mxu0 %v317
      %337 = vmatprep.subr.bf16.mxu0 0
      %338 = vmatpush1.bf16.msra.mxu0 %v318
      %339 = vmatprep.subr.bf16.mxu0 0
      %340 = vmatpush1.bf16.msra.mxu0 %v319
      %341 = vmatprep.subr.bf16.mxu0 0
      %342 = vmatpush1.bf16.msra.mxu0 %v320
      %343 = vmatprep.subr.bf16.mxu0 0
      %344 = vmatpush1.bf16.msra.mxu0 %v321
      %345 = vmatprep.subr.bf16.mxu0 0
      %346 = vmatpush1.bf16.msra.mxu0 %v322
      %347 = vmatprep.subr.bf16.mxu0 0
      %348 = vmatpush1.bf16.msra.mxu0 0
      %349 = vmatprep.subr.bf16.mxu0 0
      %350 = vmatpush1.bf16.msra.mxu0 0
      %351 = vmatprep.subr.bf16.mxu0 0
      %352 = vmatpush1.bf16.msra.mxu0 0
      %353 = vmatprep.subr.bf16.mxu0 0
      %354 = vmatpush1.bf16.msra.mxu0 0
      %355 = vmatprep.subr.bf16.mxu0 0
      %356 = vmatpush1.bf16.msra.mxu0 0
      %357 = vmatprep.subr.bf16.mxu0 0
      %358 = vmatpush1.bf16.msra.mxu0 0
      %359 = vmatprep.subr.bf16.mxu0 0
      %360 = vmatpush1.bf16.msra.mxu0 0
      %361 = vmatprep.subr.bf16.mxu0 0
      %362 = vmatpush1.bf16.msra.mxu0 0
      %363 = vmatprep.mubr.bf16.mxu0 0
      %364 = vmatmul.mubr.bf16.gmra.mrb[0].mxu0 %v266
      %v365 = vpop.f32.mrb[0].mxu0
      %v366 = vadd.f32 0.0, %v365
      %v367 = vpop.f32.mrb[0].mxu0
      %v368 = vpop.f32.mrb[0].mxu0
      %v369 = vpop.f32.mrb[0].mxu0
      %370 = vdwg.mxu0
      %s371 = smul.u32 0, 3
      %s372 = smul.addr %s371, 8
      %s373 = scalar_lea.vmem %s250, %s372
      %v374 = vld [vmem:[%s373] sm:$0xff]
      %v375 = vadd.f32 %v374, %v366
      %v376 = vxor.u32 %v375, 2147483648
      %v377 = vmul.f32 %v376, 1.442695
      %v378 = vpow.pop %v377
      %v379 = vadd.f32 %v378, 1.0
      %v380 = vrcp.pop %v379
      %v381 = vmul.f32 1.0, %v380
      %v382 = vld [vmem:[%s1 + $0x4] sm:$0xf]
      %v383 = vld [vmem:[%s1 + $0x10] sm:$0xf]
      %v384 = vld [vmem:[%s1 + $0x1c] sm:$0xf]
      %v385 = vld [vmem:[%s1 + $0x28] sm:$0xf]
      %v386 = vld [vmem:[%s1 + $0x34] sm:$0xf]
      %v387 = vld [vmem:[%s1 + $0x40] sm:$0xf]
      %v388 = vld [vmem:[%s1 + $0x4c] sm:$0xf]
      %v389 = vld [vmem:[%s1 + $0x58] sm:$0xf]
      %v390 = vld [vmem:[%s1 + $0x64] sm:$0xf]
      %v391 = vld [vmem:[%s1 + $0x70] sm:$0xf]
      %v392 = vld [vmem:[%s1 + $0x7c] sm:$0xf]
      %v393 = vld [vmem:[%s1 + $0x88] sm:$0xf]
      %v394 = vld [vmem:[%s1 + $0x94] sm:$0xf]
      %v395 = vld [vmem:[%s1 + $0xa0] sm:$0xf]
      %v396 = vld [vmem:[%s1 + $0xac] sm:$0xf]
      %v397 = vld [vmem:[%s1 + $0xb8] sm:$0xf]
      %v414 = vunpack.c.l.b16 %v382
      %v415 = vunpack.c.l.b16 %v383
      %v416 = vunpack.c.l.b16 %v384
      %v417 = vunpack.c.l.b16 %v385
      %v418 = vunpack.c.l.b16 %v386
      %v419 = vunpack.c.l.b16 %v387
      %v420 = vunpack.c.l.b16 %v388
      %v421 = vunpack.c.l.b16 %v389
      %v422 = vunpack.c.l.b16 %v390
      %v423 = vunpack.c.l.b16 %v391
      %v424 = vunpack.c.l.b16 %v392
      %v425 = vunpack.c.l.b16 %v393
      %v426 = vunpack.c.l.b16 %v394
      %v427 = vunpack.c.l.b16 %v395
      %v428 = vunpack.c.l.b16 %v396
      %v429 = vunpack.c.l.b16 %v397
      %v430 = vpack.c.b16 %v415, %v414
      %v431 = vpack.c.b16 %v417, %v416
      %v432 = vpack.c.b16 %v419, %v418
      %v433 = vpack.c.b16 %v421, %v420
      %v434 = vpack.c.b16 %v423, %v422
      %v435 = vpack.c.b16 %v425, %v424
      %v436 = vpack.c.b16 %v427, %v426
      %v437 = vpack.c.b16 %v429, %v428
      %446 = vmatprep.subr.bf16.mxu0 0
      %447 = vmatpush1.bf16.msra.mxu0 %v430
      %448 = vmatprep.subr.bf16.mxu0 0
      %449 = vmatpush1.bf16.msra.mxu0 %v431
      %450 = vmatprep.subr.bf16.mxu0 0
      %451 = vmatpush1.bf16.msra.mxu0 %v432
      %452 = vmatprep.subr.bf16.mxu0 0
      %453 = vmatpush1.bf16.msra.mxu0 %v433
      %454 = vmatprep.subr.bf16.mxu0 0
      %455 = vmatpush1.bf16.msra.mxu0 %v434
      %456 = vmatprep.subr.bf16.mxu0 0
      %457 = vmatpush1.bf16.msra.mxu0 %v435
      %458 = vmatprep.subr.bf16.mxu0 0
      %459 = vmatpush1.bf16.msra.mxu0 %v436
      %460 = vmatprep.subr.bf16.mxu0 0
      %461 = vmatpush1.bf16.msra.mxu0 %v437
      %462 = vmatprep.subr.bf16.mxu0 0
      %463 = vmatpush1.bf16.msra.mxu0 0
      %464 = vmatprep.subr.bf16.mxu0 0
      %465 = vmatpush1.bf16.msra.mxu0 0
      %466 = vmatprep.subr.bf16.mxu0 0
      %467 = vmatpush1.bf16.msra.mxu0 0
      %468 = vmatprep.subr.bf16.mxu0 0
      %469 = vmatpush1.bf16.msra.mxu0 0
      %470 = vmatprep.subr.bf16.mxu0 0
      %471 = vmatpush1.bf16.msra.mxu0 0
      %472 = vmatprep.subr.bf16.mxu0 0
      %473 = vmatpush1.bf16.msra.mxu0 0
      %474 = vmatprep.subr.bf16.mxu0 0
      %475 = vmatpush1.bf16.msra.mxu0 0
      %476 = vmatprep.subr.bf16.mxu0 0
      %477 = vmatpush1.bf16.msra.mxu0 0
      %478 = vmatprep.mubr.bf16.mxu0 0
      %479 = vmatmul.mubr.bf16.gmra.mrb[0].mxu0 %v266
      %v480 = vpop.f32.mrb[0].mxu0
      %v481 = vadd.f32 0.0, %v480
      %v482 = vpop.f32.mrb[0].mxu0
      %v483 = vpop.f32.mrb[0].mxu0
      %v484 = vpop.f32.mrb[0].mxu0
      %485 = vdwg.mxu0
      %v486 = vld [vmem:[%s373 + $0x8] sm:$0xff]
      %v487 = vadd.f32 %v486, %v481
      %v488 = vxor.u32 %v487, 2147483648
      %v489 = vmul.f32 %v488, 1.442695
      %v490 = vpow.pop %v489
      %v491 = vadd.f32 %v490, 1.0
      %v492 = vrcp.pop %v491
      %v493 = vmul.f32 1.0, %v492
      %v494 = vld [vmem:[%s1 + $0x8] sm:$0xf]
      %v495 = vld [vmem:[%s1 + $0x14] sm:$0xf]
      %v496 = vld [vmem:[%s1 + $0x20] sm:$0xf]
      %v497 = vld [vmem:[%s1 + $0x2c] sm:$0xf]
      %v498 = vld [vmem:[%s1 + $0x38] sm:$0xf]
      %v499 = vld [vmem:[%s1 + $0x44] sm:$0xf]
      %v500 = vld [vmem:[%s1 + $0x50] sm:$0xf]
      %v501 = vld [vmem:[%s1 + $0x5c] sm:$0xf]
      %v502 = vld [vmem:[%s1 + $0x68] sm:$0xf]
      %v503 = vld [vmem:[%s1 + $0x74] sm:$0xf]
      %v504 = vld [vmem:[%s1 + $0x80] sm:$0xf]
      %v505 = vld [vmem:[%s1 + $0x8c] sm:$0xf]
      %v506 = vld [vmem:[%s1 + $0x98] sm:$0xf]
      %v507 = vld [vmem:[%s1 + $0xa4] sm:$0xf]
      %v508 = vld [vmem:[%s1 + $0xb0] sm:$0xf]
      %v509 = vld [vmem:[%s1 + $0xbc] sm:$0xf]
      %v510 = vld [vmem:[%s373 + $0x10] sm:$0xff]
      %v511 = vld [vmem:[%s2] sm:$0x1]
      %v513 = vlaneseq
      %v514 = vshrl.u32 %v513, 7
      %v515 = vsub.s32 0, %v514
      %v516 = vrot.slane %v511, %v515
      %v534 = vunpack.c.l.b16 %v494
      %v535 = vunpack.c.l.b16 %v495
      %v536 = vunpack.c.l.b16 %v496
      %v537 = vunpack.c.l.b16 %v497
      %v538 = vunpack.c.l.b16 %v498
      %v539 = vunpack.c.l.b16 %v499
      %v540 = vunpack.c.l.b16 %v500
      %v541 = vunpack.c.l.b16 %v501
      %v542 = vunpack.c.l.b16 %v502
      %v543 = vunpack.c.l.b16 %v503
      %v544 = vunpack.c.l.b16 %v504
      %v545 = vunpack.c.l.b16 %v505
      %v546 = vunpack.c.l.b16 %v506
      %v547 = vunpack.c.l.b16 %v507
      %v548 = vunpack.c.l.b16 %v508
      %v549 = vunpack.c.l.b16 %v509
      %v550 = vpack.c.b16 %v535, %v534
      %v551 = vpack.c.b16 %v537, %v536
      %v552 = vpack.c.b16 %v539, %v538
      %v553 = vpack.c.b16 %v541, %v540
      %v554 = vpack.c.b16 %v543, %v542
      %v555 = vpack.c.b16 %v545, %v544
      %v556 = vpack.c.b16 %v547, %v546
      %v557 = vpack.c.b16 %v549, %v548
      %566 = vmatprep.subr.bf16.mxu0 0
      %567 = vmatpush1.bf16.msra.mxu0 %v550
      %568 = vmatprep.subr.bf16.mxu0 0
      %569 = vmatpush1.bf16.msra.mxu0 %v551
      %570 = vmatprep.subr.bf16.mxu0 0
      %571 = vmatpush1.bf16.msra.mxu0 %v552
      %572 = vmatprep.subr.bf16.mxu0 0
      %573 = vmatpush1.bf16.msra.mxu0 %v553
      %574 = vmatprep.subr.bf16.mxu0 0
      %575 = vmatpush1.bf16.msra.mxu0 %v554
      %576 = vmatprep.subr.bf16.mxu0 0
      %577 = vmatpush1.bf16.msra.mxu0 %v555
      %578 = vmatprep.subr.bf16.mxu0 0
      %579 = vmatpush1.bf16.msra.mxu0 %v556
      %580 = vmatprep.subr.bf16.mxu0 0
      %581 = vmatpush1.bf16.msra.mxu0 %v557
      %582 = vmatprep.subr.bf16.mxu0 0
      %583 = vmatpush1.bf16.msra.mxu0 0
      %584 = vmatprep.subr.bf16.mxu0 0
      %585 = vmatpush1.bf16.msra.mxu0 0
      %586 = vmatprep.subr.bf16.mxu0 0
      %587 = vmatpush1.bf16.msra.mxu0 0
      %588 = vmatprep.subr.bf16.mxu0 0
      %589 = vmatpush1.bf16.msra.mxu0 0
      %590 = vmatprep.subr.bf16.mxu0 0
      %591 = vmatpush1.bf16.msra.mxu0 0
      %592 = vmatprep.subr.bf16.mxu0 0
      %593 = vmatpush1.bf16.msra.mxu0 0
      %594 = vmatprep.subr.bf16.mxu0 0
      %595 = vmatpush1.bf16.msra.mxu0 0
      %596 = vmatprep.subr.bf16.mxu0 0
      %597 = vmatpush1.bf16.msra.mxu0 0
      %598 = vmatprep.mubr.bf16.mxu0 0
      %599 = vmatmul.mubr.bf16.gmra.mrb[0].mxu0 %v266
      %v600 = vpop.f32.mrb[0].mxu0
      %v601 = vadd.f32 %v516, %v600
      %v602 = vpop.f32.mrb[0].mxu0
      %v603 = vpop.f32.mrb[0].mxu0
      %v604 = vpop.f32.mrb[0].mxu0
      %605 = vdwg.mxu0
      %v606 = vmul.f32 %v381, %v601
      %v607 = vadd.f32 %v510, %v606
      %v608 = vtanh.pop %v607
      %v609 = vsub.f32 1.0, %v493
      %v610 = vmul.f32 %v609, %v608
      %v611 = vmul.f32 %v493, %v265
      %v612 = vadd.f32 %v610, %v611
      %613 = vst [vmem:[#allocation3] sm:$0xff] %v612
      %v614 = vpack.c.bf16 %v612, %v612
      %v615 = vld [vmem:[%s1] sm:$0xf]
      %v616 = vld [vmem:[%s1 + $0xc] sm:$0xf]
      %v617 = vld [vmem:[%s1 + $0x18] sm:$0xf]
      %v618 = vld [vmem:[%s1 + $0x24] sm:$0xf]
      %v619 = vld [vmem:[%s1 + $0x30] sm:$0xf]
      %v620 = vld [vmem:[%s1 + $0x3c] sm:$0xf]
      %v621 = vld [vmem:[%s1 + $0x48] sm:$0xf]
      %v622 = vld [vmem:[%s1 + $0x54] sm:$0xf]
      %v623 = vld [vmem:[%s1 + $0x60] sm:$0xf]
      %v624 = vld [vmem:[%s1 + $0x6c] sm:$0xf]
      %v625 = vld [vmem:[%s1 + $0x78] sm:$0xf]
      %v626 = vld [vmem:[%s1 + $0x84] sm:$0xf]
      %v627 = vld [vmem:[%s1 + $0x90] sm:$0xf]
      %v628 = vld [vmem:[%s1 + $0x9c] sm:$0xf]
      %v629 = vld [vmem:[%s1 + $0xa8] sm:$0xf]
      %v630 = vld [vmem:[%s1 + $0xb4] sm:$0xf]
      %v647 = vunpack.c.l.b16 %v615
      %v648 = vunpack.c.l.b16 %v616
      %v649 = vunpack.c.l.b16 %v617
      %v650 = vunpack.c.l.b16 %v618
      %v651 = vunpack.c.l.b16 %v619
      %v652 = vunpack.c.l.b16 %v620
      %v653 = vunpack.c.l.b16 %v621
      %v654 = vunpack.c.l.b16 %v622
      %v655 = vunpack.c.l.b16 %v623
      %v656 = vunpack.c.l.b16 %v624
      %v657 = vunpack.c.l.b16 %v625
      %v658 = vunpack.c.l.b16 %v626
      %v659 = vunpack.c.l.b16 %v627
      %v660 = vunpack.c.l.b16 %v628
      %v661 = vunpack.c.l.b16 %v629
      %v662 = vunpack.c.l.b16 %v630
      %v663 = vpack.c.b16 %v648, %v647
      %v664 = vpack.c.b16 %v650, %v649
      %v665 = vpack.c.b16 %v652, %v651
      %v666 = vpack.c.b16 %v654, %v653
      %v667 = vpack.c.b16 %v656, %v655
      %v668 = vpack.c.b16 %v658, %v657
      %v669 = vpack.c.b16 %v660, %v659
      %v670 = vpack.c.b16 %v662, %v661
      %679 = vmatprep.subr.bf16.mxu0 0
      %680 = vmatpush1.bf16.msra.mxu0 %v663
      %681 = vmatprep.subr.bf16.mxu0 0
      %682 = vmatpush1.bf16.msra.mxu0 %v664
      %683 = vmatprep.subr.bf16.mxu0 0
      %684 = vmatpush1.bf16.msra.mxu0 %v665
      %685 = vmatprep.subr.bf16.mxu0 0
      %686 = vmatpush1.bf16.msra.mxu0 %v666
      %687 = vmatprep.subr.bf16.mxu0 0
      %688 = vmatpush1.bf16.msra.mxu0 %v667
      %689 = vmatprep.subr.bf16.mxu0 0
      %690 = vmatpush1.bf16.msra.mxu0 %v668
      %691 = vmatprep.subr.bf16.mxu0 0
      %692 = vmatpush1.bf16.msra.mxu0 %v669
      %693 = vmatprep.subr.bf16.mxu0 0
      %694 = vmatpush1.bf16.msra.mxu0 %v670
      %695 = vmatprep.subr.bf16.mxu0 0
      %696 = vmatpush1.bf16.msra.mxu0 0
      %697 = vmatprep.subr.bf16.mxu0 0
      %698 = vmatpush1.bf16.msra.mxu0 0
      %699 = vmatprep.subr.bf16.mxu0 0
      %700 = vmatpush1.bf16.msra.mxu0 0
      %701 = vmatprep.subr.bf16.mxu0 0
      %702 = vmatpush1.bf16.msra.mxu0 0
      %703 = vmatprep.subr.bf16.mxu0 0
      %704 = vmatpush1.bf16.msra.mxu0 0
      %705 = vmatprep.subr.bf16.mxu0 0
      %706 = vmatpush1.bf16.msra.mxu0 0
      %707 = vmatprep.subr.bf16.mxu0 0
      %708 = vmatpush1.bf16.msra.mxu0 0
      %709 = vmatprep.subr.bf16.mxu0 0
      %710 = vmatpush1.bf16.msra.mxu0 0
      %711 = vmatprep.mubr.bf16.mxu0 0
      %712 = vmatmul.mubr.bf16.gmra.mrb[0].mxu0 %v614
      %v713 = vpop.f32.mrb[0].mxu0
      %v714 = vadd.f32 0.0, %v713
      %v715 = vpop.f32.mrb[0].mxu0
      %v716 = vpop.f32.mrb[0].mxu0
      %v717 = vpop.f32.mrb[0].mxu0
      %718 = vdwg.mxu0
      %s719 = smul.u32 1, 3
      %s720 = smul.addr %s719, 8
      %s721 = scalar_lea.vmem %s250, %s720
      %v722 = vld [vmem:[%s721] sm:$0xff]
      %v723 = vadd.f32 %v722, %v714
      %v724 = vxor.u32 %v723, 2147483648
      %v725 = vmul.f32 %v724, 1.442695
      %v726 = vpow.pop %v725
      %v727 = vadd.f32 %v726, 1.0
      %v728 = vrcp.pop %v727
      %v729 = vmul.f32 1.0, %v728
      %v730 = vld [vmem:[%s1 + $0x4] sm:$0xf]
      %v731 = vld [vmem:[%s1 + $0x10] sm:$0xf]
      %v732 = vld [vmem:[%s1 + $0x1c] sm:$0xf]
      %v733 = vld [vmem:[%s1 + $0x28] sm:$0xf]
      %v734 = vld [vmem:[%s1 + $0x34] sm:$0xf]
      %v735 = vld [vmem:[%s1 + $0x40] sm:$0xf]
      %v736 = vld [vmem:[%s1 + $0x4c] sm:$0xf]
      %v737 = vld [vmem:[%s1 + $0x58] sm:$0xf]
      %v738 = vld [vmem:[%s1 + $0x64] sm:$0xf]
      %v739 = vld [vmem:[%s1 + $0x70] sm:$0xf]
      %v740 = vld [vmem:[%s1 + $0x7c] sm:$0xf]
      %v741 = vld [vmem:[%s1 + $0x88] sm:$0xf]
      %v742 = vld [vmem:[%s1 + $0x94] sm:$0xf]
      %v743 = vld [vmem:[%s1 + $0xa0] sm:$0xf]
      %v744 = vld [vmem:[%s1 + $0xac] sm:$0xf]
      %v745 = vld [vmem:[%s1 + $0xb8] sm:$0xf]
      %v762 = vunpack.c.l.b16 %v730
      %v763 = vunpack.c.l.b16 %v731
      %v764 = vunpack.c.l.b16 %v732
      %v765 = vunpack.c.l.b16 %v733
      %v766 = vunpack.c.l.b16 %v734
      %v767 = vunpack.c.l.b16 %v735
      %v768 = vunpack.c.l.b16 %v736
      %v769 = vunpack.c.l.b16 %v737
      %v770 = vunpack.c.l.b16 %v738
      %v771 = vunpack.c.l.b16 %v739
      %v772 = vunpack.c.l.b16 %v740
      %v773 = vunpack.c.l.b16 %v741
      %v774 = vunpack.c.l.b16 %v742
      %v775 = vunpack.c.l.b16 %v743
      %v776 = vunpack.c.l.b16 %v744
      %v777 = vunpack.c.l.b16 %v745
      %v778 = vpack.c.b16 %v763, %v762
      %v779 = vpack.c.b16 %v765, %v764
      %v780 = vpack.c.b16 %v767, %v766
      %v781 = vpack.c.b16 %v769, %v768
      %v782 = vpack.c.b16 %v771, %v770
      %v783 = vpack.c.b16 %v773, %v772
      %v784 = vpack.c.b16 %v775, %v774
      %v785 = vpack.c.b16 %v777, %v776
      %794 = vmatprep.subr.bf16.mxu0 0
      %795 = vmatpush1.bf16.msra.mxu0 %v778
      %796 = vmatprep.subr.bf16.mxu0 0
      %797 = vmatpush1.bf16.msra.mxu0 %v779
      %798 = vmatprep.subr.bf16.mxu0 0
      %799 = vmatpush1.bf16.msra.mxu0 %v780
      %800 = vmatprep.subr.bf16.mxu0 0
      %801 = vmatpush1.bf16.msra.mxu0 %v781
      %802 = vmatprep.subr.bf16.mxu0 0
      %803 = vmatpush1.bf16.msra.mxu0 %v782
      %804 = vmatprep.subr.bf16.mxu0 0
      %805 = vmatpush1.bf16.msra.mxu0 %v783
      %806 = vmatprep.subr.bf16.mxu0 0
      %807 = vmatpush1.bf16.msra.mxu0 %v784
      %808 = vmatprep.subr.bf16.mxu0 0
      %809 = vmatpush1.bf16.msra.mxu0 %v785
      %810 = vmatprep.subr.bf16.mxu0 0
      %811 = vmatpush1.bf16.msra.mxu0 0
      %812 = vmatprep.subr.bf16.mxu0 0
      %813 = vmatpush1.bf16.msra.mxu0 0
      %814 = vmatprep.subr.bf16.mxu0 0
      %815 = vmatpush1.bf16.msra.mxu0 0
      %816 = vmatprep.subr.bf16.mxu0 0
      %817 = vmatpush1.bf16.msra.mxu0 0
      %818 = vmatprep.subr.bf16.mxu0 0
      %819 = vmatpush1.bf16.msra.mxu0 0
      %820 = vmatprep.subr.bf16.mxu0 0
      %821 = vmatpush1.bf16.msra.mxu0 0
      %822 = vmatprep.subr.bf16.mxu0 0
      %823 = vmatpush1.bf16.msra.mxu0 0
      %824 = vmatprep.subr.bf16.mxu0 0
      %825 = vmatpush1.bf16.msra.mxu0 0
      %826 = vmatprep.mubr.bf16.mxu0 0
      %827 = vmatmul.mubr.bf16.gmra.mrb[0].mxu0 %v614
      %v828 = vpop.f32.mrb[0].mxu0
      %v829 = vadd.f32 0.0, %v828
      %v830 = vpop.f32.mrb[0].mxu0
      %v831 = vpop.f32.mrb[0].mxu0
      %v832 = vpop.f32.mrb[0].mxu0
      %833 = vdwg.mxu0
      %v834 = vld [vmem:[%s721 + $0x8] sm:$0xff]
      %v835 = vadd.f32 %v834, %v829
      %v836 = vxor.u32 %v835, 2147483648
      %v837 = vmul.f32 %v836, 1.442695
      %v838 = vpow.pop %v837
      %v839 = vadd.f32 %v838, 1.0
      %v840 = vrcp.pop %v839
      %v841 = vmul.f32 1.0, %v840
      %v842 = vld [vmem:[%s1 + $0x8] sm:$0xf]
      %v843 = vld [vmem:[%s1 + $0x14] sm:$0xf]
      %v844 = vld [vmem:[%s1 + $0x20] sm:$0xf]
      %v845 = vld [vmem:[%s1 + $0x2c] sm:$0xf]
      %v846 = vld [vmem:[%s1 + $0x38] sm:$0xf]
      %v847 = vld [vmem:[%s1 + $0x44] sm:$0xf]
      %v848 = vld [vmem:[%s1 + $0x50] sm:$0xf]
      %v849 = vld [vmem:[%s1 + $0x5c] sm:$0xf]
      %v850 = vld [vmem:[%s1 + $0x68] sm:$0xf]
      %v851 = vld [vmem:[%s1 + $0x74] sm:$0xf]
      %v852 = vld [vmem:[%s1 + $0x80] sm:$0xf]
      %v853 = vld [vmem:[%s1 + $0x8c] sm:$0xf]
      %v854 = vld [vmem:[%s1 + $0x98] sm:$0xf]
      %v855 = vld [vmem:[%s1 + $0xa4] sm:$0xf]
      %v856 = vld [vmem:[%s1 + $0xb0] sm:$0xf]
      %v857 = vld [vmem:[%s1 + $0xbc] sm:$0xf]
      %v858 = vld [vmem:[%s721 + $0x10] sm:$0xff]
      %v859 = vld [vmem:[%s2] sm:$0x1]
      %v861 = vlaneseq
      %v862 = vshrl.u32 %v861, 7
      %v863 = vsub.s32 0, %v862
      %v864 = vrot.slane %v859, %v863
      %v882 = vunpack.c.l.b16 %v842
      %v883 = vunpack.c.l.b16 %v843
      %v884 = vunpack.c.l.b16 %v844
      %v885 = vunpack.c.l.b16 %v845
      %v886 = vunpack.c.l.b16 %v846
      %v887 = vunpack.c.l.b16 %v847
      %v888 = vunpack.c.l.b16 %v848
      %v889 = vunpack.c.l.b16 %v849
      %v890 = vunpack.c.l.b16 %v850
      %v891 = vunpack.c.l.b16 %v851
      %v892 = vunpack.c.l.b16 %v852
      %v893 = vunpack.c.l.b16 %v853
      %v894 = vunpack.c.l.b16 %v854
      %v895 = vunpack.c.l.b16 %v855
      %v896 = vunpack.c.l.b16 %v856
      %v897 = vunpack.c.l.b16 %v857
      %v898 = vpack.c.b16 %v883, %v882
      %v899 = vpack.c.b16 %v885, %v884
      %v900 = vpack.c.b16 %v887, %v886
      %v901 = vpack.c.b16 %v889, %v888
      %v902 = vpack.c.b16 %v891, %v890
      %v903 = vpack.c.b16 %v893, %v892
      %v904 = vpack.c.b16 %v895, %v894
      %v905 = vpack.c.b16 %v897, %v896
      %914 = vmatprep.subr.bf16.mxu0 0
      %915 = vmatpush1.bf16.msra.mxu0 %v898
      %916 = vmatprep.subr.bf16.mxu0 0
      %917 = vmatpush1.bf16.msra.mxu0 %v899
      %918 = vmatprep.subr.bf16.mxu0 0
      %919 = vmatpush1.bf16.msra.mxu0 %v900
      %920 = vmatprep.subr.bf16.mxu0 0
      %921 = vmatpush1.bf16.msra.mxu0 %v901
      %922 = vmatprep.subr.bf16.mxu0 0
      %923 = vmatpush1.bf16.msra.mxu0 %v902
      %924 = vmatprep.subr.bf16.mxu0 0
      %925 = vmatpush1.bf16.msra.mxu0 %v903
      %926 = vmatprep.subr.bf16.mxu0 0
      %927 = vmatpush1.bf16.msra.mxu0 %v904
      %928 = vmatprep.subr.bf16.mxu0 0
      %929 = vmatpush1.bf16.msra.mxu0 %v905
      %930 = vmatprep.subr.bf16.mxu0 0
      %931 = vmatpush1.bf16.msra.mxu0 0
      %932 = vmatprep.subr.bf16.mxu0 0
      %933 = vmatpush1.bf16.msra.mxu0 0
      %934 = vmatprep.subr.bf16.mxu0 0
      %935 = vmatpush1.bf16.msra.mxu0 0
      %936 = vmatprep.subr.bf16.mxu0 0
      %937 = vmatpush1.bf16.msra.mxu0 0
      %938 = vmatprep.subr.bf16.mxu0 0
      %939 = vmatpush1.bf16.msra.mxu0 0
      %940 = vmatprep.subr.bf16.mxu0 0
      %941 = vmatpush1.bf16.msra.mxu0 0
      %942 = vmatprep.subr.bf16.mxu0 0
      %943 = vmatpush1.bf16.msra.mxu0 0
      %944 = vmatprep.subr.bf16.mxu0 0
      %945 = vmatpush1.bf16.msra.mxu0 0
      %946 = vmatprep.mubr.bf16.mxu0 0
      %947 = vmatmul.mubr.bf16.gmra.mrb[0].mxu0 %v614
      %v948 = vpop.f32.mrb[0].mxu0
      %v949 = vadd.f32 %v864, %v948
      %v950 = vpop.f32.mrb[0].mxu0
      %v951 = vpop.f32.mrb[0].mxu0
      %v952 = vpop.f32.mrb[0].mxu0
      %953 = vdwg.mxu0
      %v954 = vmul.f32 %v729, %v949
      %v955 = vadd.f32 %v858, %v954
      %v956 = vtanh.pop %v955
      %v957 = vsub.f32 1.0, %v841
      %v958 = vmul.f32 %v957, %v956
      %v959 = vmul.f32 %v841, %v612
      %v960 = vadd.f32 %v958, %v959
      %s961 = scalar_lea.vmem [#allocation3], 8
      %962 = vst [vmem:[%s961] sm:$0xff] %v960
      %v963 = vpack.c.bf16 %v960, %v960
      %v964 = vld [vmem:[%s1] sm:$0xf]
      %v965 = vld [vmem:[%s1 + $0xc] sm:$0xf]
      %v966 = vld [vmem:[%s1 + $0x18] sm:$0xf]
      %v967 = vld [vmem:[%s1 + $0x24] sm:$0xf]
      %v968 = vld [vmem:[%s1 + $0x30] sm:$0xf]
      %v969 = vld [vmem:[%s1 + $0x3c] sm:$0xf]
      %v970 = vld [vmem:[%s1 + $0x48] sm:$0xf]
      %v971 = vld [vmem:[%s1 + $0x54] sm:$0xf]
      %v972 = vld [vmem:[%s1 + $0x60] sm:$0xf]
      %v973 = vld [vmem:[%s1 + $0x6c] sm:$0xf]
      %v974 = vld [vmem:[%s1 + $0x78] sm:$0xf]
      %v975 = vld [vmem:[%s1 + $0x84] sm:$0xf]
      %v976 = vld [vmem:[%s1 + $0x90] sm:$0xf]
      %v977 = vld [vmem:[%s1 + $0x9c] sm:$0xf]
      %v978 = vld [vmem:[%s1 + $0xa8] sm:$0xf]
      %v979 = vld [vmem:[%s1 + $0xb4] sm:$0xf]
      %v996 = vunpack.c.l.b16 %v964
      %v997 = vunpack.c.l.b16 %v965
      %v998 = vunpack.c.l.b16 %v966
      %v999 = vunpack.c.l.b16 %v967
      %v1000 = vunpack.c.l.b16 %v968
      %v1001 = vunpack.c.l.b16 %v969
      %v1002 = vunpack.c.l.b16 %v970
      %v1003 = vunpack.c.l.b16 %v971
      %v1004 = vunpack.c.l.b16 %v972
      %v1005 = vunpack.c.l.b16 %v973
      %v1006 = vunpack.c.l.b16 %v974
      %v1007 = vunpack.c.l.b16 %v975
      %v1008 = vunpack.c.l.b16 %v976
      %v1009 = vunpack.c.l.b16 %v977
      %v1010 = vunpack.c.l.b16 %v978
      %v1011 = vunpack.c.l.b16 %v979
      %v1012 = vpack.c.b16 %v997, %v996
      %v1013 = vpack.c.b16 %v999, %v998
      %v1014 = vpack.c.b16 %v1001, %v1000
      %v1015 = vpack.c.b16 %v1003, %v1002
      %v1016 = vpack.c.b16 %v1005, %v1004
      %v1017 = vpack.c.b16 %v1007, %v1006
      %v1018 = vpack.c.b16 %v1009, %v1008
      %v1019 = vpack.c.b16 %v1011, %v1010
      %1028 = vmatprep.subr.bf16.mxu0 0
      %1029 = vmatpush1.bf16.msra.mxu0 %v1012
      %1030 = vmatprep.subr.bf16.mxu0 0
      %1031 = vmatpush1.bf16.msra.mxu0 %v1013
      %1032 = vmatprep.subr.bf16.mxu0 0
      %1033 = vmatpush1.bf16.msra.mxu0 %v1014
      %1034 = vmatprep.subr.bf16.mxu0 0
      %1035 = vmatpush1.bf16.msra.mxu0 %v1015
      %1036 = vmatprep.subr.bf16.mxu0 0
      %1037 = vmatpush1.bf16.msra.mxu0 %v1016
      %1038 = vmatprep.subr.bf16.mxu0 0
      %1039 = vmatpush1.bf16.msra.mxu0 %v1017
      %1040 = vmatprep.subr.bf16.mxu0 0
      %1041 = vmatpush1.bf16.msra.mxu0 %v1018
      %1042 = vmatprep.subr.bf16.mxu0 0
      %1043 = vmatpush1.bf16.msra.mxu0 %v1019
      %1044 = vmatprep.subr.bf16.mxu0 0
      %1045 = vmatpush1.bf16.msra.mxu0 0
      %1046 = vmatprep.subr.bf16.mxu0 0
      %1047 = vmatpush1.bf16.msra.mxu0 0
      %1048 = vmatprep.subr.bf16.mxu0 0
      %1049 = vmatpush1.bf16.msra.mxu0 0
      %1050 = vmatprep.subr.bf16.mxu0 0
      %1051 = vmatpush1.bf16.msra.mxu0 0
      %1052 = vmatprep.subr.bf16.mxu0 0
      %1053 = vmatpush1.bf16.msra.mxu0 0
      %1054 = vmatprep.subr.bf16.mxu0 0
      %1055 = vmatpush1.bf16.msra.mxu0 0
      %1056 = vmatprep.subr.bf16.mxu0 0
      %1057 = vmatpush1.bf16.msra.mxu0 0
      %1058 = vmatprep.subr.bf16.mxu0 0
      %1059 = vmatpush1.bf16.msra.mxu0 0
      %1060 = vmatprep.mubr.bf16.mxu0 0
      %1061 = vmatmul.mubr.bf16.gmra.mrb[0].mxu0 %v963
      %v1062 = vpop.f32.mrb[0].mxu0
      %v1063 = vadd.f32 0.0, %v1062
      %v1064 = vpop.f32.mrb[0].mxu0
      %v1065 = vpop.f32.mrb[0].mxu0
      %v1066 = vpop.f32.mrb[0].mxu0
      %1067 = vdwg.mxu0
      %s1068 = smul.u32 2, 3
      %s1069 = smul.addr %s1068, 8
      %s1070 = scalar_lea.vmem %s250, %s1069
      %v1071 = vld [vmem:[%s1070] sm:$0xff]
      %v1072 = vadd.f32 %v1071, %v1063
      %v1073 = vxor.u32 %v1072, 2147483648
      %v1074 = vmul.f32 %v1073, 1.442695
      %v1075 = vpow.pop %v1074
      %v1076 = vadd.f32 %v1075, 1.0
      %v1077 = vrcp.pop %v1076
      %v1078 = vmul.f32 1.0, %v1077
      %v1079 = vld [vmem:[%s1 + $0x4] sm:$0xf]
      %v1080 = vld [vmem:[%s1 + $0x10] sm:$0xf]
      %v1081 = vld [vmem:[%s1 + $0x1c] sm:$0xf]
      %v1082 = vld [vmem:[%s1 + $0x28] sm:$0xf]
      %v1083 = vld [vmem:[%s1 + $0x34] sm:$0xf]
      %v1084 = vld [vmem:[%s1 + $0x40] sm:$0xf]
      %v1085 = vld [vmem:[%s1 + $0x4c] sm:$0xf]
      %v1086 = vld [vmem:[%s1 + $0x58] sm:$0xf]
      %v1087 = vld [vmem:[%s1 + $0x64] sm:$0xf]
      %v1088 = vld [vmem:[%s1 + $0x70] sm:$0xf]
      %v1089 = vld [vmem:[%s1 + $0x7c] sm:$0xf]
      %v1090 = vld [vmem:[%s1 + $0x88] sm:$0xf]
      %v1091 = vld [vmem:[%s1 + $0x94] sm:$0xf]
      %v1092 = vld [vmem:[%s1 + $0xa0] sm:$0xf]
      %v1093 = vld [vmem:[%s1 + $0xac] sm:$0xf]
      %v1094 = vld [vmem:[%s1 + $0xb8] sm:$0xf]
      %v1111 = vunpack.c.l.b16 %v1079
      %v1112 = vunpack.c.l.b16 %v1080
      %v1113 = vunpack.c.l.b16 %v1081
      %v1114 = vunpack.c.l.b16 %v1082
      %v1115 = vunpack.c.l.b16 %v1083
      %v1116 = vunpack.c.l.b16 %v1084
      %v1117 = vunpack.c.l.b16 %v1085
      %v1118 = vunpack.c.l.b16 %v1086
      %v1119 = vunpack.c.l.b16 %v1087
      %v1120 = vunpack.c.l.b16 %v1088
      %v1121 = vunpack.c.l.b16 %v1089
      %v1122 = vunpack.c.l.b16 %v1090
      %v1123 = vunpack.c.l.b16 %v1091
      %v1124 = vunpack.c.l.b16 %v1092
      %v1125 = vunpack.c.l.b16 %v1093
      %v1126 = vunpack.c.l.b16 %v1094
      %v1127 = vpack.c.b16 %v1112, %v1111
      %v1128 = vpack.c.b16 %v1114, %v1113
      %v1129 = vpack.c.b16 %v1116, %v1115
      %v1130 = vpack.c.b16 %v1118, %v1117
      %v1131 = vpack.c.b16 %v1120, %v1119
      %v1132 = vpack.c.b16 %v1122, %v1121
      %v1133 = vpack.c.b16 %v1124, %v1123
      %v1134 = vpack.c.b16 %v1126, %v1125
      %1143 = vmatprep.subr.bf16.mxu0 0
      %1144 = vmatpush1.bf16.msra.mxu0 %v1127
      %1145 = vmatprep.subr.bf16.mxu0 0
      %1146 = vmatpush1.bf16.msra.mxu0 %v1128
      %1147 = vmatprep.subr.bf16.mxu0 0
      %1148 = vmatpush1.bf16.msra.mxu0 %v1129
      %1149 = vmatprep.subr.bf16.mxu0 0
      %1150 = vmatpush1.bf16.msra.mxu0 %v1130
      %1151 = vmatprep.subr.bf16.mxu0 0
      %1152 = vmatpush1.bf16.msra.mxu0 %v1131
      %1153 = vmatprep.subr.bf16.mxu0 0
      %1154 = vmatpush1.bf16.msra.mxu0 %v1132
      %1155 = vmatprep.subr.bf16.mxu0 0
      %1156 = vmatpush1.bf16.msra.mxu0 %v1133
      %1157 = vmatprep.subr.bf16.mxu0 0
      %1158 = vmatpush1.bf16.msra.mxu0 %v1134
      %1159 = vmatprep.subr.bf16.mxu0 0
      %1160 = vmatpush1.bf16.msra.mxu0 0
      %1161 = vmatprep.subr.bf16.mxu0 0
      %1162 = vmatpush1.bf16.msra.mxu0 0
      %1163 = vmatprep.subr.bf16.mxu0 0
      %1164 = vmatpush1.bf16.msra.mxu0 0
      %1165 = vmatprep.subr.bf16.mxu0 0
      %1166 = vmatpush1.bf16.msra.mxu0 0
      %1167 = vmatprep.subr.bf16.mxu0 0
      %1168 = vmatpush1.bf16.msra.mxu0 0
      %1169 = vmatprep.subr.bf16.mxu0 0
      %1170 = vmatpush1.bf16.msra.mxu0 0
      %1171 = vmatprep.subr.bf16.mxu0 0
      %1172 = vmatpush1.bf16.msra.mxu0 0
      %1173 = vmatprep.subr.bf16.mxu0 0
      %1174 = vmatpush1.bf16.msra.mxu0 0
      %1175 = vmatprep.mubr.bf16.mxu0 0
      %1176 = vmatmul.mubr.bf16.gmra.mrb[0].mxu0 %v963
      %v1177 = vpop.f32.mrb[0].mxu0
      %v1178 = vadd.f32 0.0, %v1177
      %v1179 = vpop.f32.mrb[0].mxu0
      %v1180 = vpop.f32.mrb[0].mxu0
      %v1181 = vpop.f32.mrb[0].mxu0
      %1182 = vdwg.mxu0
      %v1183 = vld [vmem:[%s1070 + $0x8] sm:$0xff]
      %v1184 = vadd.f32 %v1183, %v1178
      %v1185 = vxor.u32 %v1184, 2147483648
      %v1186 = vmul.f32 %v1185, 1.442695
      %v1187 = vpow.pop %v1186
      %v1188 = vadd.f32 %v1187, 1.0
      %v1189 = vrcp.pop %v1188
      %v1190 = vmul.f32 1.0, %v1189
      %v1191 = vld [vmem:[%s1 + $0x8] sm:$0xf]
      %v1192 = vld [vmem:[%s1 + $0x14] sm:$0xf]
      %v1193 = vld [vmem:[%s1 + $0x20] sm:$0xf]
      %v1194 = vld [vmem:[%s1 + $0x2c] sm:$0xf]
      %v1195 = vld [vmem:[%s1 + $0x38] sm:$0xf]
      %v1196 = vld [vmem:[%s1 + $0x44] sm:$0xf]
      %v1197 = vld [vmem:[%s1 + $0x50] sm:$0xf]
      %v1198 = vld [vmem:[%s1 + $0x5c] sm:$0xf]
      %v1199 = vld [vmem:[%s1 + $0x68] sm:$0xf]
      %v1200 = vld [vmem:[%s1 + $0x74] sm:$0xf]
      %v1201 = vld [vmem:[%s1 + $0x80] sm:$0xf]
      %v1202 = vld [vmem:[%s1 + $0x8c] sm:$0xf]
      %v1203 = vld [vmem:[%s1 + $0x98] sm:$0xf]
      %v1204 = vld [vmem:[%s1 + $0xa4] sm:$0xf]
      %v1205 = vld [vmem:[%s1 + $0xb0] sm:$0xf]
      %v1206 = vld [vmem:[%s1 + $0xbc] sm:$0xf]
      %v1207 = vld [vmem:[%s1070 + $0x10] sm:$0xff]
      %v1208 = vld [vmem:[%s2] sm:$0x1]
      %v1210 = vlaneseq
      %v1211 = vshrl.u32 %v1210, 7
      %v1212 = vsub.s32 0, %v1211
      %v1213 = vrot.slane %v1208, %v1212
      %v1231 = vunpack.c.l.b16 %v1191
      %v1232 = vunpack.c.l.b16 %v1192
      %v1233 = vunpack.c.l.b16 %v1193
      %v1234 = vunpack.c.l.b16 %v1194
      %v1235 = vunpack.c.l.b16 %v1195
      %v1236 = vunpack.c.l.b16 %v1196
      %v1237 = vunpack.c.l.b16 %v1197
      %v1238 = vunpack.c.l.b16 %v1198
      %v1239 = vunpack.c.l.b16 %v1199
      %v1240 = vunpack.c.l.b16 %v1200
      %v1241 = vunpack.c.l.b16 %v1201
      %v1242 = vunpack.c.l.b16 %v1202
      %v1243 = vunpack.c.l.b16 %v1203
      %v1244 = vunpack.c.l.b16 %v1204
      %v1245 = vunpack.c.l.b16 %v1205
      %v1246 = vunpack.c.l.b16 %v1206
      %v1247 = vpack.c.b16 %v1232, %v1231
      %v1248 = vpack.c.b16 %v1234, %v1233
      %v1249 = vpack.c.b16 %v1236, %v1235
      %v1250 = vpack.c.b16 %v1238, %v1237
      %v1251 = vpack.c.b16 %v1240, %v1239
      %v1252 = vpack.c.b16 %v1242, %v1241
      %v1253 = vpack.c.b16 %v1244, %v1243
      %v1254 = vpack.c.b16 %v1246, %v1245
      %1263 = vmatprep.subr.bf16.mxu0 0
      %1264 = vmatpush1.bf16.msra.mxu0 %v1247
      %1265 = vmatprep.subr.bf16.mxu0 0
      %1266 = vmatpush1.bf16.msra.mxu0 %v1248
      %1267 = vmatprep.subr.bf16.mxu0 0
      %1268 = vmatpush1.bf16.msra.mxu0 %v1249
      %1269 = vmatprep.subr.bf16.mxu0 0
      %1270 = vmatpush1.bf16.msra.mxu0 %v1250
      %1271 = vmatprep.subr.bf16.mxu0 0
      %1272 = vmatpush1.bf16.msra.mxu0 %v1251
      %1273 = vmatprep.subr.bf16.mxu0 0
      %1274 = vmatpush1.bf16.msra.mxu0 %v1252
      %1275 = vmatprep.subr.bf16.mxu0 0
      %1276 = vmatpush1.bf16.msra.mxu0 %v1253
      %1277 = vmatprep.subr.bf16.mxu0 0
      %1278 = vmatpush1.bf16.msra.mxu0 %v1254
      %1279 = vmatprep.subr.bf16.mxu0 0
      %1280 = vmatpush1.bf16.msra.mxu0 0
      %1281 = vmatprep.subr.bf16.mxu0 0
      %1282 = vmatpush1.bf16.msra.mxu0 0
      %1283 = vmatprep.subr.bf16.mxu0 0
      %1284 = vmatpush1.bf16.msra.mxu0 0
      %1285 = vmatprep.subr.bf16.mxu0 0
      %1286 = vmatpush1.bf16.msra.mxu0 0
      %1287 = vmatprep.subr.bf16.mxu0 0
      %1288 = vmatpush1.bf16.msra.mxu0 0
      %1289 = vmatprep.subr.bf16.mxu0 0
      %1290 = vmatpush1.bf16.msra.mxu0 0
      %1291 = vmatprep.subr.bf16.mxu0 0
      %1292 = vmatpush1.bf16.msra.mxu0 0
      %1293 = vmatprep.subr.bf16.mxu0 0
      %1294 = vmatpush1.bf16.msra.mxu0 0
      %1295 = vmatprep.mubr.bf16.mxu0 0
      %1296 = vmatmul.mubr.bf16.gmra.mrb[0].mxu0 %v963
      %v1297 = vpop.f32.mrb[0].mxu0
      %v1298 = vadd.f32 %v1213, %v1297
      %v1299 = vpop.f32.mrb[0].mxu0
      %v1300 = vpop.f32.mrb[0].mxu0
      %v1301 = vpop.f32.mrb[0].mxu0
      %1302 = vdwg.mxu0
      %v1303 = vmul.f32 %v1078, %v1298
      %v1304 = vadd.f32 %v1207, %v1303
      %v1305 = vtanh.pop %v1304
      %v1306 = vsub.f32 1.0, %v1190
      %v1307 = vmul.f32 %v1306, %v1305
      %v1308 = vmul.f32 %v1190, %v960
      %v1309 = vadd.f32 %v1307, %v1308
      %s1310 = scalar_lea.vmem [#allocation3], 16
      %1311 = vst [vmem:[%s1310] sm:$0xff] %v1309
      %v1312 = vpack.c.bf16 %v1309, %v1309
      %v1313 = vld [vmem:[%s1] sm:$0xf]
      %v1314 = vld [vmem:[%s1 + $0xc] sm:$0xf]
      %v1315 = vld [vmem:[%s1 + $0x18] sm:$0xf]
      %v1316 = vld [vmem:[%s1 + $0x24] sm:$0xf]
      %v1317 = vld [vmem:[%s1 + $0x30] sm:$0xf]
      %v1318 = vld [vmem:[%s1 + $0x3c] sm:$0xf]
      %v1319 = vld [vmem:[%s1 + $0x48] sm:$0xf]
      %v1320 = vld [vmem:[%s1 + $0x54] sm:$0xf]
      %v1321 = vld [vmem:[%s1 + $0x60] sm:$0xf]
      %v1322 = vld [vmem:[%s1 + $0x6c] sm:$0xf]
      %v1323 = vld [vmem:[%s1 + $0x78] sm:$0xf]
      %v1324 = vld [vmem:[%s1 + $0x84] sm:$0xf]
      %v1325 = vld [vmem:[%s1 + $0x90] sm:$0xf]
      %v1326 = vld [vmem:[%s1 + $0x9c] sm:$0xf]
      %v1327 = vld [vmem:[%s1 + $0xa8] sm:$0xf]
      %v1328 = vld [vmem:[%s1 + $0xb4] sm:$0xf]
      %v1345 = vunpack.c.l.b16 %v1313
      %v1346 = vunpack.c.l.b16 %v1314
      %v1347 = vunpack.c.l.b16 %v1315
      %v1348 = vunpack.c.l.b16 %v1316
      %v1349 = vunpack.c.l.b16 %v1317
      %v1350 = vunpack.c.l.b16 %v1318
      %v1351 = vunpack.c.l.b16 %v1319
      %v1352 = vunpack.c.l.b16 %v1320
      %v1353 = vunpack.c.l.b16 %v1321
      %v1354 = vunpack.c.l.b16 %v1322
      %v1355 = vunpack.c.l.b16 %v1323
      %v1356 = vunpack.c.l.b16 %v1324
      %v1357 = vunpack.c.l.b16 %v1325
      %v1358 = vunpack.c.l.b16 %v1326
      %v1359 = vunpack.c.l.b16 %v1327
      %v1360 = vunpack.c.l.b16 %v1328
      %v1361 = vpack.c.b16 %v1346, %v1345
      %v1362 = vpack.c.b16 %v1348, %v1347
      %v1363 = vpack.c.b16 %v1350, %v1349
      %v1364 = vpack.c.b16 %v1352, %v1351
      %v1365 = vpack.c.b16 %v1354, %v1353
      %v1366 = vpack.c.b16 %v1356, %v1355
      %v1367 = vpack.c.b16 %v1358, %v1357
      %v1368 = vpack.c.b16 %v1360, %v1359
      %1377 = vmatprep.subr.bf16.mxu0 0
      %1378 = vmatpush1.bf16.msra.mxu0 %v1361
      %1379 = vmatprep.subr.bf16.mxu0 0
      %1380 = vmatpush1.bf16.msra.mxu0 %v1362
      %1381 = vmatprep.subr.bf16.mxu0 0
      %1382 = vmatpush1.bf16.msra.mxu0 %v1363
      %1383 = vmatprep.subr.bf16.mxu0 0
      %1384 = vmatpush1.bf16.msra.mxu0 %v1364
      %1385 = vmatprep.subr.bf16.mxu0 0
      %1386 = vmatpush1.bf16.msra.mxu0 %v1365
      %1387 = vmatprep.subr.bf16.mxu0 0
      %1388 = vmatpush1.bf16.msra.mxu0 %v1366
      %1389 = vmatprep.subr.bf16.mxu0 0
      %1390 = vmatpush1.bf16.msra.mxu0 %v1367
      %1391 = vmatprep.subr.bf16.mxu0 0
      %1392 = vmatpush1.bf16.msra.mxu0 %v1368
      %1393 = vmatprep.subr.bf16.mxu0 0
      %1394 = vmatpush1.bf16.msra.mxu0 0
      %1395 = vmatprep.subr.bf16.mxu0 0
      %1396 = vmatpush1.bf16.msra.mxu0 0
      %1397 = vmatprep.subr.bf16.mxu0 0
      %1398 = vmatpush1.bf16.msra.mxu0 0
      %1399 = vmatprep.subr.bf16.mxu0 0
      %1400 = vmatpush1.bf16.msra.mxu0 0
      %1401 = vmatprep.subr.bf16.mxu0 0
      %1402 = vmatpush1.bf16.msra.mxu0 0
      %1403 = vmatprep.subr.bf16.mxu0 0
      %1404 = vmatpush1.bf16.msra.mxu0 0
      %1405 = vmatprep.subr.bf16.mxu0 0
      %1406 = vmatpush1.bf16.msra.mxu0 0
      %1407 = vmatprep.subr.bf16.mxu0 0
      %1408 = vmatpush1.bf16.msra.mxu0 0
      %1409 = vmatprep.mubr.bf16.mxu0 0
      %1410 = vmatmul.mubr.bf16.gmra.mrb[0].mxu0 %v1312
      %v1411 = vpop.f32.mrb[0].mxu0
      %v1412 = vadd.f32 0.0, %v1411
      %v1413 = vpop.f32.mrb[0].mxu0
      %v1414 = vpop.f32.mrb[0].mxu0
      %v1415 = vpop.f32.mrb[0].mxu0
      %1416 = vdwg.mxu0
      %s1417 = smul.u32 3, 3
      %s1418 = smul.addr %s1417, 8
      %s1419 = scalar_lea.vmem %s250, %s1418
      %v1420 = vld [vmem:[%s1419] sm:$0xff]
      %v1421 = vadd.f32 %v1420, %v1412
      %v1422 = vxor.u32 %v1421, 2147483648
      %v1423 = vmul.f32 %v1422, 1.442695
      %v1424 = vpow.pop %v1423
      %v1425 = vadd.f32 %v1424, 1.0
      %v1426 = vrcp.pop %v1425
      %v1427 = vmul.f32 1.0, %v1426
      %v1428 = vld [vmem:[%s1 + $0x4] sm:$0xf]
      %v1429 = vld [vmem:[%s1 + $0x10] sm:$0xf]
      %v1430 = vld [vmem:[%s1 + $0x1c] sm:$0xf]
      %v1431 = vld [vmem:[%s1 + $0x28] sm:$0xf]
      %v1432 = vld [vmem:[%s1 + $0x34] sm:$0xf]
      %v1433 = vld [vmem:[%s1 + $0x40] sm:$0xf]
      %v1434 = vld [vmem:[%s1 + $0x4c] sm:$0xf]
      %v1435 = vld [vmem:[%s1 + $0x58] sm:$0xf]
      %v1436 = vld [vmem:[%s1 + $0x64] sm:$0xf]
      %v1437 = vld [vmem:[%s1 + $0x70] sm:$0xf]
      %v1438 = vld [vmem:[%s1 + $0x7c] sm:$0xf]
      %v1439 = vld [vmem:[%s1 + $0x88] sm:$0xf]
      %v1440 = vld [vmem:[%s1 + $0x94] sm:$0xf]
      %v1441 = vld [vmem:[%s1 + $0xa0] sm:$0xf]
      %v1442 = vld [vmem:[%s1 + $0xac] sm:$0xf]
      %v1443 = vld [vmem:[%s1 + $0xb8] sm:$0xf]
      %v1460 = vunpack.c.l.b16 %v1428
      %v1461 = vunpack.c.l.b16 %v1429
      %v1462 = vunpack.c.l.b16 %v1430
      %v1463 = vunpack.c.l.b16 %v1431
      %v1464 = vunpack.c.l.b16 %v1432
      %v1465 = vunpack.c.l.b16 %v1433
      %v1466 = vunpack.c.l.b16 %v1434
      %v1467 = vunpack.c.l.b16 %v1435
      %v1468 = vunpack.c.l.b16 %v1436
      %v1469 = vunpack.c.l.b16 %v1437
      %v1470 = vunpack.c.l.b16 %v1438
      %v1471 = vunpack.c.l.b16 %v1439
      %v1472 = vunpack.c.l.b16 %v1440
      %v1473 = vunpack.c.l.b16 %v1441
      %v1474 = vunpack.c.l.b16 %v1442
      %v1475 = vunpack.c.l.b16 %v1443
      %v1476 = vpack.c.b16 %v1461, %v1460
      %v1477 = vpack.c.b16 %v1463, %v1462
      %v1478 = vpack.c.b16 %v1465, %v1464
      %v1479 = vpack.c.b16 %v1467, %v1466
      %v1480 = vpack.c.b16 %v1469, %v1468
      %v1481 = vpack.c.b16 %v1471, %v1470
      %v1482 = vpack.c.b16 %v1473, %v1472
      %v1483 = vpack.c.b16 %v1475, %v1474
      %1492 = vmatprep.subr.bf16.mxu0 0
      %1493 = vmatpush1.bf16.msra.mxu0 %v1476
      %1494 = vmatprep.subr.bf16.mxu0 0
      %1495 = vmatpush1.bf16.msra.mxu0 %v1477
      %1496 = vmatprep.subr.bf16.mxu0 0
      %1497 = vmatpush1.bf16.msra.mxu0 %v1478
      %1498 = vmatprep.subr.bf16.mxu0 0
      %1499 = vmatpush1.bf16.msra.mxu0 %v1479
      %1500 = vmatprep.subr.bf16.mxu0 0
      %1501 = vmatpush1.bf16.msra.mxu0 %v1480
      %1502 = vmatprep.subr.bf16.mxu0 0
      %1503 = vmatpush1.bf16.msra.mxu0 %v1481
      %1504 = vmatprep.subr.bf16.mxu0 0
      %1505 = vmatpush1.bf16.msra.mxu0 %v1482
      %1506 = vmatprep.subr.bf16.mxu0 0
      %1507 = vmatpush1.bf16.msra.mxu0 %v1483
      %1508 = vmatprep.subr.bf16.mxu0 0
      %1509 = vmatpush1.bf16.msra.mxu0 0
      %1510 = vmatprep.subr.bf16.mxu0 0
      %1511 = vmatpush1.bf16.msra.mxu0 0
      %1512 = vmatprep.subr.bf16.mxu0 0
      %1513 = vmatpush1.bf16.msra.mxu0 0
      %1514 = vmatprep.subr.bf16.mxu0 0
      %1515 = vmatpush1.bf16.msra.mxu0 0
      %1516 = vmatprep.subr.bf16.mxu0 0
      %1517 = vmatpush1.bf16.msra.mxu0 0
      %1518 = vmatprep.subr.bf16.mxu0 0
      %1519 = vmatpush1.bf16.msra.mxu0 0
      %1520 = vmatprep.subr.bf16.mxu0 0
      %1521 = vmatpush1.bf16.msra.mxu0 0
      %1522 = vmatprep.subr.bf16.mxu0 0
      %1523 = vmatpush1.bf16.msra.mxu0 0
      %1524 = vmatprep.mubr.bf16.mxu0 0
      %1525 = vmatmul.mubr.bf16.gmra.mrb[0].mxu0 %v1312
      %v1526 = vpop.f32.mrb[0].mxu0
      %v1527 = vadd.f32 0.0, %v1526
      %v1528 = vpop.f32.mrb[0].mxu0
      %v1529 = vpop.f32.mrb[0].mxu0
      %v1530 = vpop.f32.mrb[0].mxu0
      %1531 = vdwg.mxu0
      %v1532 = vld [vmem:[%s1419 + $0x8] sm:$0xff]
      %v1533 = vadd.f32 %v1532, %v1527
      %v1534 = vxor.u32 %v1533, 2147483648
      %v1535 = vmul.f32 %v1534, 1.442695
      %v1536 = vpow.pop %v1535
      %v1537 = vadd.f32 %v1536, 1.0
      %v1538 = vrcp.pop %v1537
      %v1539 = vmul.f32 1.0, %v1538
      %v1540 = vld [vmem:[%s1 + $0x8] sm:$0xf]
      %v1541 = vld [vmem:[%s1 + $0x14] sm:$0xf]
      %v1542 = vld [vmem:[%s1 + $0x20] sm:$0xf]
      %v1543 = vld [vmem:[%s1 + $0x2c] sm:$0xf]
      %v1544 = vld [vmem:[%s1 + $0x38] sm:$0xf]
      %v1545 = vld [vmem:[%s1 + $0x44] sm:$0xf]
      %v1546 = vld [vmem:[%s1 + $0x50] sm:$0xf]
      %v1547 = vld [vmem:[%s1 + $0x5c] sm:$0xf]
      %v1548 = vld [vmem:[%s1 + $0x68] sm:$0xf]
      %v1549 = vld [vmem:[%s1 + $0x74] sm:$0xf]
      %v1550 = vld [vmem:[%s1 + $0x80] sm:$0xf]
      %v1551 = vld [vmem:[%s1 + $0x8c] sm:$0xf]
      %v1552 = vld [vmem:[%s1 + $0x98] sm:$0xf]
      %v1553 = vld [vmem:[%s1 + $0xa4] sm:$0xf]
      %v1554 = vld [vmem:[%s1 + $0xb0] sm:$0xf]
      %v1555 = vld [vmem:[%s1 + $0xbc] sm:$0xf]
      %v1556 = vld [vmem:[%s1419 + $0x10] sm:$0xff]
      %v1557 = vld [vmem:[%s2] sm:$0x1]
      %v1559 = vlaneseq
      %v1560 = vshrl.u32 %v1559, 7
      %v1561 = vsub.s32 0, %v1560
      %v1562 = vrot.slane %v1557, %v1561
      %v1580 = vunpack.c.l.b16 %v1540
      %v1581 = vunpack.c.l.b16 %v1541
      %v1582 = vunpack.c.l.b16 %v1542
      %v1583 = vunpack.c.l.b16 %v1543
      %v1584 = vunpack.c.l.b16 %v1544
      %v1585 = vunpack.c.l.b16 %v1545
      %v1586 = vunpack.c.l.b16 %v1546
      %v1587 = vunpack.c.l.b16 %v1547
      %v1588 = vunpack.c.l.b16 %v1548
      %v1589 = vunpack.c.l.b16 %v1549
      %v1590 = vunpack.c.l.b16 %v1550
      %v1591 = vunpack.c.l.b16 %v1551
      %v1592 = vunpack.c.l.b16 %v1552
      %v1593 = vunpack.c.l.b16 %v1553
      %v1594 = vunpack.c.l.b16 %v1554
      %v1595 = vunpack.c.l.b16 %v1555
      %v1596 = vpack.c.b16 %v1581, %v1580
      %v1597 = vpack.c.b16 %v1583, %v1582
      %v1598 = vpack.c.b16 %v1585, %v1584
      %v1599 = vpack.c.b16 %v1587, %v1586
      %v1600 = vpack.c.b16 %v1589, %v1588
      %v1601 = vpack.c.b16 %v1591, %v1590
      %v1602 = vpack.c.b16 %v1593, %v1592
      %v1603 = vpack.c.b16 %v1595, %v1594
      %1612 = vmatprep.subr.bf16.mxu0 0
      %1613 = vmatpush1.bf16.msra.mxu0 %v1596
      %1614 = vmatprep.subr.bf16.mxu0 0
      %1615 = vmatpush1.bf16.msra.mxu0 %v1597
      %1616 = vmatprep.subr.bf16.mxu0 0
      %1617 = vmatpush1.bf16.msra.mxu0 %v1598
      %1618 = vmatprep.subr.bf16.mxu0 0
      %1619 = vmatpush1.bf16.msra.mxu0 %v1599
      %1620 = vmatprep.subr.bf16.mxu0 0
      %1621 = vmatpush1.bf16.msra.mxu0 %v1600
      %1622 = vmatprep.subr.bf16.mxu0 0
      %1623 = vmatpush1.bf16.msra.mxu0 %v1601
      %1624 = vmatprep.subr.bf16.mxu0 0
      %1625 = vmatpush1.bf16.msra.mxu0 %v1602
      %1626 = vmatprep.subr.bf16.mxu0 0
      %1627 = vmatpush1.bf16.msra.mxu0 %v1603
      %1628 = vmatprep.subr.bf16.mxu0 0
      %1629 = vmatpush1.bf16.msra.mxu0 0
      %1630 = vmatprep.subr.bf16.mxu0 0
      %1631 = vmatpush1.bf16.msra.mxu0 0
      %1632 = vmatprep.subr.bf16.mxu0 0
      %1633 = vmatpush1.bf16.msra.mxu0 0
      %1634 = vmatprep.subr.bf16.mxu0 0
      %1635 = vmatpush1.bf16.msra.mxu0 0
      %1636 = vmatprep.subr.bf16.mxu0 0
      %1637 = vmatpush1.bf16.msra.mxu0 0
      %1638 = vmatprep.subr.bf16.mxu0 0
      %1639 = vmatpush1.bf16.msra.mxu0 0
      %1640 = vmatprep.subr.bf16.mxu0 0
      %1641 = vmatpush1.bf16.msra.mxu0 0
      %1642 = vmatprep.subr.bf16.mxu0 0
      %1643 = vmatpush1.bf16.msra.mxu0 0
      %1644 = vmatprep.mubr.bf16.mxu0 0
      %1645 = vmatmul.mubr.bf16.gmra.mrb[0].mxu0 %v1312
      %v1646 = vpop.f32.mrb[0].mxu0
      %v1647 = vadd.f32 %v1562, %v1646
      %v1648 = vpop.f32.mrb[0].mxu0
      %v1649 = vpop.f32.mrb[0].mxu0
      %v1650 = vpop.f32.mrb[0].mxu0
      %1651 = vdwg.mxu0
      %v1652 = vmul.f32 %v1427, %v1647
      %v1653 = vadd.f32 %v1556, %v1652
      %v1654 = vtanh.pop %v1653
      %v1655 = vsub.f32 1.0, %v1539
      %v1656 = vmul.f32 %v1655, %v1654
      %v1657 = vmul.f32 %v1539, %v1309
      %v1658 = vadd.f32 %v1656, %v1657
      %s1659 = scalar_lea.vmem [#allocation3], 24
      %1660 = vst [vmem:[%s1659] sm:$0xff] %v1658
      %v1661 = vpack.c.bf16 %v1658, %v1658
      %v1662 = vld [vmem:[%s1] sm:$0xf]
      %v1663 = vld [vmem:[%s1 + $0xc] sm:$0xf]
      %v1664 = vld [vmem:[%s1 + $0x18] sm:$0xf]
      %v1665 = vld [vmem:[%s1 + $0x24] sm:$0xf]
      %v1666 = vld [vmem:[%s1 + $0x30] sm:$0xf]
      %v1667 = vld [vmem:[%s1 + $0x3c] sm:$0xf]
      %v1668 = vld [vmem:[%s1 + $0x48] sm:$0xf]
      %v1669 = vld [vmem:[%s1 + $0x54] sm:$0xf]
      %v1670 = vld [vmem:[%s1 + $0x60] sm:$0xf]
      %v1671 = vld [vmem:[%s1 + $0x6c] sm:$0xf]
      %v1672 = vld [vmem:[%s1 + $0x78] sm:$0xf]
      %v1673 = vld [vmem:[%s1 + $0x84] sm:$0xf]
      %v1674 = vld [vmem:[%s1 + $0x90] sm:$0xf]
      %v1675 = vld [vmem:[%s1 + $0x9c] sm:$0xf]
      %v1676 = vld [vmem:[%s1 + $0xa8] sm:$0xf]
      %v1677 = vld [vmem:[%s1 + $0xb4] sm:$0xf]
      %v1694 = vunpack.c.l.b16 %v1662
      %v1695 = vunpack.c.l.b16 %v1663
      %v1696 = vunpack.c.l.b16 %v1664
      %v1697 = vunpack.c.l.b16 %v1665
      %v1698 = vunpack.c.l.b16 %v1666
      %v1699 = vunpack.c.l.b16 %v1667
      %v1700 = vunpack.c.l.b16 %v1668
      %v1701 = vunpack.c.l.b16 %v1669
      %v1702 = vunpack.c.l.b16 %v1670
      %v1703 = vunpack.c.l.b16 %v1671
      %v1704 = vunpack.c.l.b16 %v1672
      %v1705 = vunpack.c.l.b16 %v1673
      %v1706 = vunpack.c.l.b16 %v1674
      %v1707 = vunpack.c.l.b16 %v1675
      %v1708 = vunpack.c.l.b16 %v1676
      %v1709 = vunpack.c.l.b16 %v1677
      %v1710 = vpack.c.b16 %v1695, %v1694
      %v1711 = vpack.c.b16 %v1697, %v1696
      %v1712 = vpack.c.b16 %v1699, %v1698
      %v1713 = vpack.c.b16 %v1701, %v1700
      %v1714 = vpack.c.b16 %v1703, %v1702
      %v1715 = vpack.c.b16 %v1705, %v1704
      %v1716 = vpack.c.b16 %v1707, %v1706
      %v1717 = vpack.c.b16 %v1709, %v1708
      %1726 = vmatprep.subr.bf16.mxu0 0
      %1727 = vmatpush1.bf16.msra.mxu0 %v1710
      %1728 = vmatprep.subr.bf16.mxu0 0
      %1729 = vmatpush1.bf16.msra.mxu0 %v1711
      %1730 = vmatprep.subr.bf16.mxu0 0
      %1731 = vmatpush1.bf16.msra.mxu0 %v1712
      %1732 = vmatprep.subr.bf16.mxu0 0
      %1733 = vmatpush1.bf16.msra.mxu0 %v1713
      %1734 = vmatprep.subr.bf16.mxu0 0
      %1735 = vmatpush1.bf16.msra.mxu0 %v1714
      %1736 = vmatprep.subr.bf16.mxu0 0
      %1737 = vmatpush1.bf16.msra.mxu0 %v1715
      %1738 = vmatprep.subr.bf16.mxu0 0
      %1739 = vmatpush1.bf16.msra.mxu0 %v1716
      %1740 = vmatprep.subr.bf16.mxu0 0
      %1741 = vmatpush1.bf16.msra.mxu0 %v1717
      %1742 = vmatprep.subr.bf16.mxu0 0
      %1743 = vmatpush1.bf16.msra.mxu0 0
      %1744 = vmatprep.subr.bf16.mxu0 0
      %1745 = vmatpush1.bf16.msra.mxu0 0
      %1746 = vmatprep.subr.bf16.mxu0 0
      %1747 = vmatpush1.bf16.msra.mxu0 0
      %1748 = vmatprep.subr.bf16.mxu0 0
      %1749 = vmatpush1.bf16.msra.mxu0 0
      %1750 = vmatprep.subr.bf16.mxu0 0
      %1751 = vmatpush1.bf16.msra.mxu0 0
      %1752 = vmatprep.subr.bf16.mxu0 0
      %1753 = vmatpush1.bf16.msra.mxu0 0
      %1754 = vmatprep.subr.bf16.mxu0 0
      %1755 = vmatpush1.bf16.msra.mxu0 0
      %1756 = vmatprep.subr.bf16.mxu0 0
      %1757 = vmatpush1.bf16.msra.mxu0 0
      %1758 = vmatprep.mubr.bf16.mxu0 0
      %1759 = vmatmul.mubr.bf16.gmra.mrb[0].mxu0 %v1661
      %v1760 = vpop.f32.mrb[0].mxu0
      %v1761 = vadd.f32 0.0, %v1760
      %v1762 = vpop.f32.mrb[0].mxu0
      %v1763 = vpop.f32.mrb[0].mxu0
      %v1764 = vpop.f32.mrb[0].mxu0
      %1765 = vdwg.mxu0
      %s1766 = smul.u32 4, 3
      %s1767 = smul.addr %s1766, 8
      %s1768 = scalar_lea.vmem %s250, %s1767
      %v1769 = vld [vmem:[%s1768] sm:$0xff]
      %v1770 = vadd.f32 %v1769, %v1761
      %v1771 = vxor.u32 %v1770, 2147483648
      %v1772 = vmul.f32 %v1771, 1.442695
      %v1773 = vpow.pop %v1772
      %v1774 = vadd.f32 %v1773, 1.0
      %v1775 = vrcp.pop %v1774
      %v1776 = vmul.f32 1.0, %v1775
      %v1777 = vld [vmem:[%s1 + $0x4] sm:$0xf]
      %v1778 = vld [vmem:[%s1 + $0x10] sm:$0xf]
      %v1779 = vld [vmem:[%s1 + $0x1c] sm:$0xf]
      %v1780 = vld [vmem:[%s1 + $0x28] sm:$0xf]
      %v1781 = vld [vmem:[%s1 + $0x34] sm:$0xf]
      %v1782 = vld [vmem:[%s1 + $0x40] sm:$0xf]
      %v1783 = vld [vmem:[%s1 + $0x4c] sm:$0xf]
      %v1784 = vld [vmem:[%s1 + $0x58] sm:$0xf]
      %v1785 = vld [vmem:[%s1 + $0x64] sm:$0xf]
      %v1786 = vld [vmem:[%s1 + $0x70] sm:$0xf]
      %v1787 = vld [vmem:[%s1 + $0x7c] sm:$0xf]
      %v1788 = vld [vmem:[%s1 + $0x88] sm:$0xf]
      %v1789 = vld [vmem:[%s1 + $0x94] sm:$0xf]
      %v1790 = vld [vmem:[%s1 + $0xa0] sm:$0xf]
      %v1791 = vld [vmem:[%s1 + $0xac] sm:$0xf]
      %v1792 = vld [vmem:[%s1 + $0xb8] sm:$0xf]
      %v1809 = vunpack.c.l.b16 %v1777
      %v1810 = vunpack.c.l.b16 %v1778
      %v1811 = vunpack.c.l.b16 %v1779
      %v1812 = vunpack.c.l.b16 %v1780
      %v1813 = vunpack.c.l.b16 %v1781
      %v1814 = vunpack.c.l.b16 %v1782
      %v1815 = vunpack.c.l.b16 %v1783
      %v1816 = vunpack.c.l.b16 %v1784
      %v1817 = vunpack.c.l.b16 %v1785
      %v1818 = vunpack.c.l.b16 %v1786
      %v1819 = vunpack.c.l.b16 %v1787
      %v1820 = vunpack.c.l.b16 %v1788
      %v1821 = vunpack.c.l.b16 %v1789
      %v1822 = vunpack.c.l.b16 %v1790
      %v1823 = vunpack.c.l.b16 %v1791
      %v1824 = vunpack.c.l.b16 %v1792
      %v1825 = vpack.c.b16 %v1810, %v1809
      %v1826 = vpack.c.b16 %v1812, %v1811
      %v1827 = vpack.c.b16 %v1814, %v1813
      %v1828 = vpack.c.b16 %v1816, %v1815
      %v1829 = vpack.c.b16 %v1818, %v1817
      %v1830 = vpack.c.b16 %v1820, %v1819
      %v1831 = vpack.c.b16 %v1822, %v1821
      %v1832 = vpack.c.b16 %v1824, %v1823
      %1841 = vmatprep.subr.bf16.mxu0 0
      %1842 = vmatpush1.bf16.msra.mxu0 %v1825
      %1843 = vmatprep.subr.bf16.mxu0 0
      %1844 = vmatpush1.bf16.msra.mxu0 %v1826
      %1845 = vmatprep.subr.bf16.mxu0 0
      %1846 = vmatpush1.bf16.msra.mxu0 %v1827
      %1847 = vmatprep.subr.bf16.mxu0 0
      %1848 = vmatpush1.bf16.msra.mxu0 %v1828
      %1849 = vmatprep.subr.bf16.mxu0 0
      %1850 = vmatpush1.bf16.msra.mxu0 %v1829
      %1851 = vmatprep.subr.bf16.mxu0 0
      %1852 = vmatpush1.bf16.msra.mxu0 %v1830
      %1853 = vmatprep.subr.bf16.mxu0 0
      %1854 = vmatpush1.bf16.msra.mxu0 %v1831
      %1855 = vmatprep.subr.bf16.mxu0 0
      %1856 = vmatpush1.bf16.msra.mxu0 %v1832
      %1857 = vmatprep.subr.bf16.mxu0 0
      %1858 = vmatpush1.bf16.msra.mxu0 0
      %1859 = vmatprep.subr.bf16.mxu0 0
      %1860 = vmatpush1.bf16.msra.mxu0 0
      %1861 = vmatprep.subr.bf16.mxu0 0
      %1862 = vmatpush1.bf16.msra.mxu0 0
      %1863 = vmatprep.subr.bf16.mxu0 0
      %1864 = vmatpush1.bf16.msra.mxu0 0
      %1865 = vmatprep.subr.bf16.mxu0 0
      %1866 = vmatpush1.bf16.msra.mxu0 0
      %1867 = vmatprep.subr.bf16.mxu0 0
      %1868 = vmatpush1.bf16.msra.mxu0 0
      %1869 = vmatprep.subr.bf16.mxu0 0
      %1870 = vmatpush1.bf16.msra.mxu0 0
      %1871 = vmatprep.subr.bf16.mxu0 0
      %1872 = vmatpush1.bf16.msra.mxu0 0
      %1873 = vmatprep.mubr.bf16.mxu0 0
      %1874 = vmatmul.mubr.bf16.gmra.mrb[0].mxu0 %v1661
      %v1875 = vpop.f32.mrb[0].mxu0
      %v1876 = vadd.f32 0.0, %v1875
      %v1877 = vpop.f32.mrb[0].mxu0
      %v1878 = vpop.f32.mrb[0].mxu0
      %v1879 = vpop.f32.mrb[0].mxu0
      %1880 = vdwg.mxu0
      %v1881 = vld [vmem:[%s1768 + $0x8] sm:$0xff]
      %v1882 = vadd.f32 %v1881, %v1876
      %v1883 = vxor.u32 %v1882, 2147483648
      %v1884 = vmul.f32 %v1883, 1.442695
      %v1885 = vpow.pop %v1884
      %v1886 = vadd.f32 %v1885, 1.0
      %v1887 = vrcp.pop %v1886
      %v1888 = vmul.f32 1.0, %v1887
      %v1889 = vld [vmem:[%s1 + $0x8] sm:$0xf]
      %v1890 = vld [vmem:[%s1 + $0x14] sm:$0xf]
      %v1891 = vld [vmem:[%s1 + $0x20] sm:$0xf]
      %v1892 = vld [vmem:[%s1 + $0x2c] sm:$0xf]
      %v1893 = vld [vmem:[%s1 + $0x38] sm:$0xf]
      %v1894 = vld [vmem:[%s1 + $0x44] sm:$0xf]
      %v1895 = vld [vmem:[%s1 + $0x50] sm:$0xf]
      %v1896 = vld [vmem:[%s1 + $0x5c] sm:$0xf]
      %v1897 = vld [vmem:[%s1 + $0x68] sm:$0xf]
      %v1898 = vld [vmem:[%s1 + $0x74] sm:$0xf]
      %v1899 = vld [vmem:[%s1 + $0x80] sm:$0xf]
      %v1900 = vld [vmem:[%s1 + $0x8c] sm:$0xf]
      %v1901 = vld [vmem:[%s1 + $0x98] sm:$0xf]
      %v1902 = vld [vmem:[%s1 + $0xa4] sm:$0xf]
      %v1903 = vld [vmem:[%s1 + $0xb0] sm:$0xf]
      %v1904 = vld [vmem:[%s1 + $0xbc] sm:$0xf]
      %v1905 = vld [vmem:[%s1768 + $0x10] sm:$0xff]
      %v1906 = vld [vmem:[%s2] sm:$0x1]
      %v1908 = vlaneseq
      %v1909 = vshrl.u32 %v1908, 7
      %v1910 = vsub.s32 0, %v1909
      %v1911 = vrot.slane %v1906, %v1910
      %v1929 = vunpack.c.l.b16 %v1889
      %v1930 = vunpack.c.l.b16 %v1890
      %v1931 = vunpack.c.l.b16 %v1891
      %v1932 = vunpack.c.l.b16 %v1892
      %v1933 = vunpack.c.l.b16 %v1893
      %v1934 = vunpack.c.l.b16 %v1894
      %v1935 = vunpack.c.l.b16 %v1895
      %v1936 = vunpack.c.l.b16 %v1896
      %v1937 = vunpack.c.l.b16 %v1897
      %v1938 = vunpack.c.l.b16 %v1898
      %v1939 = vunpack.c.l.b16 %v1899
      %v1940 = vunpack.c.l.b16 %v1900
      %v1941 = vunpack.c.l.b16 %v1901
      %v1942 = vunpack.c.l.b16 %v1902
      %v1943 = vunpack.c.l.b16 %v1903
      %v1944 = vunpack.c.l.b16 %v1904
      %v1945 = vpack.c.b16 %v1930, %v1929
      %v1946 = vpack.c.b16 %v1932, %v1931
      %v1947 = vpack.c.b16 %v1934, %v1933
      %v1948 = vpack.c.b16 %v1936, %v1935
      %v1949 = vpack.c.b16 %v1938, %v1937
      %v1950 = vpack.c.b16 %v1940, %v1939
      %v1951 = vpack.c.b16 %v1942, %v1941
      %v1952 = vpack.c.b16 %v1944, %v1943
      %1961 = vmatprep.subr.bf16.mxu0 0
      %1962 = vmatpush1.bf16.msra.mxu0 %v1945
      %1963 = vmatprep.subr.bf16.mxu0 0
      %1964 = vmatpush1.bf16.msra.mxu0 %v1946
      %1965 = vmatprep.subr.bf16.mxu0 0
      %1966 = vmatpush1.bf16.msra.mxu0 %v1947
      %1967 = vmatprep.subr.bf16.mxu0 0
      %1968 = vmatpush1.bf16.msra.mxu0 %v1948
      %1969 = vmatprep.subr.bf16.mxu0 0
      %1970 = vmatpush1.bf16.msra.mxu0 %v1949
      %1971 = vmatprep.subr.bf16.mxu0 0
      %1972 = vmatpush1.bf16.msra.mxu0 %v1950
      %1973 = vmatprep.subr.bf16.mxu0 0
      %1974 = vmatpush1.bf16.msra.mxu0 %v1951
      %1975 = vmatprep.subr.bf16.mxu0 0
      %1976 = vmatpush1.bf16.msra.mxu0 %v1952
      %1977 = vmatprep.subr.bf16.mxu0 0
      %1978 = vmatpush1.bf16.msra.mxu0 0
      %1979 = vmatprep.subr.bf16.mxu0 0
      %1980 = vmatpush1.bf16.msra.mxu0 0
      %1981 = vmatprep.subr.bf16.mxu0 0
      %1982 = vmatpush1.bf16.msra.mxu0 0
      %1983 = vmatprep.subr.bf16.mxu0 0
      %1984 = vmatpush1.bf16.msra.mxu0 0
      %1985 = vmatprep.subr.bf16.mxu0 0
      %1986 = vmatpush1.bf16.msra.mxu0 0
      %1987 = vmatprep.subr.bf16.mxu0 0
      %1988 = vmatpush1.bf16.msra.mxu0 0
      %1989 = vmatprep.subr.bf16.mxu0 0
      %1990 = vmatpush1.bf16.msra.mxu0 0
      %1991 = vmatprep.subr.bf16.mxu0 0
      %1992 = vmatpush1.bf16.msra.mxu0 0
      %1993 = vmatprep.mubr.bf16.mxu0 0
      %1994 = vmatmul.mubr.bf16.gmra.mrb[0].mxu0 %v1661
      %v1995 = vpop.f32.mrb[0].mxu0
      %v1996 = vadd.f32 %v1911, %v1995
      %v1997 = vpop.f32.mrb[0].mxu0
      %v1998 = vpop.f32.mrb[0].mxu0
      %v1999 = vpop.f32.mrb[0].mxu0
      %2000 = vdwg.mxu0
      %v2001 = vmul.f32 %v1776, %v1996
      %v2002 = vadd.f32 %v1905, %v2001
      %v2003 = vtanh.pop %v2002
      %v2004 = vsub.f32 1.0, %v1888
      %v2005 = vmul.f32 %v2004, %v2003
      %v2006 = vmul.f32 %v1888, %v1658
      %v2007 = vadd.f32 %v2005, %v2006
      %s2008 = scalar_lea.vmem [#allocation3], 32
      %2009 = vst [vmem:[%s2008] sm:$0xff] %v2007
      %v2010 = vpack.c.bf16 %v2007, %v2007
      %v2011 = vld [vmem:[%s1] sm:$0xf]
      %v2012 = vld [vmem:[%s1 + $0xc] sm:$0xf]
      %v2013 = vld [vmem:[%s1 + $0x18] sm:$0xf]
      %v2014 = vld [vmem:[%s1 + $0x24] sm:$0xf]
      %v2015 = vld [vmem:[%s1 + $0x30] sm:$0xf]
      %v2016 = vld [vmem:[%s1 + $0x3c] sm:$0xf]
      %v2017 = vld [vmem:[%s1 + $0x48] sm:$0xf]
      %v2018 = vld [vmem:[%s1 + $0x54] sm:$0xf]
      %v2019 = vld [vmem:[%s1 + $0x60] sm:$0xf]
      %v2020 = vld [vmem:[%s1 + $0x6c] sm:$0xf]
      %v2021 = vld [vmem:[%s1 + $0x78] sm:$0xf]
      %v2022 = vld [vmem:[%s1 + $0x84] sm:$0xf]
      %v2023 = vld [vmem:[%s1 + $0x90] sm:$0xf]
      %v2024 = vld [vmem:[%s1 + $0x9c] sm:$0xf]
      %v2025 = vld [vmem:[%s1 + $0xa8] sm:$0xf]
      %v2026 = vld [vmem:[%s1 + $0xb4] sm:$0xf]
      %v2043 = vunpack.c.l.b16 %v2011
      %v2044 = vunpack.c.l.b16 %v2012
      %v2045 = vunpack.c.l.b16 %v2013
      %v2046 = vunpack.c.l.b16 %v2014
      %v2047 = vunpack.c.l.b16 %v2015
      %v2048 = vunpack.c.l.b16 %v2016
      %v2049 = vunpack.c.l.b16 %v2017
      %v2050 = vunpack.c.l.b16 %v2018
      %v2051 = vunpack.c.l.b16 %v2019
      %v2052 = vunpack.c.l.b16 %v2020
      %v2053 = vunpack.c.l.b16 %v2021
      %v2054 = vunpack.c.l.b16 %v2022
      %v2055 = vunpack.c.l.b16 %v2023
      %v2056 = vunpack.c.l.b16 %v2024
      %v2057 = vunpack.c.l.b16 %v2025
      %v2058 = vunpack.c.l.b16 %v2026
      %v2059 = vpack.c.b16 %v2044, %v2043
      %v2060 = vpack.c.b16 %v2046, %v2045
      %v2061 = vpack.c.b16 %v2048, %v2047
      %v2062 = vpack.c.b16 %v2050, %v2049
      %v2063 = vpack.c.b16 %v2052, %v2051
      %v2064 = vpack.c.b16 %v2054, %v2053
      %v2065 = vpack.c.b16 %v2056, %v2055
      %v2066 = vpack.c.b16 %v2058, %v2057
      %2075 = vmatprep.subr.bf16.mxu0 0
      %2076 = vmatpush1.bf16.msra.mxu0 %v2059
      %2077 = vmatprep.subr.bf16.mxu0 0
      %2078 = vmatpush1.bf16.msra.mxu0 %v2060
      %2079 = vmatprep.subr.bf16.mxu0 0
      %2080 = vmatpush1.bf16.msra.mxu0 %v2061
      %2081 = vmatprep.subr.bf16.mxu0 0
      %2082 = vmatpush1.bf16.msra.mxu0 %v2062
      %2083 = vmatprep.subr.bf16.mxu0 0
      %2084 = vmatpush1.bf16.msra.mxu0 %v2063
      %2085 = vmatprep.subr.bf16.mxu0 0
      %2086 = vmatpush1.bf16.msra.mxu0 %v2064
      %2087 = vmatprep.subr.bf16.mxu0 0
      %2088 = vmatpush1.bf16.msra.mxu0 %v2065
      %2089 = vmatprep.subr.bf16.mxu0 0
      %2090 = vmatpush1.bf16.msra.mxu0 %v2066
      %2091 = vmatprep.subr.bf16.mxu0 0
      %2092 = vmatpush1.bf16.msra.mxu0 0
      %2093 = vmatprep.subr.bf16.mxu0 0
      %2094 = vmatpush1.bf16.msra.mxu0 0
      %2095 = vmatprep.subr.bf16.mxu0 0
      %2096 = vmatpush1.bf16.msra.mxu0 0
      %2097 = vmatprep.subr.bf16.mxu0 0
      %2098 = vmatpush1.bf16.msra.mxu0 0
      %2099 = vmatprep.subr.bf16.mxu0 0
      %2100 = vmatpush1.bf16.msra.mxu0 0
      %2101 = vmatprep.subr.bf16.mxu0 0
      %2102 = vmatpush1.bf16.msra.mxu0 0
      %2103 = vmatprep.subr.bf16.mxu0 0
      %2104 = vmatpush1.bf16.msra.mxu0 0
      %2105 = vmatprep.subr.bf16.mxu0 0
      %2106 = vmatpush1.bf16.msra.mxu0 0
      %2107 = vmatprep.mubr.bf16.mxu0 0
      %2108 = vmatmul.mubr.bf16.gmra.mrb[0].mxu0 %v2010
      %v2109 = vpop.f32.mrb[0].mxu0
      %v2110 = vadd.f32 0.0, %v2109
      %v2111 = vpop.f32.mrb[0].mxu0
      %v2112 = vpop.f32.mrb[0].mxu0
      %v2113 = vpop.f32.mrb[0].mxu0
      %2114 = vdwg.mxu0
      %s2115 = smul.u32 5, 3
      %s2116 = smul.addr %s2115, 8
      %s2117 = scalar_lea.vmem %s250, %s2116
      %v2118 = vld [vmem:[%s2117] sm:$0xff]
      %v2119 = vadd.f32 %v2118, %v2110
      %v2120 = vxor.u32 %v2119, 2147483648
      %v2121 = vmul.f32 %v2120, 1.442695
      %v2122 = vpow.pop %v2121
      %v2123 = vadd.f32 %v2122, 1.0
      %v2124 = vrcp.pop %v2123
      %v2125 = vmul.f32 1.0, %v2124
      %v2126 = vld [vmem:[%s1 + $0x4] sm:$0xf]
      %v2127 = vld [vmem:[%s1 + $0x10] sm:$0xf]
      %v2128 = vld [vmem:[%s1 + $0x1c] sm:$0xf]
      %v2129 = vld [vmem:[%s1 + $0x28] sm:$0xf]
      %v2130 = vld [vmem:[%s1 + $0x34] sm:$0xf]
      %v2131 = vld [vmem:[%s1 + $0x40] sm:$0xf]
      %v2132 = vld [vmem:[%s1 + $0x4c] sm:$0xf]
      %v2133 = vld [vmem:[%s1 + $0x58] sm:$0xf]
      %v2134 = vld [vmem:[%s1 + $0x64] sm:$0xf]
      %v2135 = vld [vmem:[%s1 + $0x70] sm:$0xf]
      %v2136 = vld [vmem:[%s1 + $0x7c] sm:$0xf]
      %v2137 = vld [vmem:[%s1 + $0x88] sm:$0xf]
      %v2138 = vld [vmem:[%s1 + $0x94] sm:$0xf]
      %v2139 = vld [vmem:[%s1 + $0xa0] sm:$0xf]
      %v2140 = vld [vmem:[%s1 + $0xac] sm:$0xf]
      %v2141 = vld [vmem:[%s1 + $0xb8] sm:$0xf]
      %v2158 = vunpack.c.l.b16 %v2126
      %v2159 = vunpack.c.l.b16 %v2127
      %v2160 = vunpack.c.l.b16 %v2128
      %v2161 = vunpack.c.l.b16 %v2129
      %v2162 = vunpack.c.l.b16 %v2130
      %v2163 = vunpack.c.l.b16 %v2131
      %v2164 = vunpack.c.l.b16 %v2132
      %v2165 = vunpack.c.l.b16 %v2133
      %v2166 = vunpack.c.l.b16 %v2134
      %v2167 = vunpack.c.l.b16 %v2135
      %v2168 = vunpack.c.l.b16 %v2136
      %v2169 = vunpack.c.l.b16 %v2137
      %v2170 = vunpack.c.l.b16 %v2138
      %v2171 = vunpack.c.l.b16 %v2139
      %v2172 = vunpack.c.l.b16 %v2140
      %v2173 = vunpack.c.l.b16 %v2141
      %v2174 = vpack.c.b16 %v2159, %v2158
      %v2175 = vpack.c.b16 %v2161, %v2160
      %v2176 = vpack.c.b16 %v2163, %v2162
      %v2177 = vpack.c.b16 %v2165, %v2164
      %v2178 = vpack.c.b16 %v2167, %v2166
      %v2179 = vpack.c.b16 %v2169, %v2168
      %v2180 = vpack.c.b16 %v2171, %v2170
      %v2181 = vpack.c.b16 %v2173, %v2172
      %2190 = vmatprep.subr.bf16.mxu0 0
      %2191 = vmatpush1.bf16.msra.mxu0 %v2174
      %2192 = vmatprep.subr.bf16.mxu0 0
      %2193 = vmatpush1.bf16.msra.mxu0 %v2175
      %2194 = vmatprep.subr.bf16.mxu0 0
      %2195 = vmatpush1.bf16.msra.mxu0 %v2176
      %2196 = vmatprep.subr.bf16.mxu0 0
      %2197 = vmatpush1.bf16.msra.mxu0 %v2177
      %2198 = vmatprep.subr.bf16.mxu0 0
      %2199 = vmatpush1.bf16.msra.mxu0 %v2178
      %2200 = vmatprep.subr.bf16.mxu0 0
      %2201 = vmatpush1.bf16.msra.mxu0 %v2179
      %2202 = vmatprep.subr.bf16.mxu0 0
      %2203 = vmatpush1.bf16.msra.mxu0 %v2180
      %2204 = vmatprep.subr.bf16.mxu0 0
      %2205 = vmatpush1.bf16.msra.mxu0 %v2181
      %2206 = vmatprep.subr.bf16.mxu0 0
      %2207 = vmatpush1.bf16.msra.mxu0 0
      %2208 = vmatprep.subr.bf16.mxu0 0
      %2209 = vmatpush1.bf16.msra.mxu0 0
      %2210 = vmatprep.subr.bf16.mxu0 0
      %2211 = vmatpush1.bf16.msra.mxu0 0
      %2212 = vmatprep.subr.bf16.mxu0 0
      %2213 = vmatpush1.bf16.msra.mxu0 0
      %2214 = vmatprep.subr.bf16.mxu0 0
      %2215 = vmatpush1.bf16.msra.mxu0 0
      %2216 = vmatprep.subr.bf16.mxu0 0
      %2217 = vmatpush1.bf16.msra.mxu0 0
      %2218 = vmatprep.subr.bf16.mxu0 0
      %2219 = vmatpush1.bf16.msra.mxu0 0
      %2220 = vmatprep.subr.bf16.mxu0 0
      %2221 = vmatpush1.bf16.msra.mxu0 0
      %2222 = vmatprep.mubr.bf16.mxu0 0
      %2223 = vmatmul.mubr.bf16.gmra.mrb[0].mxu0 %v2010
      %v2224 = vpop.f32.mrb[0].mxu0
      %v2225 = vadd.f32 0.0, %v2224
      %v2226 = vpop.f32.mrb[0].mxu0
      %v2227 = vpop.f32.mrb[0].mxu0
      %v2228 = vpop.f32.mrb[0].mxu0
      %2229 = vdwg.mxu0
      %v2230 = vld [vmem:[%s2117 + $0x8] sm:$0xff]
      %v2231 = vadd.f32 %v2230, %v2225
      %v2232 = vxor.u32 %v2231, 2147483648
      %v2233 = vmul.f32 %v2232, 1.442695
      %v2234 = vpow.pop %v2233
      %v2235 = vadd.f32 %v2234, 1.0
      %v2236 = vrcp.pop %v2235
      %v2237 = vmul.f32 1.0, %v2236
      %v2238 = vld [vmem:[%s1 + $0x8] sm:$0xf]
      %v2239 = vld [vmem:[%s1 + $0x14] sm:$0xf]
      %v2240 = vld [vmem:[%s1 + $0x20] sm:$0xf]
      %v2241 = vld [vmem:[%s1 + $0x2c] sm:$0xf]
      %v2242 = vld [vmem:[%s1 + $0x38] sm:$0xf]
      %v2243 = vld [vmem:[%s1 + $0x44] sm:$0xf]
      %v2244 = vld [vmem:[%s1 + $0x50] sm:$0xf]
      %v2245 = vld [vmem:[%s1 + $0x5c] sm:$0xf]
      %v2246 = vld [vmem:[%s1 + $0x68] sm:$0xf]
      %v2247 = vld [vmem:[%s1 + $0x74] sm:$0xf]
      %v2248 = vld [vmem:[%s1 + $0x80] sm:$0xf]
      %v2249 = vld [vmem:[%s1 + $0x8c] sm:$0xf]
      %v2250 = vld [vmem:[%s1 + $0x98] sm:$0xf]
      %v2251 = vld [vmem:[%s1 + $0xa4] sm:$0xf]
      %v2252 = vld [vmem:[%s1 + $0xb0] sm:$0xf]
      %v2253 = vld [vmem:[%s1 + $0xbc] sm:$0xf]
      %v2254 = vld [vmem:[%s2117 + $0x10] sm:$0xff]
      %v2255 = vld [vmem:[%s2] sm:$0x1]
      %v2257 = vlaneseq
      %v2258 = vshrl.u32 %v2257, 7
      %v2259 = vsub.s32 0, %v2258
      %v2260 = vrot.slane %v2255, %v2259
      %v2278 = vunpack.c.l.b16 %v2238
      %v2279 = vunpack.c.l.b16 %v2239
      %v2280 = vunpack.c.l.b16 %v2240
      %v2281 = vunpack.c.l.b16 %v2241
      %v2282 = vunpack.c.l.b16 %v2242
      %v2283 = vunpack.c.l.b16 %v2243
      %v2284 = vunpack.c.l.b16 %v2244
      %v2285 = vunpack.c.l.b16 %v2245
      %v2286 = vunpack.c.l.b16 %v2246
      %v2287 = vunpack.c.l.b16 %v2247
      %v2288 = vunpack.c.l.b16 %v2248
      %v2289 = vunpack.c.l.b16 %v2249
      %v2290 = vunpack.c.l.b16 %v2250
      %v2291 = vunpack.c.l.b16 %v2251
      %v2292 = vunpack.c.l.b16 %v2252
      %v2293 = vunpack.c.l.b16 %v2253
      %v2294 = vpack.c.b16 %v2279, %v2278
      %v2295 = vpack.c.b16 %v2281, %v2280
      %v2296 = vpack.c.b16 %v2283, %v2282
      %v2297 = vpack.c.b16 %v2285, %v2284
      %v2298 = vpack.c.b16 %v2287, %v2286
      %v2299 = vpack.c.b16 %v2289, %v2288
      %v2300 = vpack.c.b16 %v2291, %v2290
      %v2301 = vpack.c.b16 %v2293, %v2292
      %2310 = vmatprep.subr.bf16.mxu0 0
      %2311 = vmatpush1.bf16.msra.mxu0 %v2294
      %2312 = vmatprep.subr.bf16.mxu0 0
      %2313 = vmatpush1.bf16.msra.mxu0 %v2295
      %2314 = vmatprep.subr.bf16.mxu0 0
      %2315 = vmatpush1.bf16.msra.mxu0 %v2296
      %2316 = vmatprep.subr.bf16.mxu0 0
      %2317 = vmatpush1.bf16.msra.mxu0 %v2297
      %2318 = vmatprep.subr.bf16.mxu0 0
      %2319 = vmatpush1.bf16.msra.mxu0 %v2298
      %2320 = vmatprep.subr.bf16.mxu0 0
      %2321 = vmatpush1.bf16.msra.mxu0 %v2299
      %2322 = vmatprep.subr.bf16.mxu0 0
      %2323 = vmatpush1.bf16.msra.mxu0 %v2300
      %2324 = vmatprep.subr.bf16.mxu0 0
      %2325 = vmatpush1.bf16.msra.mxu0 %v2301
      %2326 = vmatprep.subr.bf16.mxu0 0
      %2327 = vmatpush1.bf16.msra.mxu0 0
      %2328 = vmatprep.subr.bf16.mxu0 0
      %2329 = vmatpush1.bf16.msra.mxu0 0
      %2330 = vmatprep.subr.bf16.mxu0 0
      %2331 = vmatpush1.bf16.msra.mxu0 0
      %2332 = vmatprep.subr.bf16.mxu0 0
      %2333 = vmatpush1.bf16.msra.mxu0 0
      %2334 = vmatprep.subr.bf16.mxu0 0
      %2335 = vmatpush1.bf16.msra.mxu0 0
      %2336 = vmatprep.subr.bf16.mxu0 0
      %2337 = vmatpush1.bf16.msra.mxu0 0
      %2338 = vmatprep.subr.bf16.mxu0 0
      %2339 = vmatpush1.bf16.msra.mxu0 0
      %2340 = vmatprep.subr.bf16.mxu0 0
      %2341 = vmatpush1.bf16.msra.mxu0 0
      %2342 = vmatprep.mubr.bf16.mxu0 0
      %2343 = vmatmul.mubr.bf16.gmra.mrb[0].mxu0 %v2010
      %v2344 = vpop.f32.mrb[0].mxu0
      %v2345 = vadd.f32 %v2260, %v2344
      %v2346 = vpop.f32.mrb[0].mxu0
      %v2347 = vpop.f32.mrb[0].mxu0
      %v2348 = vpop.f32.mrb[0].mxu0
      %2349 = vdwg.mxu0
      %v2350 = vmul.f32 %v2125, %v2345
      %v2351 = vadd.f32 %v2254, %v2350
      %v2352 = vtanh.pop %v2351
      %v2353 = vsub.f32 1.0, %v2237
      %v2354 = vmul.f32 %v2353, %v2352
      %v2355 = vmul.f32 %v2237, %v2007
      %v2356 = vadd.f32 %v2354, %v2355
      %s2357 = scalar_lea.vmem [#allocation3], 40
      %2358 = vst [vmem:[%s2357] sm:$0xff] %v2356
      %v2359 = vpack.c.bf16 %v2356, %v2356
      %v2360 = vld [vmem:[%s1] sm:$0xf]
      %v2361 = vld [vmem:[%s1 + $0xc] sm:$0xf]
      %v2362 = vld [vmem:[%s1 + $0x18] sm:$0xf]
      %v2363 = vld [vmem:[%s1 + $0x24] sm:$0xf]
      %v2364 = vld [vmem:[%s1 + $0x30] sm:$0xf]
      %v2365 = vld [vmem:[%s1 + $0x3c] sm:$0xf]
      %v2366 = vld [vmem:[%s1 + $0x48] sm:$0xf]
      %v2367 = vld [vmem:[%s1 + $0x54] sm:$0xf]
      %v2368 = vld [vmem:[%s1 + $0x60] sm:$0xf]
      %v2369 = vld [vmem:[%s1 + $0x6c] sm:$0xf]
      %v2370 = vld [vmem:[%s1 + $0x78] sm:$0xf]
      %v2371 = vld [vmem:[%s1 + $0x84] sm:$0xf]
      %v2372 = vld [vmem:[%s1 + $0x90] sm:$0xf]
      %v2373 = vld [vmem:[%s1 + $0x9c] sm:$0xf]
      %v2374 = vld [vmem:[%s1 + $0xa8] sm:$0xf]
      %v2375 = vld [vmem:[%s1 + $0xb4] sm:$0xf]
      %v2392 = vunpack.c.l.b16 %v2360
      %v2393 = vunpack.c.l.b16 %v2361
      %v2394 = vunpack.c.l.b16 %v2362
      %v2395 = vunpack.c.l.b16 %v2363
      %v2396 = vunpack.c.l.b16 %v2364
      %v2397 = vunpack.c.l.b16 %v2365
      %v2398 = vunpack.c.l.b16 %v2366
      %v2399 = vunpack.c.l.b16 %v2367
      %v2400 = vunpack.c.l.b16 %v2368
      %v2401 = vunpack.c.l.b16 %v2369
      %v2402 = vunpack.c.l.b16 %v2370
      %v2403 = vunpack.c.l.b16 %v2371
      %v2404 = vunpack.c.l.b16 %v2372
      %v2405 = vunpack.c.l.b16 %v2373
      %v2406 = vunpack.c.l.b16 %v2374
      %v2407 = vunpack.c.l.b16 %v2375
      %v2408 = vpack.c.b16 %v2393, %v2392
      %v2409 = vpack.c.b16 %v2395, %v2394
      %v2410 = vpack.c.b16 %v2397, %v2396
      %v2411 = vpack.c.b16 %v2399, %v2398
      %v2412 = vpack.c.b16 %v2401, %v2400
      %v2413 = vpack.c.b16 %v2403, %v2402
      %v2414 = vpack.c.b16 %v2405, %v2404
      %v2415 = vpack.c.b16 %v2407, %v2406
      %2424 = vmatprep.subr.bf16.mxu0 0
      %2425 = vmatpush1.bf16.msra.mxu0 %v2408
      %2426 = vmatprep.subr.bf16.mxu0 0
      %2427 = vmatpush1.bf16.msra.mxu0 %v2409
      %2428 = vmatprep.subr.bf16.mxu0 0
      %2429 = vmatpush1.bf16.msra.mxu0 %v2410
      %2430 = vmatprep.subr.bf16.mxu0 0
      %2431 = vmatpush1.bf16.msra.mxu0 %v2411
      %2432 = vmatprep.subr.bf16.mxu0 0
      %2433 = vmatpush1.bf16.msra.mxu0 %v2412
      %2434 = vmatprep.subr.bf16.mxu0 0
      %2435 = vmatpush1.bf16.msra.mxu0 %v2413
      %2436 = vmatprep.subr.bf16.mxu0 0
      %2437 = vmatpush1.bf16.msra.mxu0 %v2414
      %2438 = vmatprep.subr.bf16.mxu0 0
      %2439 = vmatpush1.bf16.msra.mxu0 %v2415
      %2440 = vmatprep.subr.bf16.mxu0 0
      %2441 = vmatpush1.bf16.msra.mxu0 0
      %2442 = vmatprep.subr.bf16.mxu0 0
      %2443 = vmatpush1.bf16.msra.mxu0 0
      %2444 = vmatprep.subr.bf16.mxu0 0
      %2445 = vmatpush1.bf16.msra.mxu0 0
      %2446 = vmatprep.subr.bf16.mxu0 0
      %2447 = vmatpush1.bf16.msra.mxu0 0
      %2448 = vmatprep.subr.bf16.mxu0 0
      %2449 = vmatpush1.bf16.msra.mxu0 0
      %2450 = vmatprep.subr.bf16.mxu0 0
      %2451 = vmatpush1.bf16.msra.mxu0 0
      %2452 = vmatprep.subr.bf16.mxu0 0
      %2453 = vmatpush1.bf16.msra.mxu0 0
      %2454 = vmatprep.subr.bf16.mxu0 0
      %2455 = vmatpush1.bf16.msra.mxu0 0
      %2456 = vmatprep.mubr.bf16.mxu0 0
      %2457 = vmatmul.mubr.bf16.gmra.mrb[0].mxu0 %v2359
      %v2458 = vpop.f32.mrb[0].mxu0
      %v2459 = vadd.f32 0.0, %v2458
      %v2460 = vpop.f32.mrb[0].mxu0
      %v2461 = vpop.f32.mrb[0].mxu0
      %v2462 = vpop.f32.mrb[0].mxu0
      %2463 = vdwg.mxu0
      %s2464 = smul.u32 6, 3
      %s2465 = smul.addr %s2464, 8
      %s2466 = scalar_lea.vmem %s250, %s2465
      %v2467 = vld [vmem:[%s2466] sm:$0xff]
      %v2468 = vadd.f32 %v2467, %v2459
      %v2469 = vxor.u32 %v2468, 2147483648
      %v2470 = vmul.f32 %v2469, 1.442695
      %v2471 = vpow.pop %v2470
      %v2472 = vadd.f32 %v2471, 1.0
      %v2473 = vrcp.pop %v2472
      %v2474 = vmul.f32 1.0, %v2473
      %v2475 = vld [vmem:[%s1 + $0x4] sm:$0xf]
      %v2476 = vld [vmem:[%s1 + $0x10] sm:$0xf]
      %v2477 = vld [vmem:[%s1 + $0x1c] sm:$0xf]
      %v2478 = vld [vmem:[%s1 + $0x28] sm:$0xf]
      %v2479 = vld [vmem:[%s1 + $0x34] sm:$0xf]
      %v2480 = vld [vmem:[%s1 + $0x40] sm:$0xf]
      %v2481 = vld [vmem:[%s1 + $0x4c] sm:$0xf]
      %v2482 = vld [vmem:[%s1 + $0x58] sm:$0xf]
      %v2483 = vld [vmem:[%s1 + $0x64] sm:$0xf]
      %v2484 = vld [vmem:[%s1 + $0x70] sm:$0xf]
      %v2485 = vld [vmem:[%s1 + $0x7c] sm:$0xf]
      %v2486 = vld [vmem:[%s1 + $0x88] sm:$0xf]
      %v2487 = vld [vmem:[%s1 + $0x94] sm:$0xf]
      %v2488 = vld [vmem:[%s1 + $0xa0] sm:$0xf]
      %v2489 = vld [vmem:[%s1 + $0xac] sm:$0xf]
      %v2490 = vld [vmem:[%s1 + $0xb8] sm:$0xf]
      %v2507 = vunpack.c.l.b16 %v2475
      %v2508 = vunpack.c.l.b16 %v2476
      %v2509 = vunpack.c.l.b16 %v2477
      %v2510 = vunpack.c.l.b16 %v2478
      %v2511 = vunpack.c.l.b16 %v2479
      %v2512 = vunpack.c.l.b16 %v2480
      %v2513 = vunpack.c.l.b16 %v2481
      %v2514 = vunpack.c.l.b16 %v2482
      %v2515 = vunpack.c.l.b16 %v2483
      %v2516 = vunpack.c.l.b16 %v2484
      %v2517 = vunpack.c.l.b16 %v2485
      %v2518 = vunpack.c.l.b16 %v2486
      %v2519 = vunpack.c.l.b16 %v2487
      %v2520 = vunpack.c.l.b16 %v2488
      %v2521 = vunpack.c.l.b16 %v2489
      %v2522 = vunpack.c.l.b16 %v2490
      %v2523 = vpack.c.b16 %v2508, %v2507
      %v2524 = vpack.c.b16 %v2510, %v2509
      %v2525 = vpack.c.b16 %v2512, %v2511
      %v2526 = vpack.c.b16 %v2514, %v2513
      %v2527 = vpack.c.b16 %v2516, %v2515
      %v2528 = vpack.c.b16 %v2518, %v2517
      %v2529 = vpack.c.b16 %v2520, %v2519
      %v2530 = vpack.c.b16 %v2522, %v2521
      %2539 = vmatprep.subr.bf16.mxu0 0
      %2540 = vmatpush1.bf16.msra.mxu0 %v2523
      %2541 = vmatprep.subr.bf16.mxu0 0
      %2542 = vmatpush1.bf16.msra.mxu0 %v2524
      %2543 = vmatprep.subr.bf16.mxu0 0
      %2544 = vmatpush1.bf16.msra.mxu0 %v2525
      %2545 = vmatprep.subr.bf16.mxu0 0
      %2546 = vmatpush1.bf16.msra.mxu0 %v2526
      %2547 = vmatprep.subr.bf16.mxu0 0
      %2548 = vmatpush1.bf16.msra.mxu0 %v2527
      %2549 = vmatprep.subr.bf16.mxu0 0
      %2550 = vmatpush1.bf16.msra.mxu0 %v2528
      %2551 = vmatprep.subr.bf16.mxu0 0
      %2552 = vmatpush1.bf16.msra.mxu0 %v2529
      %2553 = vmatprep.subr.bf16.mxu0 0
      %2554 = vmatpush1.bf16.msra.mxu0 %v2530
      %2555 = vmatprep.subr.bf16.mxu0 0
      %2556 = vmatpush1.bf16.msra.mxu0 0
      %2557 = vmatprep.subr.bf16.mxu0 0
      %2558 = vmatpush1.bf16.msra.mxu0 0
      %2559 = vmatprep.subr.bf16.mxu0 0
      %2560 = vmatpush1.bf16.msra.mxu0 0
      %2561 = vmatprep.subr.bf16.mxu0 0
      %2562 = vmatpush1.bf16.msra.mxu0 0
      %2563 = vmatprep.subr.bf16.mxu0 0
      %2564 = vmatpush1.bf16.msra.mxu0 0
      %2565 = vmatprep.subr.bf16.mxu0 0
      %2566 = vmatpush1.bf16.msra.mxu0 0
      %2567 = vmatprep.subr.bf16.mxu0 0
      %2568 = vmatpush1.bf16.msra.mxu0 0
      %2569 = vmatprep.subr.bf16.mxu0 0
      %2570 = vmatpush1.bf16.msra.mxu0 0
      %2571 = vmatprep.mubr.bf16.mxu0 0
      %2572 = vmatmul.mubr.bf16.gmra.mrb[0].mxu0 %v2359
      %v2573 = vpop.f32.mrb[0].mxu0
      %v2574 = vadd.f32 0.0, %v2573
      %v2575 = vpop.f32.mrb[0].mxu0
      %v2576 = vpop.f32.mrb[0].mxu0
      %v2577 = vpop.f32.mrb[0].mxu0
      %2578 = vdwg.mxu0
      %v2579 = vld [vmem:[%s2466 + $0x8] sm:$0xff]
      %v2580 = vadd.f32 %v2579, %v2574
      %v2581 = vxor.u32 %v2580, 2147483648
      %v2582 = vmul.f32 %v2581, 1.442695
      %v2583 = vpow.pop %v2582
      %v2584 = vadd.f32 %v2583, 1.0
      %v2585 = vrcp.pop %v2584
      %v2586 = vmul.f32 1.0, %v2585
      %v2587 = vld [vmem:[%s1 + $0x8] sm:$0xf]
      %v2588 = vld [vmem:[%s1 + $0x14] sm:$0xf]
      %v2589 = vld [vmem:[%s1 + $0x20] sm:$0xf]
      %v2590 = vld [vmem:[%s1 + $0x2c] sm:$0xf]
      %v2591 = vld [vmem:[%s1 + $0x38] sm:$0xf]
      %v2592 = vld [vmem:[%s1 + $0x44] sm:$0xf]
      %v2593 = vld [vmem:[%s1 + $0x50] sm:$0xf]
      %v2594 = vld [vmem:[%s1 + $0x5c] sm:$0xf]
      %v2595 = vld [vmem:[%s1 + $0x68] sm:$0xf]
      %v2596 = vld [vmem:[%s1 + $0x74] sm:$0xf]
      %v2597 = vld [vmem:[%s1 + $0x80] sm:$0xf]
      %v2598 = vld [vmem:[%s1 + $0x8c] sm:$0xf]
      %v2599 = vld [vmem:[%s1 + $0x98] sm:$0xf]
      %v2600 = vld [vmem:[%s1 + $0xa4] sm:$0xf]
      %v2601 = vld [vmem:[%s1 + $0xb0] sm:$0xf]
      %v2602 = vld [vmem:[%s1 + $0xbc] sm:$0xf]
      %v2603 = vld [vmem:[%s2466 + $0x10] sm:$0xff]
      %v2604 = vld [vmem:[%s2] sm:$0x1]
      %v2606 = vlaneseq
      %v2607 = vshrl.u32 %v2606, 7
      %v2608 = vsub.s32 0, %v2607
      %v2609 = vrot.slane %v2604, %v2608
      %v2627 = vunpack.c.l.b16 %v2587
      %v2628 = vunpack.c.l.b16 %v2588
      %v2629 = vunpack.c.l.b16 %v2589
      %v2630 = vunpack.c.l.b16 %v2590
      %v2631 = vunpack.c.l.b16 %v2591
      %v2632 = vunpack.c.l.b16 %v2592
      %v2633 = vunpack.c.l.b16 %v2593
      %v2634 = vunpack.c.l.b16 %v2594
      %v2635 = vunpack.c.l.b16 %v2595
      %v2636 = vunpack.c.l.b16 %v2596
      %v2637 = vunpack.c.l.b16 %v2597
      %v2638 = vunpack.c.l.b16 %v2598
      %v2639 = vunpack.c.l.b16 %v2599
      %v2640 = vunpack.c.l.b16 %v2600
      %v2641 = vunpack.c.l.b16 %v2601
      %v2642 = vunpack.c.l.b16 %v2602
      %v2643 = vpack.c.b16 %v2628, %v2627
      %v2644 = vpack.c.b16 %v2630, %v2629
      %v2645 = vpack.c.b16 %v2632, %v2631
      %v2646 = vpack.c.b16 %v2634, %v2633
      %v2647 = vpack.c.b16 %v2636, %v2635
      %v2648 = vpack.c.b16 %v2638, %v2637
      %v2649 = vpack.c.b16 %v2640, %v2639
      %v2650 = vpack.c.b16 %v2642, %v2641
      %2659 = vmatprep.subr.bf16.mxu0 0
      %2660 = vmatpush1.bf16.msra.mxu0 %v2643
      %2661 = vmatprep.subr.bf16.mxu0 0
      %2662 = vmatpush1.bf16.msra.mxu0 %v2644
      %2663 = vmatprep.subr.bf16.mxu0 0
      %2664 = vmatpush1.bf16.msra.mxu0 %v2645
      %2665 = vmatprep.subr.bf16.mxu0 0
      %2666 = vmatpush1.bf16.msra.mxu0 %v2646
      %2667 = vmatprep.subr.bf16.mxu0 0
      %2668 = vmatpush1.bf16.msra.mxu0 %v2647
      %2669 = vmatprep.subr.bf16.mxu0 0
      %2670 = vmatpush1.bf16.msra.mxu0 %v2648
      %2671 = vmatprep.subr.bf16.mxu0 0
      %2672 = vmatpush1.bf16.msra.mxu0 %v2649
      %2673 = vmatprep.subr.bf16.mxu0 0
      %2674 = vmatpush1.bf16.msra.mxu0 %v2650
      %2675 = vmatprep.subr.bf16.mxu0 0
      %2676 = vmatpush1.bf16.msra.mxu0 0
      %2677 = vmatprep.subr.bf16.mxu0 0
      %2678 = vmatpush1.bf16.msra.mxu0 0
      %2679 = vmatprep.subr.bf16.mxu0 0
      %2680 = vmatpush1.bf16.msra.mxu0 0
      %2681 = vmatprep.subr.bf16.mxu0 0
      %2682 = vmatpush1.bf16.msra.mxu0 0
      %2683 = vmatprep.subr.bf16.mxu0 0
      %2684 = vmatpush1.bf16.msra.mxu0 0
      %2685 = vmatprep.subr.bf16.mxu0 0
      %2686 = vmatpush1.bf16.msra.mxu0 0
      %2687 = vmatprep.subr.bf16.mxu0 0
      %2688 = vmatpush1.bf16.msra.mxu0 0
      %2689 = vmatprep.subr.bf16.mxu0 0
      %2690 = vmatpush1.bf16.msra.mxu0 0
      %2691 = vmatprep.mubr.bf16.mxu0 0
      %2692 = vmatmul.mubr.bf16.gmra.mrb[0].mxu0 %v2359
      %v2693 = vpop.f32.mrb[0].mxu0
      %v2694 = vadd.f32 %v2609, %v2693
      %v2695 = vpop.f32.mrb[0].mxu0
      %v2696 = vpop.f32.mrb[0].mxu0
      %v2697 = vpop.f32.mrb[0].mxu0
      %2698 = vdwg.mxu0
      %v2699 = vmul.f32 %v2474, %v2694
      %v2700 = vadd.f32 %v2603, %v2699
      %v2701 = vtanh.pop %v2700
      %v2702 = vsub.f32 1.0, %v2586
      %v2703 = vmul.f32 %v2702, %v2701
      %v2704 = vmul.f32 %v2586, %v2356
      %v2705 = vadd.f32 %v2703, %v2704
      %s2706 = scalar_lea.vmem [#allocation3], 48
      %2707 = vst [vmem:[%s2706] sm:$0xff] %v2705
      %v2708 = vpack.c.bf16 %v2705, %v2705
      %v2709 = vld [vmem:[%s1] sm:$0xf]
      %v2710 = vld [vmem:[%s1 + $0xc] sm:$0xf]
      %v2711 = vld [vmem:[%s1 + $0x18] sm:$0xf]
      %v2712 = vld [vmem:[%s1 + $0x24] sm:$0xf]
      %v2713 = vld [vmem:[%s1 + $0x30] sm:$0xf]
      %v2714 = vld [vmem:[%s1 + $0x3c] sm:$0xf]
      %v2715 = vld [vmem:[%s1 + $0x48] sm:$0xf]
      %v2716 = vld [vmem:[%s1 + $0x54] sm:$0xf]
      %v2717 = vld [vmem:[%s1 + $0x60] sm:$0xf]
      %v2718 = vld [vmem:[%s1 + $0x6c] sm:$0xf]
      %v2719 = vld [vmem:[%s1 + $0x78] sm:$0xf]
      %v2720 = vld [vmem:[%s1 + $0x84] sm:$0xf]
      %v2721 = vld [vmem:[%s1 + $0x90] sm:$0xf]
      %v2722 = vld [vmem:[%s1 + $0x9c] sm:$0xf]
      %v2723 = vld [vmem:[%s1 + $0xa8] sm:$0xf]
      %v2724 = vld [vmem:[%s1 + $0xb4] sm:$0xf]
      %v2741 = vunpack.c.l.b16 %v2709
      %v2742 = vunpack.c.l.b16 %v2710
      %v2743 = vunpack.c.l.b16 %v2711
      %v2744 = vunpack.c.l.b16 %v2712
      %v2745 = vunpack.c.l.b16 %v2713
      %v2746 = vunpack.c.l.b16 %v2714
      %v2747 = vunpack.c.l.b16 %v2715
      %v2748 = vunpack.c.l.b16 %v2716
      %v2749 = vunpack.c.l.b16 %v2717
      %v2750 = vunpack.c.l.b16 %v2718
      %v2751 = vunpack.c.l.b16 %v2719
      %v2752 = vunpack.c.l.b16 %v2720
      %v2753 = vunpack.c.l.b16 %v2721
      %v2754 = vunpack.c.l.b16 %v2722
      %v2755 = vunpack.c.l.b16 %v2723
      %v2756 = vunpack.c.l.b16 %v2724
      %v2757 = vpack.c.b16 %v2742, %v2741
      %v2758 = vpack.c.b16 %v2744, %v2743
      %v2759 = vpack.c.b16 %v2746, %v2745
      %v2760 = vpack.c.b16 %v2748, %v2747
      %v2761 = vpack.c.b16 %v2750, %v2749
      %v2762 = vpack.c.b16 %v2752, %v2751
      %v2763 = vpack.c.b16 %v2754, %v2753
      %v2764 = vpack.c.b16 %v2756, %v2755
      %2773 = vmatprep.subr.bf16.mxu0 0
      %2774 = vmatpush1.bf16.msra.mxu0 %v2757
      %2775 = vmatprep.subr.bf16.mxu0 0
      %2776 = vmatpush1.bf16.msra.mxu0 %v2758
      %2777 = vmatprep.subr.bf16.mxu0 0
      %2778 = vmatpush1.bf16.msra.mxu0 %v2759
      %2779 = vmatprep.subr.bf16.mxu0 0
      %2780 = vmatpush1.bf16.msra.mxu0 %v2760
      %2781 = vmatprep.subr.bf16.mxu0 0
      %2782 = vmatpush1.bf16.msra.mxu0 %v2761
      %2783 = vmatprep.subr.bf16.mxu0 0
      %2784 = vmatpush1.bf16.msra.mxu0 %v2762
      %2785 = vmatprep.subr.bf16.mxu0 0
      %2786 = vmatpush1.bf16.msra.mxu0 %v2763
      %2787 = vmatprep.subr.bf16.mxu0 0
      %2788 = vmatpush1.bf16.msra.mxu0 %v2764
      %2789 = vmatprep.subr.bf16.mxu0 0
      %2790 = vmatpush1.bf16.msra.mxu0 0
      %2791 = vmatprep.subr.bf16.mxu0 0
      %2792 = vmatpush1.bf16.msra.mxu0 0
      %2793 = vmatprep.subr.bf16.mxu0 0
      %2794 = vmatpush1.bf16.msra.mxu0 0
      %2795 = vmatprep.subr.bf16.mxu0 0
      %2796 = vmatpush1.bf16.msra.mxu0 0
      %2797 = vmatprep.subr.bf16.mxu0 0
      %2798 = vmatpush1.bf16.msra.mxu0 0
      %2799 = vmatprep.subr.bf16.mxu0 0
      %2800 = vmatpush1.bf16.msra.mxu0 0
      %2801 = vmatprep.subr.bf16.mxu0 0
      %2802 = vmatpush1.bf16.msra.mxu0 0
      %2803 = vmatprep.subr.bf16.mxu0 0
      %2804 = vmatpush1.bf16.msra.mxu0 0
      %2805 = vmatprep.mubr.bf16.mxu0 0
      %2806 = vmatmul.mubr.bf16.gmra.mrb[0].mxu0 %v2708
      %v2807 = vpop.f32.mrb[0].mxu0
      %v2808 = vadd.f32 0.0, %v2807
      %v2809 = vpop.f32.mrb[0].mxu0
      %v2810 = vpop.f32.mrb[0].mxu0
      %v2811 = vpop.f32.mrb[0].mxu0
      %2812 = vdwg.mxu0
      %s2813 = smul.u32 7, 3
      %s2814 = smul.addr %s2813, 8
      %s2815 = scalar_lea.vmem %s250, %s2814
      %v2816 = vld [vmem:[%s2815] sm:$0xff]
      %v2817 = vadd.f32 %v2816, %v2808
      %v2818 = vxor.u32 %v2817, 2147483648
      %v2819 = vmul.f32 %v2818, 1.442695
      %v2820 = vpow.pop %v2819
      %v2821 = vadd.f32 %v2820, 1.0
      %v2822 = vrcp.pop %v2821
      %v2823 = vmul.f32 1.0, %v2822
      %v2824 = vld [vmem:[%s1 + $0x4] sm:$0xf]
      %v2825 = vld [vmem:[%s1 + $0x10] sm:$0xf]
      %v2826 = vld [vmem:[%s1 + $0x1c] sm:$0xf]
      %v2827 = vld [vmem:[%s1 + $0x28] sm:$0xf]
      %v2828 = vld [vmem:[%s1 + $0x34] sm:$0xf]
      %v2829 = vld [vmem:[%s1 + $0x40] sm:$0xf]
      %v2830 = vld [vmem:[%s1 + $0x4c] sm:$0xf]
      %v2831 = vld [vmem:[%s1 + $0x58] sm:$0xf]
      %v2832 = vld [vmem:[%s1 + $0x64] sm:$0xf]
      %v2833 = vld [vmem:[%s1 + $0x70] sm:$0xf]
      %v2834 = vld [vmem:[%s1 + $0x7c] sm:$0xf]
      %v2835 = vld [vmem:[%s1 + $0x88] sm:$0xf]
      %v2836 = vld [vmem:[%s1 + $0x94] sm:$0xf]
      %v2837 = vld [vmem:[%s1 + $0xa0] sm:$0xf]
      %v2838 = vld [vmem:[%s1 + $0xac] sm:$0xf]
      %v2839 = vld [vmem:[%s1 + $0xb8] sm:$0xf]
      %v2856 = vunpack.c.l.b16 %v2824
      %v2857 = vunpack.c.l.b16 %v2825
      %v2858 = vunpack.c.l.b16 %v2826
      %v2859 = vunpack.c.l.b16 %v2827
      %v2860 = vunpack.c.l.b16 %v2828
      %v2861 = vunpack.c.l.b16 %v2829
      %v2862 = vunpack.c.l.b16 %v2830
      %v2863 = vunpack.c.l.b16 %v2831
      %v2864 = vunpack.c.l.b16 %v2832
      %v2865 = vunpack.c.l.b16 %v2833
      %v2866 = vunpack.c.l.b16 %v2834
      %v2867 = vunpack.c.l.b16 %v2835
      %v2868 = vunpack.c.l.b16 %v2836
      %v2869 = vunpack.c.l.b16 %v2837
      %v2870 = vunpack.c.l.b16 %v2838
      %v2871 = vunpack.c.l.b16 %v2839
      %v2872 = vpack.c.b16 %v2857, %v2856
      %v2873 = vpack.c.b16 %v2859, %v2858
      %v2874 = vpack.c.b16 %v2861, %v2860
      %v2875 = vpack.c.b16 %v2863, %v2862
      %v2876 = vpack.c.b16 %v2865, %v2864
      %v2877 = vpack.c.b16 %v2867, %v2866
      %v2878 = vpack.c.b16 %v2869, %v2868
      %v2879 = vpack.c.b16 %v2871, %v2870
      %2888 = vmatprep.subr.bf16.mxu0 0
      %2889 = vmatpush1.bf16.msra.mxu0 %v2872
      %2890 = vmatprep.subr.bf16.mxu0 0
      %2891 = vmatpush1.bf16.msra.mxu0 %v2873
      %2892 = vmatprep.subr.bf16.mxu0 0
      %2893 = vmatpush1.bf16.msra.mxu0 %v2874
      %2894 = vmatprep.subr.bf16.mxu0 0
      %2895 = vmatpush1.bf16.msra.mxu0 %v2875
      %2896 = vmatprep.subr.bf16.mxu0 0
      %2897 = vmatpush1.bf16.msra.mxu0 %v2876
      %2898 = vmatprep.subr.bf16.mxu0 0
      %2899 = vmatpush1.bf16.msra.mxu0 %v2877
      %2900 = vmatprep.subr.bf16.mxu0 0
      %2901 = vmatpush1.bf16.msra.mxu0 %v2878
      %2902 = vmatprep.subr.bf16.mxu0 0
      %2903 = vmatpush1.bf16.msra.mxu0 %v2879
      %2904 = vmatprep.subr.bf16.mxu0 0
      %2905 = vmatpush1.bf16.msra.mxu0 0
      %2906 = vmatprep.subr.bf16.mxu0 0
      %2907 = vmatpush1.bf16.msra.mxu0 0
      %2908 = vmatprep.subr.bf16.mxu0 0
      %2909 = vmatpush1.bf16.msra.mxu0 0
      %2910 = vmatprep.subr.bf16.mxu0 0
      %2911 = vmatpush1.bf16.msra.mxu0 0
      %2912 = vmatprep.subr.bf16.mxu0 0
      %2913 = vmatpush1.bf16.msra.mxu0 0
      %2914 = vmatprep.subr.bf16.mxu0 0
      %2915 = vmatpush1.bf16.msra.mxu0 0
      %2916 = vmatprep.subr.bf16.mxu0 0
      %2917 = vmatpush1.bf16.msra.mxu0 0
      %2918 = vmatprep.subr.bf16.mxu0 0
      %2919 = vmatpush1.bf16.msra.mxu0 0
      %2920 = vmatprep.mubr.bf16.mxu0 0
      %2921 = vmatmul.mubr.bf16.gmra.mrb[0].mxu0 %v2708
      %v2922 = vpop.f32.mrb[0].mxu0
      %v2923 = vadd.f32 0.0, %v2922
      %v2924 = vpop.f32.mrb[0].mxu0
      %v2925 = vpop.f32.mrb[0].mxu0
      %v2926 = vpop.f32.mrb[0].mxu0
      %2927 = vdwg.mxu0
      %v2928 = vld [vmem:[%s2815 + $0x8] sm:$0xff]
      %v2929 = vadd.f32 %v2928, %v2923
      %v2930 = vxor.u32 %v2929, 2147483648
      %v2931 = vmul.f32 %v2930, 1.442695
      %v2932 = vpow.pop %v2931
      %v2933 = vadd.f32 %v2932, 1.0
      %v2934 = vrcp.pop %v2933
      %v2935 = vmul.f32 1.0, %v2934
      %v2936 = vld [vmem:[%s1 + $0x8] sm:$0xf]
      %v2937 = vld [vmem:[%s1 + $0x14] sm:$0xf]
      %v2938 = vld [vmem:[%s1 + $0x20] sm:$0xf]
      %v2939 = vld [vmem:[%s1 + $0x2c] sm:$0xf]
      %v2940 = vld [vmem:[%s1 + $0x38] sm:$0xf]
      %v2941 = vld [vmem:[%s1 + $0x44] sm:$0xf]
      %v2942 = vld [vmem:[%s1 + $0x50] sm:$0xf]
      %v2943 = vld [vmem:[%s1 + $0x5c] sm:$0xf]
      %v2944 = vld [vmem:[%s1 + $0x68] sm:$0xf]
      %v2945 = vld [vmem:[%s1 + $0x74] sm:$0xf]
      %v2946 = vld [vmem:[%s1 + $0x80] sm:$0xf]
      %v2947 = vld [vmem:[%s1 + $0x8c] sm:$0xf]
      %v2948 = vld [vmem:[%s1 + $0x98] sm:$0xf]
      %v2949 = vld [vmem:[%s1 + $0xa4] sm:$0xf]
      %v2950 = vld [vmem:[%s1 + $0xb0] sm:$0xf]
      %v2951 = vld [vmem:[%s1 + $0xbc] sm:$0xf]
      %v2952 = vld [vmem:[%s2815 + $0x10] sm:$0xff]
      %v2953 = vld [vmem:[%s2] sm:$0x1]
      %v2955 = vlaneseq
      %v2956 = vshrl.u32 %v2955, 7
      %v2957 = vsub.s32 0, %v2956
      %v2958 = vrot.slane %v2953, %v2957
      %v2976 = vunpack.c.l.b16 %v2936
      %v2977 = vunpack.c.l.b16 %v2937
      %v2978 = vunpack.c.l.b16 %v2938
      %v2979 = vunpack.c.l.b16 %v2939
      %v2980 = vunpack.c.l.b16 %v2940
      %v2981 = vunpack.c.l.b16 %v2941
      %v2982 = vunpack.c.l.b16 %v2942
      %v2983 = vunpack.c.l.b16 %v2943
      %v2984 = vunpack.c.l.b16 %v2944
      %v2985 = vunpack.c.l.b16 %v2945
      %v2986 = vunpack.c.l.b16 %v2946
      %v2987 = vunpack.c.l.b16 %v2947
      %v2988 = vunpack.c.l.b16 %v2948
      %v2989 = vunpack.c.l.b16 %v2949
      %v2990 = vunpack.c.l.b16 %v2950
      %v2991 = vunpack.c.l.b16 %v2951
      %v2992 = vpack.c.b16 %v2977, %v2976
      %v2993 = vpack.c.b16 %v2979, %v2978
      %v2994 = vpack.c.b16 %v2981, %v2980
      %v2995 = vpack.c.b16 %v2983, %v2982
      %v2996 = vpack.c.b16 %v2985, %v2984
      %v2997 = vpack.c.b16 %v2987, %v2986
      %v2998 = vpack.c.b16 %v2989, %v2988
      %v2999 = vpack.c.b16 %v2991, %v2990
      %3008 = vmatprep.subr.bf16.mxu0 0
      %3009 = vmatpush1.bf16.msra.mxu0 %v2992
      %3010 = vmatprep.subr.bf16.mxu0 0
      %3011 = vmatpush1.bf16.msra.mxu0 %v2993
      %3012 = vmatprep.subr.bf16.mxu0 0
      %3013 = vmatpush1.bf16.msra.mxu0 %v2994
      %3014 = vmatprep.subr.bf16.mxu0 0
      %3015 = vmatpush1.bf16.msra.mxu0 %v2995
      %3016 = vmatprep.subr.bf16.mxu0 0
      %3017 = vmatpush1.bf16.msra.mxu0 %v2996
      %3018 = vmatprep.subr.bf16.mxu0 0
      %3019 = vmatpush1.bf16.msra.mxu0 %v2997
      %3020 = vmatprep.subr.bf16.mxu0 0
      %3021 = vmatpush1.bf16.msra.mxu0 %v2998
      %3022 = vmatprep.subr.bf16.mxu0 0
      %3023 = vmatpush1.bf16.msra.mxu0 %v2999
      %3024 = vmatprep.subr.bf16.mxu0 0
      %3025 = vmatpush1.bf16.msra.mxu0 0
      %3026 = vmatprep.subr.bf16.mxu0 0
      %3027 = vmatpush1.bf16.msra.mxu0 0
      %3028 = vmatprep.subr.bf16.mxu0 0
      %3029 = vmatpush1.bf16.msra.mxu0 0
      %3030 = vmatprep.subr.bf16.mxu0 0
      %3031 = vmatpush1.bf16.msra.mxu0 0
      %3032 = vmatprep.subr.bf16.mxu0 0
      %3033 = vmatpush1.bf16.msra.mxu0 0
      %3034 = vmatprep.subr.bf16.mxu0 0
      %3035 = vmatpush1.bf16.msra.mxu0 0
      %3036 = vmatprep.subr.bf16.mxu0 0
      %3037 = vmatpush1.bf16.msra.mxu0 0
      %3038 = vmatprep.subr.bf16.mxu0 0
      %3039 = vmatpush1.bf16.msra.mxu0 0
      %3040 = vmatprep.mubr.bf16.mxu0 0
      %3041 = vmatmul.mubr.bf16.gmra.mrb[0].mxu0 %v2708
      %v3042 = vpop.f32.mrb[0].mxu0
      %v3043 = vadd.f32 %v2958, %v3042
      %v3044 = vpop.f32.mrb[0].mxu0
      %v3045 = vpop.f32.mrb[0].mxu0
      %v3046 = vpop.f32.mrb[0].mxu0
      %3047 = vdwg.mxu0
      %v3048 = vmul.f32 %v2823, %v3043
      %v3049 = vadd.f32 %v2952, %v3048
      %v3050 = vtanh.pop %v3049
      %v3051 = vsub.f32 1.0, %v2935
      %v3052 = vmul.f32 %v3051, %v3050
      %v3053 = vmul.f32 %v2935, %v2705
      %v3054 = vadd.f32 %v3052, %v3053
      %s3055 = scalar_lea.vmem [#allocation3], 56
      %3056 = vst [vmem:[%s3055] sm:$0xff] %v3054
      %3057 = vst [vmem:[#allocation2] sm:$0xff] %v3054
      %v3058 = vld [vmem:[#allocation3] sm:$0xff]
      %v3059 = vld [vmem:[#allocation3 + $0x8] sm:$0xff]
      %v3060 = vld [vmem:[#allocation3 + $0x10] sm:$0xff]
      %v3061 = vld [vmem:[#allocation3 + $0x18] sm:$0xff]
      %v3062 = vld [vmem:[#allocation3 + $0x20] sm:$0xff]
      %v3063 = vld [vmem:[#allocation3 + $0x28] sm:$0xff]
      %v3064 = vld [vmem:[#allocation3 + $0x30] sm:$0xff]
      %v3065 = vld [vmem:[#allocation3 + $0x38] sm:$0xff]
      %v3066 = vpack.c.bf16 %v3059, %v3058
      %v3067 = vpack.c.bf16 %v3061, %v3060
      %v3068 = vpack.c.bf16 %v3063, %v3062
      %v3069 = vpack.c.bf16 %v3065, %v3064
      %v3070 = vld [vmem:[%s3] sm:$0xf]
      %v3071 = vld [vmem:[%s3 + $0x4] sm:$0xf]
      %v3072 = vld [vmem:[%s3 + $0x8] sm:$0xf]
      %v3073 = vld [vmem:[%s3 + $0xc] sm:$0xf]
      %v3074 = vld [vmem:[%s3 + $0x10] sm:$0xf]
      %v3075 = vld [vmem:[%s3 + $0x14] sm:$0xf]
      %v3076 = vld [vmem:[%s3 + $0x18] sm:$0xf]
      %v3077 = vld [vmem:[%s3 + $0x1c] sm:$0xf]
      %v3078 = vld [vmem:[%s3 + $0x20] sm:$0xf]
      %v3079 = vld [vmem:[%s3 + $0x24] sm:$0xf]
      %v3080 = vld [vmem:[%s3 + $0x28] sm:$0xf]
      %v3081 = vld [vmem:[%s3 + $0x2c] sm:$0xf]
      %v3082 = vld [vmem:[%s3 + $0x30] sm:$0xf]
      %v3083 = vld [vmem:[%s3 + $0x34] sm:$0xf]
      %v3084 = vld [vmem:[%s3 + $0x38] sm:$0xf]
      %v3085 = vld [vmem:[%s3 + $0x3c] sm:$0xf]
      %v3086 = vld [vmem:[%s4] sm:$0x1]
      %v3088 = vlaneseq
      %v3089 = vshrl.u32 %v3088, 7
      %v3090 = vsub.s32 0, %v3089
      %v3091 = vrot.slane %v3086, %v3090
      %v3109 = vunpack.c.l.b16 %v3070
      %v3110 = vunpack.c.l.b16 %v3071
      %v3111 = vunpack.c.l.b16 %v3072
      %v3112 = vunpack.c.l.b16 %v3073
      %v3113 = vunpack.c.l.b16 %v3074
      %v3114 = vunpack.c.l.b16 %v3075
      %v3115 = vunpack.c.l.b16 %v3076
      %v3116 = vunpack.c.l.b16 %v3077
      %v3117 = vunpack.c.l.b16 %v3078
      %v3118 = vunpack.c.l.b16 %v3079
      %v3119 = vunpack.c.l.b16 %v3080
      %v3120 = vunpack.c.l.b16 %v3081
      %v3121 = vunpack.c.l.b16 %v3082
      %v3122 = vunpack.c.l.b16 %v3083
      %v3123 = vunpack.c.l.b16 %v3084
      %v3124 = vunpack.c.l.b16 %v3085
      %v3125 = vpack.c.b16 %v3110, %v3109
      %v3126 = vpack.c.b16 %v3112, %v3111
      %v3127 = vpack.c.b16 %v3114, %v3113
      %v3128 = vpack.c.b16 %v3116, %v3115
      %v3129 = vpack.c.b16 %v3118, %v3117
      %v3130 = vpack.c.b16 %v3120, %v3119
      %v3131 = vpack.c.b16 %v3122, %v3121
      %v3132 = vpack.c.b16 %v3124, %v3123
      %3141 = vmatprep.subr.bf16.mxu0 0
      %3142 = vmatpush1.bf16.msra.mxu0 %v3125
      %3143 = vmatprep.subr.bf16.mxu0 0
      %3144 = vmatpush1.bf16.msra.mxu0 %v3126
      %3145 = vmatprep.subr.bf16.mxu0 0
      %3146 = vmatpush1.bf16.msra.mxu0 %v3127
      %3147 = vmatprep.subr.bf16.mxu0 0
      %3148 = vmatpush1.bf16.msra.mxu0 %v3128
      %3149 = vmatprep.subr.bf16.mxu0 0
      %3150 = vmatpush1.bf16.msra.mxu0 %v3129
      %3151 = vmatprep.subr.bf16.mxu0 0
      %3152 = vmatpush1.bf16.msra.mxu0 %v3130
      %3153 = vmatprep.subr.bf16.mxu0 0
      %3154 = vmatpush1.bf16.msra.mxu0 %v3131
      %3155 = vmatprep.subr.bf16.mxu0 0
      %3156 = vmatpush1.bf16.msra.mxu0 %v3132
      %3157 = vmatprep.subr.bf16.mxu0 0
      %3158 = vmatpush1.bf16.msra.mxu0 0
      %3159 = vmatprep.subr.bf16.mxu0 0
      %3160 = vmatpush1.bf16.msra.mxu0 0
      %3161 = vmatprep.subr.bf16.mxu0 0
      %3162 = vmatpush1.bf16.msra.mxu0 0
      %3163 = vmatprep.subr.bf16.mxu0 0
      %3164 = vmatpush1.bf16.msra.mxu0 0
      %3165 = vmatprep.subr.bf16.mxu0 0
      %3166 = vmatpush1.bf16.msra.mxu0 0
      %3167 = vmatprep.subr.bf16.mxu0 0
      %3168 = vmatpush1.bf16.msra.mxu0 0
      %3169 = vmatprep.subr.bf16.mxu0 0
      %3170 = vmatpush1.bf16.msra.mxu0 0
      %3171 = vmatprep.subr.bf16.mxu0 0
      %3172 = vmatpush1.bf16.msra.mxu0 0
      %3173 = vmatprep.mubr.bf16.mxu0 0
      %3174 = vmatmul.mubr.bf16.gmra.mrb[0].mxu0 %v3066
      %v3175 = vpop.f32.mrb[0].mxu0
      %v3176 = vadd.f32 %v3091, %v3175
      %v3177 = vpop.f32.mrb[0].mxu0
      %v3178 = vpop.f32.mrb[0].mxu0
      %v3179 = vadd.f32 %v3091, %v3178
      %v3180 = vpop.f32.mrb[0].mxu0
      %3181 = vmatprep.mubr.bf16.mxu0 0
      %3182 = vmatmul.mubr.bf16.gmra.mrb[0].mxu0 %v3067
      %v3183 = vpop.f32.mrb[0].mxu0
      %v3184 = vadd.f32 %v3091, %v3183
      %v3185 = vpop.f32.mrb[0].mxu0
      %v3186 = vpop.f32.mrb[0].mxu0
      %v3187 = vadd.f32 %v3091, %v3186
      %v3188 = vpop.f32.mrb[0].mxu0
      %3189 = vmatprep.mubr.bf16.mxu0 0
      %3190 = vmatmul.mubr.bf16.gmra.mrb[0].mxu0 %v3068
      %v3191 = vpop.f32.mrb[0].mxu0
      %v3192 = vadd.f32 %v3091, %v3191
      %v3193 = vpop.f32.mrb[0].mxu0
      %v3194 = vpop.f32.mrb[0].mxu0
      %v3195 = vadd.f32 %v3091, %v3194
      %v3196 = vpop.f32.mrb[0].mxu0
      %3197 = vmatprep.mubr.bf16.mxu0 0
      %3198 = vmatmul.mubr.bf16.gmra.mrb[0].mxu0 %v3069
      %v3199 = vpop.f32.mrb[0].mxu0
      %v3200 = vadd.f32 %v3091, %v3199
      %v3201 = vpop.f32.mrb[0].mxu0
      %v3202 = vpop.f32.mrb[0].mxu0
      %v3203 = vadd.f32 %v3091, %v3202
      %v3204 = vpop.f32.mrb[0].mxu0
      %3205 = vdwg.mxu0
      %3206 = vst [vmem:[%s256] sm:$0xff] %v3176
      %3207 = vst [vmem:[%s256 + $0x8] sm:$0xff] %v3179
      %3208 = vst [vmem:[%s256 + $0x10] sm:$0xff] %v3184
      %3209 = vst [vmem:[%s256 + $0x18] sm:$0xff] %v3187
      %3210 = vst [vmem:[%s256 + $0x20] sm:$0xff] %v3192
      %3211 = vst [vmem:[%s256 + $0x28] sm:$0xff] %v3195
      %3212 = vst [vmem:[%s256 + $0x30] sm:$0xff] %v3200
      %3213 = vst [vmem:[%s256 + $0x38] sm:$0xff] %v3203
      %s3214 = smul.u32 8, %s17
      %p3215 = scmp.lt.s32.totalorder %s3214, 31
      %s3216 = scalar_select %p3215, %s3214, 31
      %s3217 = smul.addr %s3216, 8
      %s3218 = scalar_lea.vmem %s6, %s3217
      // Predicated region
      $region49: #{predictor_forward.1} parent=43 // pred_check
        %p3219 = pneg %p166
      $region50: #{predictor_forward.1} parent=43 // pred_check_branch
        %3221 = sbr.rel (%p3219) target = $region52
      $region51: #{predictor_forward.1} parent=43 // pred_region
        %s3222 = smul.u32 8, %s17
      $region52: #{predictor_forward.1} parent=43 // pred_fallthru
        _
    $region44: #{predictor_forward.1} parent=5 // pred_fallthru
      _
    %p3223 = scmp.le.s32.totalorder 2, %s12
    // Predicated region
    $region53: #{predictor_forward.1} parent=5 // pred_check
      %p3224 = pneg %p3223
    $region54: #{predictor_forward.1} parent=5 // pred_check_branch
      %3226 = sbr.rel (%p3224) target = $region56
    $region55: #{predictor_forward.1} parent=5 // pred_region
      %s3227 = ssub.s32 %s12, 2
      // Predicated region
      $region57: #{predictor_forward.1} parent=55 // pred_check
        %p3228 = pneg %p172
      $region58: #{predictor_forward.1} parent=55 // pred_check_branch
        %3230 = sbr.rel (%p3228) target = $region60
      $region59: #{predictor_forward.1} parent=55 // pred_region
        %s3231 = smul.u32 8, %s18
        %p3232 = scmp.lt.s32.totalorder %s3231, 31
        %s3233 = scalar_select %p3232, %s3231, 31
        %s3234 = smul.addr %s3233, 8
        %s3235 = scalar_lea.vmem %s6, %s3234
      $region60: #{predictor_forward.1} parent=55 // pred_fallthru
        _
    $region56: #{predictor_forward.1} parent=5 // pred_fallthru
      _
  $region6: #{predictor_forward.1} parent=0 // loop_footer
    %s16 = sadd.s32 1, %s12
  $region7: #{predictor_forward.1} parent=0 // loop_footer_branch
    %11 = sbr.rel target = $region3
  $region8: #{predictor_forward.1} parent=0 // loop_exit
    _

</llo_original>
